<compile_context>
chip_gen: v7x
topology: tpu7x:2x2x1
jax: 0.10.0
libtpu: 0.0.40
codegen_flags: <defaults>
</compile_context>

<pallas_src>
import functools

import jax
import jax.numpy as jnp
from jax.experimental import pallas as pl
from jax.experimental.pallas import tpu as pltpu


EXTRACTOR_OUTPUT_DIM = 1536   # fixed by EfficientNet-b3
HIDDEN_DIM = 256
OUTPUT_DIM = 64

_LANE = 128
_SUBLANE = 8


def _vmem_budgets():
    """Returns (per-pipeline-buffer budget for the x block, vmem_limit_bytes)."""
    vmem_phys = None
    try:
        info = pltpu.get_tpu_info()
        vmem_phys = getattr(info, "vmem_capacity_bytes", None)
    except Exception:
        vmem_phys = None
    if vmem_phys is not None and vmem_phys >= 96 * 1024 * 1024:
        # v5e / v6e: 128 MiB physical VMEM -> bigger tiles, fewer grid steps.
        return 20 * 1024 * 1024, 56 * 1024 * 1024
    # v7x (64 MiB per TC) or unknown chip: stay conservative.
    return 8 * 1024 * 1024, 28 * 1024 * 1024


def _choose_fold(c, hw):
    """Fold factor so the feature block's last dim becomes lane-dense (x128)."""
    if hw % _LANE == 0:
        return 1
    if hw < _LANE and _LANE % hw == 0 and c % (_LANE // hw) == 0:
        return _LANE // hw
    return 1


def sim_head_kernel(x_ref, w1_ref, b1_ref, w2_ref, b2_ref, o_ref, *,
                    inv_hw, hw, fold):
    """Fused: global-avg-pool over spatial, Linear, LeakyReLU(0.1), Linear.

    x_ref : (TN, C//fold, fold*HW) bf16/f32 feature tile (lane-dense layout)
    w1_ref: (C, H)   first linear weight, rows pre-permuted for the fold order
    b1_ref: (1, H)   first linear bias (f32)
    w2_ref: (H, O)   second linear weight
    b2_ref: (1, O)   second linear bias (f32)
    o_ref : (TN, O)  output tile (f32)
    """
    x = x_ref[...]                                        # keep native dtype
    # AdaptiveAvgPool2d(1) == spatial mean, strength-reduced to sum * (1/HW)
    # with f32 accumulation and no full-tile f32 temporary.  Each lane
    # sub-slice j holds channels {fold*c2 + j}; w1 was row-permuted to match.
    parts = [
        jnp.sum(x[:, :, j * hw:(j + 1) * hw], axis=-1, dtype=jnp.float32)
        for j in range(fold)
    ]
    pooled = parts[0] if fold == 1 else jnp.concatenate(parts, axis=-1)
    pooled = (pooled * inv_hw).astype(w1_ref.dtype)       # bf16 MXU path

    # Linear(1536 -> hidden) on the MXU, bf16 x bf16 -> f32 accumulation.
    h = jnp.dot(pooled, w1_ref[...],
                preferred_element_type=jnp.float32) + b1_ref[...]
    # LeakyReLU(negative_slope=0.1)
    h = jnp.where(h > 0, h, 0.1 * h)

    # Linear(hidden -> output) on the MXU.
    out = jnp.dot(h.astype(w2_ref.dtype), w2_ref[...],
                  preferred_element_type=jnp.float32) + b2_ref[...]
    o_ref[...] = out.astype(o_ref.dtype)


def sim_model_forward(x_nchw, w1, b1, w2, b2):
    """x_nchw: (N, C=1536, Hs, Ws) feature map from the (frozen) extractor.

    w1: (C, HIDDEN_DIM), b1: (HIDDEN_DIM,), w2: (HIDDEN_DIM, OUTPUT_DIM),
    b2: (OUTPUT_DIM,).  Weights may be bf16 (recommended) or f32.
    Returns (N, OUTPUT_DIM) float32.
    """
    n, c, hs, ws = x_nchw.shape
    assert c == EXTRACTOR_OUTPUT_DIM
    hw = hs * ws

    fold = _choose_fold(c, hw)
    c_fold = c // fold
    last = fold * hw

    # Free, contiguous reshape (no HBM transpose): (N, C, Hs, Ws) ->
    # (N, C//fold, fold*HW) -- last dim becomes a multiple of 128 when folded.
    x = x_nchw.reshape(n, c_fold, last)

    # Pre-permute w1's rows once so the kernel's concat([even-sums, odd-sums])
    # channel order matches -- done outside the kernel, tiny one-time gather.
    if fold > 1:
        perm = jnp.arange(c).reshape(c_fold, fold).T.reshape(-1)
        w1_in = jnp.take(w1, perm, axis=0)
    else:
        w1_in = w1

    # Biases as (1, dim) f32 rows so they stay 2-D on TPU and broadcast over N.
    b1_2d = b1.reshape(1, HIDDEN_DIM).astype(jnp.float32)
    b2_2d = b2.reshape(1, OUTPUT_DIM).astype(jnp.float32)

    # ---- Batch tile size from a VMEM budget, with (sublane, lane) padding. --
    x_budget, vmem_limit = _vmem_budgets()
    itemsize = jnp.dtype(x.dtype).itemsize
    last_padded = ((last + _LANE - 1) // _LANE) * _LANE
    sub_padded = ((c_fold + _SUBLANE - 1) // _SUBLANE) * _SUBLANE
    bytes_per_row = sub_padded * last_padded * itemsize

    tile_budget = max(1, x_budget // bytes_per_row)
    if n >= 16:
        # Guarantee >=2 grid steps: DMA/compute pipelining + megacore sharding.
        tile_budget = min(tile_budget, pl.cdiv(n, 2))
    if tile_budget >= n:
        tile_n = n
    else:
        tile_n = max(_SUBLANE, (tile_budget // _SUBLANE) * _SUBLANE)
    grid = (pl.cdiv(n, tile_n),)

    w_bytes = (w1_in.size * jnp.dtype(w1_in.dtype).itemsize
               + w2.size * jnp.dtype(w2.dtype).itemsize)
    cost = pl.CostEstimate(
        flops=2 * n * c * HIDDEN_DIM
              + 2 * n * HIDDEN_DIM * OUTPUT_DIM
              + n * c * hw,
        transcendentals=0,
        bytes_accessed=x.size * itemsize + w_bytes
                       + (b1_2d.size + b2_2d.size + n * OUTPUT_DIM) * 4,
    )

    kernel = functools.partial(sim_head_kernel,
                               inv_hw=1.0 / float(hw), hw=hw, fold=fold)

    out = pl.pallas_call(
        kernel,
        out_shape=jax.ShapeDtypeStruct((n, OUTPUT_DIM), jnp.float32),
        grid=grid,
        in_specs=[
            pl.BlockSpec((tile_n, c_fold, last), lambda i: (i, 0, 0)),
            pl.BlockSpec((c, HIDDEN_DIM), lambda i: (0, 0)),       # resident
            pl.BlockSpec((1, HIDDEN_DIM), lambda i: (0, 0)),       # resident
            pl.BlockSpec((HIDDEN_DIM, OUTPUT_DIM), lambda i: (0, 0)),
            pl.BlockSpec((1, OUTPUT_DIM), lambda i: (0, 0)),
        ],
        out_specs=pl.BlockSpec((tile_n, OUTPUT_DIM), lambda i: (i, 0)),
        compiler_params=pltpu.CompilerParams(
            dimension_semantics=("parallel",),
            vmem_limit_bytes=vmem_limit),
        cost_estimate=cost,
    )(x, w1_in, b1_2d, w2, b2_2d)
    return out


def _reference(x_nchw, w1, b1, w2, b2):
    """Pure-JAX f32 reference matching the PyTorch head semantics."""
    pooled = jnp.mean(x_nchw.astype(jnp.float32), axis=(2, 3))   # (N, C)
    h = pooled @ w1.astype(jnp.float32) + b1.astype(jnp.float32)
    h = jnp.where(h > 0, h, 0.1 * h)
    return h @ w2.astype(jnp.float32) + b2.astype(jnp.float32)


if __name__ == "__main__":
    key = jax.random.PRNGKey(0)
    k_x, k_w1, k_b1, k_w2, k_b2 = jax.random.split(key, 5)

    # Small shapes consistent with the module: batch=2, extractor feature map
    # with 1536 channels and an 8x8 spatial grid, head dims 256 -> 64.
    N, C, HS, WS = 2, EXTRACTOR_OUTPUT_DIM, 8, 8

    # Feature map stored in bf16 (bandwidth-optimized path); accumulation in
    # the kernel is f32.
    x = jax.random.normal(k_x, (N, C, HS, WS), dtype=jnp.float32)
    x = x.astype(jnp.bfloat16)

    # Deterministic parameter init (in->out layout, i.e. PyTorch weight.T),
    # stored in bf16 to halve weight DMA traffic and use the bf16 MXU path.
    w1 = (jax.random.normal(k_w1, (C, HIDDEN_DIM), dtype=jnp.float32)
          * 0.02).astype(jnp.bfloat16)
    b1 = jax.random.normal(k_b1, (HIDDEN_DIM,), dtype=jnp.float32) * 0.02
    w2 = (jax.random.normal(k_w2, (HIDDEN_DIM, OUTPUT_DIM), dtype=jnp.float32)
          * 0.02).astype(jnp.bfloat16)
    b2 = jax.random.normal(k_b2, (OUTPUT_DIM,), dtype=jnp.float32) * 0.02

    out = sim_model_forward(x, w1, b1, w2, b2)
    out = jax.block_until_ready(out)

    ref = _reference(x, w1, b1, w2, b2)
    assert out.shape == (N, OUTPUT_DIM), out.shape
    max_err = float(jnp.max(jnp.abs(out - ref)))
    # bf16 MXU path vs. f32 reference: allow bf16-level tolerance.
    assert jnp.allclose(out, ref, atol=3e-3, rtol=3e-2), max_err

    print("KERNEL_OK")
</pallas_src>

<mosaic_0001>
module attributes {stable_mosaic.version = 11 : i64} {
  func.func @sim_head_kernel(%arg0: i32, %arg1: memref<2x768x128xbf16, #tpu.memory_space<vmem>>, %arg2: memref<1536x256xbf16, #tpu.memory_space<vmem>>, %arg3: memref<1x256xf32, #tpu.memory_space<vmem>>, %arg4: memref<256x64xbf16, #tpu.memory_space<vmem>>, %arg5: memref<1x64xf32, #tpu.memory_space<vmem>>, %arg6: memref<2x64xf32, #tpu.memory_space<vmem>>) attributes {dimension_semantics = [#tpu.dimension_semantics<parallel>], iteration_bounds = array<i64: 1>, scalar_prefetch = 0 : i64, scratch_operands = 0 : i64, tpu.core_type = #tpu.core_type<tc>, window_params = [{transform_indices = @transform_0, window_bounds = array<i64: 2, 768, 128>}, {pipeline_mode = #tpu.pipeline_mode<synchronous>, transform_indices = @transform_1, window_bounds = array<i64: 1536, 256>}, {pipeline_mode = #tpu.pipeline_mode<synchronous>, transform_indices = @transform_2, window_bounds = array<i64: 1, 256>}, {pipeline_mode = #tpu.pipeline_mode<synchronous>, transform_indices = @transform_3, window_bounds = array<i64: 256, 64>}, {pipeline_mode = #tpu.pipeline_mode<synchronous>, transform_indices = @transform_4, window_bounds = array<i64: 1, 64>}, {transform_indices = @transform_5, window_bounds = array<i64: 2, 64>}]} {
    %c0 = arith.constant 0 : index
    %c0_0 = arith.constant 0 : index
    %c0_1 = arith.constant 0 : index
    %0 = vector.load %arg1[%c0, %c0_0, %c0_1] : memref<2x768x128xbf16, #tpu.memory_space<vmem>>, vector<2x768x128xbf16>
    %1 = vector.extract_strided_slice %0 {offsets = [0, 0, 0], sizes = [2, 768, 64], strides = [1, 1, 1]} : vector<2x768x128xbf16> to vector<2x768x64xbf16>
    %2 = arith.extf %1 : vector<2x768x64xbf16> to vector<2x768x64xf32>
    %cst = arith.constant dense<0.000000e+00> : vector<2x768xf32>
    %3 = vector.multi_reduction <add>, %2, %cst [2] : vector<2x768x64xf32> to vector<2x768xf32>
    %4 = vector.extract_strided_slice %0 {offsets = [0, 0, 64], sizes = [2, 768, 64], strides = [1, 1, 1]} : vector<2x768x128xbf16> to vector<2x768x64xbf16>
    %5 = arith.extf %4 : vector<2x768x64xbf16> to vector<2x768x64xf32>
    %cst_2 = arith.constant dense<0.000000e+00> : vector<2x768xf32>
    %6 = vector.multi_reduction <add>, %5, %cst_2 [2] : vector<2x768x64xf32> to vector<2x768xf32>
    %7 = tpu.concatenate %3, %6 in 1 : vector<2x768xf32>, vector<2x768xf32> -> vector<2x1536xf32>
    %cst_3 = arith.constant 1.562500e-02 : f32
    %8 = vector.broadcast %cst_3 : f32 to vector<2x1536xf32>
    %9 = arith.mulf %7, %8 : vector<2x1536xf32>
    %10 = arith.truncf %9 : vector<2x1536xf32> to vector<2x1536xbf16>
    %c0_4 = arith.constant 0 : index
    %c0_5 = arith.constant 0 : index
    %11 = vector.load %arg2[%c0_4, %c0_5] : memref<1536x256xbf16, #tpu.memory_space<vmem>>, vector<1536x256xbf16>
    %cst_6 = arith.constant dense<0.000000e+00> : vector<2x256xf32>
    %12 = tpu.matmul %10, %11, %cst_6 {dimension_numbers = #tpu.dot_dimension_numbers<[1], [0], [0], [1], [0, 0, 1, 1], [], []>} : vector<2x1536xbf16>, vector<1536x256xbf16>, vector<2x256xf32> -> vector<2x256xf32>
    %c0_7 = arith.constant 0 : index
    %c0_8 = arith.constant 0 : index
    %13 = vector.load %arg3[%c0_7, %c0_8] : memref<1x256xf32, #tpu.memory_space<vmem>>, vector<1x256xf32>
    %14 = vector.broadcast %13 : vector<1x256xf32> to vector<2x256xf32>
    %15 = arith.addf %12, %14 : vector<2x256xf32>
    %cst_9 = arith.constant 0.000000e+00 : f32
    %16 = vector.broadcast %cst_9 : f32 to vector<2x256xf32>
    %17 = arith.cmpf ogt, %15, %16 : vector<2x256xf32>
    %cst_10 = arith.constant 1.000000e-01 : f32
    %18 = vector.broadcast %cst_10 : f32 to vector<2x256xf32>
    %19 = arith.mulf %18, %15 : vector<2x256xf32>
    %20 = arith.select %17, %15, %19 : vector<2x256xi1>, vector<2x256xf32>
    %21 = arith.truncf %20 : vector<2x256xf32> to vector<2x256xbf16>
    %c0_11 = arith.constant 0 : index
    %c0_12 = arith.constant 0 : index
    %22 = vector.load %arg4[%c0_11, %c0_12] : memref<256x64xbf16, #tpu.memory_space<vmem>>, vector<256x64xbf16>
    %cst_13 = arith.constant dense<0.000000e+00> : vector<2x64xf32>
    %23 = tpu.matmul %21, %22, %cst_13 {dimension_numbers = #tpu.dot_dimension_numbers<[1], [0], [0], [1], [0, 0, 1, 1], [], []>} : vector<2x256xbf16>, vector<256x64xbf16>, vector<2x64xf32> -> vector<2x64xf32>
    %c0_14 = arith.constant 0 : index
    %c0_15 = arith.constant 0 : index
    %24 = vector.load %arg5[%c0_14, %c0_15] : memref<1x64xf32, #tpu.memory_space<vmem>>, vector<1x64xf32>
    %25 = vector.broadcast %24 : vector<1x64xf32> to vector<2x64xf32>
    %26 = arith.addf %23, %25 : vector<2x64xf32>
    %c0_16 = arith.constant 0 : index
    %c0_17 = arith.constant 0 : index
    %27 = vector.load %arg6[%c0_16, %c0_17] : memref<2x64xf32, #tpu.memory_space<vmem>>, vector<2x64xf32>
    tpu.vector_store %arg6[%c0_16, %c0_17], %26 {strides = array<i32>} : memref<2x64xf32, #tpu.memory_space<vmem>>, vector<2x64xf32>,
    return
  }
  func.func @transform_0(%arg0: i32) -> (i32, i32, i32) {
    %c0_i32 = arith.constant 0 : i32
    %c0_i32_0 = arith.constant 0 : i32
    %c0_i32_1 = arith.constant 0 : i32
    return %arg0, %c0_i32, %c0_i32_0 : i32, i32, i32
  }
  func.func @transform_1(%arg0: i32) -> (i32, i32) {
    %c0_i32 = arith.constant 0 : i32
    %c0_i32_0 = arith.constant 0 : i32
    %c0_i32_1 = arith.constant 0 : i32
    return %c0_i32, %c0_i32_0 : i32, i32
  }
  func.func @transform_2(%arg0: i32) -> (i32, i32) {
    %c0_i32 = arith.constant 0 : i32
    %c0_i32_0 = arith.constant 0 : i32
    %c0_i32_1 = arith.constant 0 : i32
    return %c0_i32, %c0_i32_0 : i32, i32
  }
  func.func @transform_3(%arg0: i32) -> (i32, i32) {
    %c0_i32 = arith.constant 0 : i32
    %c0_i32_0 = arith.constant 0 : i32
    %c0_i32_1 = arith.constant 0 : i32
    return %c0_i32, %c0_i32_0 : i32, i32
  }
  func.func @transform_4(%arg0: i32) -> (i32, i32) {
    %c0_i32 = arith.constant 0 : i32
    %c0_i32_0 = arith.constant 0 : i32
    %c0_i32_1 = arith.constant 0 : i32
    return %c0_i32, %c0_i32_0 : i32, i32
  }
  func.func @transform_5(%arg0: i32) -> (i32, i32) {
    %c0_i32 = arith.constant 0 : i32
    %c0_i32_0 = arith.constant 0 : i32
    return %arg0, %c0_i32 : i32, i32
  }
}

</mosaic_0001>

<llo_original>
// kernel: tpu_custom_call.1
$region0: #{tpu_custom_call.1}
  #allocation0 [shape = 'u32[]', space=smem, size = 0x4, offset = 0x4, fixed_abs, tag = 'smem constant byte address 0x4 - core index']
  #allocation1 [shape = 'u32[144,128]{1,0:T(1,128)}', space=vmem, size = 0x12000, scoped, tag = 'internal scratch']
  %s0 = inlined_call_operand.hbm [shape: bf16[2,768,128], index: 0, kind: input, shape index: {}]
  %s1 = inlined_call_operand.hbm [shape: bf16[1536,256], index: 1, kind: input, shape index: {}]
  %s2 = inlined_call_operand.vmem [shape: f32[1,256], index: 2, kind: input, shape index: {}]
  %s3 = inlined_call_operand.vmem [shape: bf16[256,64], index: 3, kind: input, shape index: {}]
  %s4 = inlined_call_operand.vmem [shape: f32[1,64], index: 4, kind: input, shape index: {}]
  %s5 = inlined_call_operand.hbm [shape: f32[2,64], index: 5, kind: output, shape index: {}]
  %s6 = sld [smem:[#allocation0]]
  $region38: #{tpu_custom_call.1} parent=0
    _
  %s8 = ssub.s32 1, %s6
  %s9 = scalar_select 0, %s8, %s6
  $region1: #{tpu_custom_call.1} parent=0
    #allocation2 [shape = 'u8[393216]{0}', space=vmem, size = 0x60000, scoped, tag = 'input window, operand 0, single buffered']
    #allocation3 [shape = 's32[1]{0}', space=sflag, size = 0x4, scoped, tag = 'scoped memory for tpu_custom_call.1']
    #allocation4 [shape = 's32[1]{0}', space=sflag, size = 0x4, scoped, tag = 'scoped memory for tpu_custom_call.1']
    #allocation5 [shape = 'u8[786432]{0}', space=vmem, size = 0xc0000, scoped, tag = 'input window, operand 1, single buffered']
    #allocation6 [shape = 's32[1]{0}', space=sflag, size = 0x4, scoped, tag = 'scoped memory for tpu_custom_call.1']
    #allocation7 [shape = 'u8[1024]{0}', space=vmem, size = 0x400, scoped, tag = 'output window, operand 0, single buffered']
    %10 = vsyncpa [#allocation3], 0
    %11 = vsyncpa [#allocation6], 0
    %12 = vsyncpa [#allocation4], 0
    // Predicated region
    $region2: #{tpu_custom_call.1} parent=1 // pred_check
      _
    $region3: #{tpu_custom_call.1} parent=1 // pred_check_branch
      %14 = sbr.rel (0) target = $region5
    $region4: #{tpu_custom_call.1} parent=1 // pred_region
      %s16 = ssub.s32 12288, 12288
      %17 = vsyncadd [#allocation3], %s16
      %s18 = sshll.u32 [#allocation2], 4
      %s19 = int_to_ptr.vmem [resolvable:$true] %s18
      %24 = dma.hbm_to_vmem [thread:$0]  %s0, 12288, %s19, [#allocation3], 64, 64, 4
    $region5: #{tpu_custom_call.1} parent=1 // pred_fallthru
      _
    // Predicated region
    $region6: #{tpu_custom_call.1} parent=1 // pred_check
      _
    $region7: #{tpu_custom_call.1} parent=1 // pred_check_branch
      %26 = sbr.rel (0) target = $region9
    $region8: #{tpu_custom_call.1} parent=1 // pred_region
      %s28 = ssub.s32 24576, 24576
      %29 = vsyncadd [#allocation6], %s28
      %s30 = sshll.u32 [#allocation5], 4
      %s31 = int_to_ptr.vmem [resolvable:$true] %s30
      %36 = dma.hbm_to_vmem [thread:$0]  %s1, 24576, %s31, [#allocation6], 128, 128, 8
    $region9: #{tpu_custom_call.1} parent=1 // pred_fallthru
      _
    // Predicated region
    $region10: #{tpu_custom_call.1} parent=1 // pred_check
      _
    $region11: #{tpu_custom_call.1} parent=1 // pred_check_branch
      %38 = sbr.rel (0) target = $region13
    $region12: #{tpu_custom_call.1} parent=1 // pred_region
      _
    $region13: #{tpu_custom_call.1} parent=1 // pred_fallthru
      _
    // Predicated region
    $region14: #{tpu_custom_call.1} parent=1 // pred_check
      _
    $region15: #{tpu_custom_call.1} parent=1 // pred_check_branch
      %40 = sbr.rel (0) target = $region17
    $region16: #{tpu_custom_call.1} parent=1 // pred_region
      _
    $region17: #{tpu_custom_call.1} parent=1 // pred_fallthru
      _
    // Predicated region
    $region18: #{tpu_custom_call.1} parent=1 // pred_check
      _
    $region19: #{tpu_custom_call.1} parent=1 // pred_check_branch
      %42 = sbr.rel (0) target = $region21
    $region20: #{tpu_custom_call.1} parent=1 // pred_region
      _
    $region21: #{tpu_custom_call.1} parent=1 // pred_fallthru
      _
    // Predicated region
    $region22: #{tpu_custom_call.1} parent=1 // pred_check
      _
    $region23: #{tpu_custom_call.1} parent=1 // pred_check_branch
      %44 = sbr.rel (0) target = $region25
    $region24: #{tpu_custom_call.1} parent=1 // pred_region
      %45 = dma.done [#allocation3], 12288
    $region25: #{tpu_custom_call.1} parent=1 // pred_fallthru
      _
    // Predicated region
    $region26: #{tpu_custom_call.1} parent=1 // pred_check
      _
    $region27: #{tpu_custom_call.1} parent=1 // pred_check_branch
      %47 = sbr.rel (0) target = $region29
    $region28: #{tpu_custom_call.1} parent=1 // pred_region
      %48 = dma.done [#allocation6], 24576
    $region29: #{tpu_custom_call.1} parent=1 // pred_fallthru
      _
    %v50 = vld [vmem:[#allocation2] sm:$0xf]
    %v51 = vld [vmem:[#allocation2 + $0x4] sm:$0xf]
    %v52 = vld [vmem:[#allocation2 + $0x8] sm:$0xf]
    %v53 = vld [vmem:[#allocation2 + $0xc] sm:$0xf]
    %v54 = vld [vmem:[#allocation2 + $0x10] sm:$0xf]
    %v55 = vld [vmem:[#allocation2 + $0x14] sm:$0xf]
    %v56 = vld [vmem:[#allocation2 + $0x18] sm:$0xf]
    %v57 = vld [vmem:[#allocation2 + $0x1c] sm:$0xf]
    %v58 = vld [vmem:[#allocation2 + $0x20] sm:$0xf]
    %v59 = vld [vmem:[#allocation2 + $0x24] sm:$0xf]
    %v60 = vld [vmem:[#allocation2 + $0x28] sm:$0xf]
    %v61 = vld [vmem:[#allocation2 + $0x2c] sm:$0xf]
    %v62 = vld [vmem:[#allocation2 + $0x30] sm:$0xf]
    %v63 = vld [vmem:[#allocation2 + $0x34] sm:$0xf]
    %v64 = vld [vmem:[#allocation2 + $0x38] sm:$0xf]
    %v65 = vld [vmem:[#allocation2 + $0x3c] sm:$0xf]
    %v66 = vld [vmem:[#allocation2 + $0x40] sm:$0xf]
    %v67 = vld [vmem:[#allocation2 + $0x44] sm:$0xf]
    %v68 = vld [vmem:[#allocation2 + $0x48] sm:$0xf]
    %v69 = vld [vmem:[#allocation2 + $0x4c] sm:$0xf]
    %v70 = vld [vmem:[#allocation2 + $0x50] sm:$0xf]
    %v71 = vld [vmem:[#allocation2 + $0x54] sm:$0xf]
    %v72 = vld [vmem:[#allocation2 + $0x58] sm:$0xf]
    %v73 = vld [vmem:[#allocation2 + $0x5c] sm:$0xf]
    %v74 = vld [vmem:[#allocation2 + $0x60] sm:$0xf]
    %v75 = vld [vmem:[#allocation2 + $0x64] sm:$0xf]
    %v76 = vld [vmem:[#allocation2 + $0x68] sm:$0xf]
    %v77 = vld [vmem:[#allocation2 + $0x6c] sm:$0xf]
    %v78 = vld [vmem:[#allocation2 + $0x70] sm:$0xf]
    %v79 = vld [vmem:[#allocation2 + $0x74] sm:$0xf]
    %v80 = vld [vmem:[#allocation2 + $0x78] sm:$0xf]
    %v81 = vld [vmem:[#allocation2 + $0x7c] sm:$0xf]
    %v82 = vld [vmem:[#allocation2 + $0x80] sm:$0xf]
    %v83 = vld [vmem:[#allocation2 + $0x84] sm:$0xf]
    %v84 = vld [vmem:[#allocation2 + $0x88] sm:$0xf]
    %v85 = vld [vmem:[#allocation2 + $0x8c] sm:$0xf]
    %v86 = vld [vmem:[#allocation2 + $0x90] sm:$0xf]
    %v87 = vld [vmem:[#allocation2 + $0x94] sm:$0xf]
    %v88 = vld [vmem:[#allocation2 + $0x98] sm:$0xf]
    %v89 = vld [vmem:[#allocation2 + $0x9c] sm:$0xf]
    %v90 = vld [vmem:[#allocation2 + $0xa0] sm:$0xf]
    %v91 = vld [vmem:[#allocation2 + $0xa4] sm:$0xf]
    %v92 = vld [vmem:[#allocation2 + $0xa8] sm:$0xf]
    %v93 = vld [vmem:[#allocation2 + $0xac] sm:$0xf]
    %v94 = vld [vmem:[#allocation2 + $0xb0] sm:$0xf]
    %v95 = vld [vmem:[#allocation2 + $0xb4] sm:$0xf]
    %v96 = vld [vmem:[#allocation2 + $0xb8] sm:$0xf]
    %v97 = vld [vmem:[#allocation2 + $0xbc] sm:$0xf]
    %v98 = vld [vmem:[#allocation2 + $0xc0] sm:$0xf]
    %v99 = vld [vmem:[#allocation2 + $0xc4] sm:$0xf]
    %v100 = vld [vmem:[#allocation2 + $0xc8] sm:$0xf]
    %v101 = vld [vmem:[#allocation2 + $0xcc] sm:$0xf]
    %v102 = vld [vmem:[#allocation2 + $0xd0] sm:$0xf]
    %v103 = vld [vmem:[#allocation2 + $0xd4] sm:$0xf]
    %v104 = vld [vmem:[#allocation2 + $0xd8] sm:$0xf]
    %v105 = vld [vmem:[#allocation2 + $0xdc] sm:$0xf]
    %v106 = vld [vmem:[#allocation2 + $0xe0] sm:$0xf]
    %v107 = vld [vmem:[#allocation2 + $0xe4] sm:$0xf]
    %v108 = vld [vmem:[#allocation2 + $0xe8] sm:$0xf]
    %v109 = vld [vmem:[#allocation2 + $0xec] sm:$0xf]
    %v110 = vld [vmem:[#allocation2 + $0xf0] sm:$0xf]
    %v111 = vld [vmem:[#allocation2 + $0xf4] sm:$0xf]
    %v112 = vld [vmem:[#allocation2 + $0xf8] sm:$0xf]
    %v113 = vld [vmem:[#allocation2 + $0xfc] sm:$0xf]
    %v114 = vld [vmem:[#allocation2 + $0x100] sm:$0xf]
    %v115 = vld [vmem:[#allocation2 + $0x104] sm:$0xf]
    %v116 = vld [vmem:[#allocation2 + $0x108] sm:$0xf]
    %v117 = vld [vmem:[#allocation2 + $0x10c] sm:$0xf]
    %v118 = vld [vmem:[#allocation2 + $0x110] sm:$0xf]
    %v119 = vld [vmem:[#allocation2 + $0x114] sm:$0xf]
    %v120 = vld [vmem:[#allocation2 + $0x118] sm:$0xf]
    %v121 = vld [vmem:[#allocation2 + $0x11c] sm:$0xf]
    %v122 = vld [vmem:[#allocation2 + $0x120] sm:$0xf]
    %v123 = vld [vmem:[#allocation2 + $0x124] sm:$0xf]
    %v124 = vld [vmem:[#allocation2 + $0x128] sm:$0xf]
    %v125 = vld [vmem:[#allocation2 + $0x12c] sm:$0xf]
    %v126 = vld [vmem:[#allocation2 + $0x130] sm:$0xf]
    %v127 = vld [vmem:[#allocation2 + $0x134] sm:$0xf]
    %v128 = vld [vmem:[#allocation2 + $0x138] sm:$0xf]
    %v129 = vld [vmem:[#allocation2 + $0x13c] sm:$0xf]
    %v130 = vld [vmem:[#allocation2 + $0x140] sm:$0xf]
    %v131 = vld [vmem:[#allocation2 + $0x144] sm:$0xf]
    %v132 = vld [vmem:[#allocation2 + $0x148] sm:$0xf]
    %v133 = vld [vmem:[#allocation2 + $0x14c] sm:$0xf]
    %v134 = vld [vmem:[#allocation2 + $0x150] sm:$0xf]
    %v135 = vld [vmem:[#allocation2 + $0x154] sm:$0xf]
    %v136 = vld [vmem:[#allocation2 + $0x158] sm:$0xf]
    %v137 = vld [vmem:[#allocation2 + $0x15c] sm:$0xf]
    %v138 = vld [vmem:[#allocation2 + $0x160] sm:$0xf]
    %v139 = vld [vmem:[#allocation2 + $0x164] sm:$0xf]
    %v140 = vld [vmem:[#allocation2 + $0x168] sm:$0xf]
    %v141 = vld [vmem:[#allocation2 + $0x16c] sm:$0xf]
    %v142 = vld [vmem:[#allocation2 + $0x170] sm:$0xf]
    %v143 = vld [vmem:[#allocation2 + $0x174] sm:$0xf]
    %v144 = vld [vmem:[#allocation2 + $0x178] sm:$0xf]
    %v145 = vld [vmem:[#allocation2 + $0x17c] sm:$0xf]
    %v146 = vld [vmem:[#allocation2 + $0x180] sm:$0xf]
    %v147 = vld [vmem:[#allocation2 + $0x184] sm:$0xf]
    %v148 = vld [vmem:[#allocation2 + $0x188] sm:$0xf]
    %v149 = vld [vmem:[#allocation2 + $0x18c] sm:$0xf]
    %v150 = vld [vmem:[#allocation2 + $0x190] sm:$0xf]
    %v151 = vld [vmem:[#allocation2 + $0x194] sm:$0xf]
    %v152 = vld [vmem:[#allocation2 + $0x198] sm:$0xf]
    %v153 = vld [vmem:[#allocation2 + $0x19c] sm:$0xf]
    %v154 = vld [vmem:[#allocation2 + $0x1a0] sm:$0xf]
    %v155 = vld [vmem:[#allocation2 + $0x1a4] sm:$0xf]
    %v156 = vld [vmem:[#allocation2 + $0x1a8] sm:$0xf]
    %v157 = vld [vmem:[#allocation2 + $0x1ac] sm:$0xf]
    %v158 = vld [vmem:[#allocation2 + $0x1b0] sm:$0xf]
    %v159 = vld [vmem:[#allocation2 + $0x1b4] sm:$0xf]
    %v160 = vld [vmem:[#allocation2 + $0x1b8] sm:$0xf]
    %v161 = vld [vmem:[#allocation2 + $0x1bc] sm:$0xf]
    %v162 = vld [vmem:[#allocation2 + $0x1c0] sm:$0xf]
    %v163 = vld [vmem:[#allocation2 + $0x1c4] sm:$0xf]
    %v164 = vld [vmem:[#allocation2 + $0x1c8] sm:$0xf]
    %v165 = vld [vmem:[#allocation2 + $0x1cc] sm:$0xf]
    %v166 = vld [vmem:[#allocation2 + $0x1d0] sm:$0xf]
    %v167 = vld [vmem:[#allocation2 + $0x1d4] sm:$0xf]
    %v168 = vld [vmem:[#allocation2 + $0x1d8] sm:$0xf]
    %v169 = vld [vmem:[#allocation2 + $0x1dc] sm:$0xf]
    %v170 = vld [vmem:[#allocation2 + $0x1e0] sm:$0xf]
    %v171 = vld [vmem:[#allocation2 + $0x1e4] sm:$0xf]
    %v172 = vld [vmem:[#allocation2 + $0x1e8] sm:$0xf]
    %v173 = vld [vmem:[#allocation2 + $0x1ec] sm:$0xf]
    %v174 = vld [vmem:[#allocation2 + $0x1f0] sm:$0xf]
    %v175 = vld [vmem:[#allocation2 + $0x1f4] sm:$0xf]
    %v176 = vld [vmem:[#allocation2 + $0x1f8] sm:$0xf]
    %v177 = vld [vmem:[#allocation2 + $0x1fc] sm:$0xf]
    %v178 = vld [vmem:[#allocation2 + $0x200] sm:$0xf]
    %v179 = vld [vmem:[#allocation2 + $0x204] sm:$0xf]
    %v180 = vld [vmem:[#allocation2 + $0x208] sm:$0xf]
    %v181 = vld [vmem:[#allocation2 + $0x20c] sm:$0xf]
    %v182 = vld [vmem:[#allocation2 + $0x210] sm:$0xf]
    %v183 = vld [vmem:[#allocation2 + $0x214] sm:$0xf]
    %v184 = vld [vmem:[#allocation2 + $0x218] sm:$0xf]
    %v185 = vld [vmem:[#allocation2 + $0x21c] sm:$0xf]
    %v186 = vld [vmem:[#allocation2 + $0x220] sm:$0xf]
    %v187 = vld [vmem:[#allocation2 + $0x224] sm:$0xf]
    %v188 = vld [vmem:[#allocation2 + $0x228] sm:$0xf]
    %v189 = vld [vmem:[#allocation2 + $0x22c] sm:$0xf]
    %v190 = vld [vmem:[#allocation2 + $0x230] sm:$0xf]
    %v191 = vld [vmem:[#allocation2 + $0x234] sm:$0xf]
    %v192 = vld [vmem:[#allocation2 + $0x238] sm:$0xf]
    %v193 = vld [vmem:[#allocation2 + $0x23c] sm:$0xf]
    %v194 = vld [vmem:[#allocation2 + $0x240] sm:$0xf]
    %v195 = vld [vmem:[#allocation2 + $0x244] sm:$0xf]
    %v196 = vld [vmem:[#allocation2 + $0x248] sm:$0xf]
    %v197 = vld [vmem:[#allocation2 + $0x24c] sm:$0xf]
    %v198 = vld [vmem:[#allocation2 + $0x250] sm:$0xf]
    %v199 = vld [vmem:[#allocation2 + $0x254] sm:$0xf]
    %v200 = vld [vmem:[#allocation2 + $0x258] sm:$0xf]
    %v201 = vld [vmem:[#allocation2 + $0x25c] sm:$0xf]
    %v202 = vld [vmem:[#allocation2 + $0x260] sm:$0xf]
    %v203 = vld [vmem:[#allocation2 + $0x264] sm:$0xf]
    %v204 = vld [vmem:[#allocation2 + $0x268] sm:$0xf]
    %v205 = vld [vmem:[#allocation2 + $0x26c] sm:$0xf]
    %v206 = vld [vmem:[#allocation2 + $0x270] sm:$0xf]
    %v207 = vld [vmem:[#allocation2 + $0x274] sm:$0xf]
    %v208 = vld [vmem:[#allocation2 + $0x278] sm:$0xf]
    %v209 = vld [vmem:[#allocation2 + $0x27c] sm:$0xf]
    %v210 = vld [vmem:[#allocation2 + $0x280] sm:$0xf]
    %v211 = vld [vmem:[#allocation2 + $0x284] sm:$0xf]
    %v212 = vld [vmem:[#allocation2 + $0x288] sm:$0xf]
    %v213 = vld [vmem:[#allocation2 + $0x28c] sm:$0xf]
    %v214 = vld [vmem:[#allocation2 + $0x290] sm:$0xf]
    %v215 = vld [vmem:[#allocation2 + $0x294] sm:$0xf]
    %v216 = vld [vmem:[#allocation2 + $0x298] sm:$0xf]
    %v217 = vld [vmem:[#allocation2 + $0x29c] sm:$0xf]
    %v218 = vld [vmem:[#allocation2 + $0x2a0] sm:$0xf]
    %v219 = vld [vmem:[#allocation2 + $0x2a4] sm:$0xf]
    %v220 = vld [vmem:[#allocation2 + $0x2a8] sm:$0xf]
    %v221 = vld [vmem:[#allocation2 + $0x2ac] sm:$0xf]
    %v222 = vld [vmem:[#allocation2 + $0x2b0] sm:$0xf]
    %v223 = vld [vmem:[#allocation2 + $0x2b4] sm:$0xf]
    %v224 = vld [vmem:[#allocation2 + $0x2b8] sm:$0xf]
    %v225 = vld [vmem:[#allocation2 + $0x2bc] sm:$0xf]
    %v226 = vld [vmem:[#allocation2 + $0x2c0] sm:$0xf]
    %v227 = vld [vmem:[#allocation2 + $0x2c4] sm:$0xf]
    %v228 = vld [vmem:[#allocation2 + $0x2c8] sm:$0xf]
    %v229 = vld [vmem:[#allocation2 + $0x2cc] sm:$0xf]
    %v230 = vld [vmem:[#allocation2 + $0x2d0] sm:$0xf]
    %v231 = vld [vmem:[#allocation2 + $0x2d4] sm:$0xf]
    %v232 = vld [vmem:[#allocation2 + $0x2d8] sm:$0xf]
    %v233 = vld [vmem:[#allocation2 + $0x2dc] sm:$0xf]
    %v234 = vld [vmem:[#allocation2 + $0x2e0] sm:$0xf]
    %v235 = vld [vmem:[#allocation2 + $0x2e4] sm:$0xf]
    %v236 = vld [vmem:[#allocation2 + $0x2e8] sm:$0xf]
    %v237 = vld [vmem:[#allocation2 + $0x2ec] sm:$0xf]
    %v238 = vld [vmem:[#allocation2 + $0x2f0] sm:$0xf]
    %v239 = vld [vmem:[#allocation2 + $0x2f4] sm:$0xf]
    %v240 = vld [vmem:[#allocation2 + $0x2f8] sm:$0xf]
    %v241 = vld [vmem:[#allocation2 + $0x2fc] sm:$0xf]
    %v242 = vunpack.c.l.bf16 %v50
    %v243 = vunpack.c.l.bf16 %v51
    %v244 = vunpack.c.l.bf16 %v52
    %v245 = vunpack.c.l.bf16 %v53
    %v246 = vunpack.c.l.bf16 %v54
    %v247 = vunpack.c.l.bf16 %v55
    %v248 = vunpack.c.l.bf16 %v56
    %v249 = vunpack.c.l.bf16 %v57
    %v250 = vunpack.c.l.bf16 %v58
    %v251 = vunpack.c.l.bf16 %v59
    %v252 = vunpack.c.l.bf16 %v60
    %v253 = vunpack.c.l.bf16 %v61
    %v254 = vunpack.c.l.bf16 %v62
    %v255 = vunpack.c.l.bf16 %v63
    %v256 = vunpack.c.l.bf16 %v64
    %v257 = vunpack.c.l.bf16 %v65
    %v258 = vunpack.c.l.bf16 %v66
    %v259 = vunpack.c.l.bf16 %v67
    %v260 = vunpack.c.l.bf16 %v68
    %v261 = vunpack.c.l.bf16 %v69
    %v262 = vunpack.c.l.bf16 %v70
    %v263 = vunpack.c.l.bf16 %v71
    %v264 = vunpack.c.l.bf16 %v72
    %v265 = vunpack.c.l.bf16 %v73
    %v266 = vunpack.c.l.bf16 %v74
    %v267 = vunpack.c.l.bf16 %v75
    %v268 = vunpack.c.l.bf16 %v76
    %v269 = vunpack.c.l.bf16 %v77
    %v270 = vunpack.c.l.bf16 %v78
    %v271 = vunpack.c.l.bf16 %v79
    %v272 = vunpack.c.l.bf16 %v80
    %v273 = vunpack.c.l.bf16 %v81
    %v274 = vunpack.c.l.bf16 %v82
    %v275 = vunpack.c.l.bf16 %v83
    %v276 = vunpack.c.l.bf16 %v84
    %v277 = vunpack.c.l.bf16 %v85
    %v278 = vunpack.c.l.bf16 %v86
    %v279 = vunpack.c.l.bf16 %v87
    %v280 = vunpack.c.l.bf16 %v88
    %v281 = vunpack.c.l.bf16 %v89
    %v282 = vunpack.c.l.bf16 %v90
    %v283 = vunpack.c.l.bf16 %v91
    %v284 = vunpack.c.l.bf16 %v92
    %v285 = vunpack.c.l.bf16 %v93
    %v286 = vunpack.c.l.bf16 %v94
    %v287 = vunpack.c.l.bf16 %v95
    %v288 = vunpack.c.l.bf16 %v96
    %v289 = vunpack.c.l.bf16 %v97
    %v290 = vunpack.c.l.bf16 %v98
    %v291 = vunpack.c.l.bf16 %v99
    %v292 = vunpack.c.l.bf16 %v100
    %v293 = vunpack.c.l.bf16 %v101
    %v294 = vunpack.c.l.bf16 %v102
    %v295 = vunpack.c.l.bf16 %v103
    %v296 = vunpack.c.l.bf16 %v104
    %v297 = vunpack.c.l.bf16 %v105
    %v298 = vunpack.c.l.bf16 %v106
    %v299 = vunpack.c.l.bf16 %v107
    %v300 = vunpack.c.l.bf16 %v108
    %v301 = vunpack.c.l.bf16 %v109
    %v302 = vunpack.c.l.bf16 %v110
    %v303 = vunpack.c.l.bf16 %v111
    %v304 = vunpack.c.l.bf16 %v112
    %v305 = vunpack.c.l.bf16 %v113
    %v306 = vunpack.c.l.bf16 %v114
    %v307 = vunpack.c.l.bf16 %v115
    %v308 = vunpack.c.l.bf16 %v116
    %v309 = vunpack.c.l.bf16 %v117
    %v310 = vunpack.c.l.bf16 %v118
    %v311 = vunpack.c.l.bf16 %v119
    %v312 = vunpack.c.l.bf16 %v120
    %v313 = vunpack.c.l.bf16 %v121
    %v314 = vunpack.c.l.bf16 %v122
    %v315 = vunpack.c.l.bf16 %v123
    %v316 = vunpack.c.l.bf16 %v124
    %v317 = vunpack.c.l.bf16 %v125
    %v318 = vunpack.c.l.bf16 %v126
    %v319 = vunpack.c.l.bf16 %v127
    %v320 = vunpack.c.l.bf16 %v128
    %v321 = vunpack.c.l.bf16 %v129
    %v322 = vunpack.c.l.bf16 %v130
    %v323 = vunpack.c.l.bf16 %v131
    %v324 = vunpack.c.l.bf16 %v132
    %v325 = vunpack.c.l.bf16 %v133
    %v326 = vunpack.c.l.bf16 %v134
    %v327 = vunpack.c.l.bf16 %v135
    %v328 = vunpack.c.l.bf16 %v136
    %v329 = vunpack.c.l.bf16 %v137
    %v330 = vunpack.c.l.bf16 %v138
    %v331 = vunpack.c.l.bf16 %v139
    %v332 = vunpack.c.l.bf16 %v140
    %v333 = vunpack.c.l.bf16 %v141
    %v334 = vunpack.c.l.bf16 %v142
    %v335 = vunpack.c.l.bf16 %v143
    %v336 = vunpack.c.l.bf16 %v144
    %v337 = vunpack.c.l.bf16 %v145
    %v338 = vunpack.c.l.bf16 %v146
    %v339 = vunpack.c.l.bf16 %v147
    %v340 = vunpack.c.l.bf16 %v148
    %v341 = vunpack.c.l.bf16 %v149
    %v342 = vunpack.c.l.bf16 %v150
    %v343 = vunpack.c.l.bf16 %v151
    %v344 = vunpack.c.l.bf16 %v152
    %v345 = vunpack.c.l.bf16 %v153
    %v346 = vunpack.c.l.bf16 %v154
    %v347 = vunpack.c.l.bf16 %v155
    %v348 = vunpack.c.l.bf16 %v156
    %v349 = vunpack.c.l.bf16 %v157
    %v350 = vunpack.c.l.bf16 %v158
    %v351 = vunpack.c.l.bf16 %v159
    %v352 = vunpack.c.l.bf16 %v160
    %v353 = vunpack.c.l.bf16 %v161
    %v354 = vunpack.c.l.bf16 %v162
    %v355 = vunpack.c.l.bf16 %v163
    %v356 = vunpack.c.l.bf16 %v164
    %v357 = vunpack.c.l.bf16 %v165
    %v358 = vunpack.c.l.bf16 %v166
    %v359 = vunpack.c.l.bf16 %v167
    %v360 = vunpack.c.l.bf16 %v168
    %v361 = vunpack.c.l.bf16 %v169
    %v362 = vunpack.c.l.bf16 %v170
    %v363 = vunpack.c.l.bf16 %v171
    %v364 = vunpack.c.l.bf16 %v172
    %v365 = vunpack.c.l.bf16 %v173
    %v366 = vunpack.c.l.bf16 %v174
    %v367 = vunpack.c.l.bf16 %v175
    %v368 = vunpack.c.l.bf16 %v176
    %v369 = vunpack.c.l.bf16 %v177
    %v370 = vunpack.c.l.bf16 %v178
    %v371 = vunpack.c.l.bf16 %v179
    %v372 = vunpack.c.l.bf16 %v180
    %v373 = vunpack.c.l.bf16 %v181
    %v374 = vunpack.c.l.bf16 %v182
    %v375 = vunpack.c.l.bf16 %v183
    %v376 = vunpack.c.l.bf16 %v184
    %v377 = vunpack.c.l.bf16 %v185
    %v378 = vunpack.c.l.bf16 %v186
    %v379 = vunpack.c.l.bf16 %v187
    %v380 = vunpack.c.l.bf16 %v188
    %v381 = vunpack.c.l.bf16 %v189
    %v382 = vunpack.c.l.bf16 %v190
    %v383 = vunpack.c.l.bf16 %v191
    %v384 = vunpack.c.l.bf16 %v192
    %v385 = vunpack.c.l.bf16 %v193
    %v386 = vunpack.c.l.bf16 %v194
    %v387 = vunpack.c.l.bf16 %v195
    %v388 = vunpack.c.l.bf16 %v196
    %v389 = vunpack.c.l.bf16 %v197
    %v390 = vunpack.c.l.bf16 %v198
    %v391 = vunpack.c.l.bf16 %v199
    %v392 = vunpack.c.l.bf16 %v200
    %v393 = vunpack.c.l.bf16 %v201
    %v394 = vunpack.c.l.bf16 %v202
    %v395 = vunpack.c.l.bf16 %v203
    %v396 = vunpack.c.l.bf16 %v204
    %v397 = vunpack.c.l.bf16 %v205
    %v398 = vunpack.c.l.bf16 %v206
    %v399 = vunpack.c.l.bf16 %v207
    %v400 = vunpack.c.l.bf16 %v208
    %v401 = vunpack.c.l.bf16 %v209
    %v402 = vunpack.c.l.bf16 %v210
    %v403 = vunpack.c.l.bf16 %v211
    %v404 = vunpack.c.l.bf16 %v212
    %v405 = vunpack.c.l.bf16 %v213
    %v406 = vunpack.c.l.bf16 %v214
    %v407 = vunpack.c.l.bf16 %v215
    %v408 = vunpack.c.l.bf16 %v216
    %v409 = vunpack.c.l.bf16 %v217
    %v410 = vunpack.c.l.bf16 %v218
    %v411 = vunpack.c.l.bf16 %v219
    %v412 = vunpack.c.l.bf16 %v220
    %v413 = vunpack.c.l.bf16 %v221
    %v414 = vunpack.c.l.bf16 %v222
    %v415 = vunpack.c.l.bf16 %v223
    %v416 = vunpack.c.l.bf16 %v224
    %v417 = vunpack.c.l.bf16 %v225
    %v418 = vunpack.c.l.bf16 %v226
    %v419 = vunpack.c.l.bf16 %v227
    %v420 = vunpack.c.l.bf16 %v228
    %v421 = vunpack.c.l.bf16 %v229
    %v422 = vunpack.c.l.bf16 %v230
    %v423 = vunpack.c.l.bf16 %v231
    %v424 = vunpack.c.l.bf16 %v232
    %v425 = vunpack.c.l.bf16 %v233
    %v426 = vunpack.c.l.bf16 %v234
    %v427 = vunpack.c.l.bf16 %v235
    %v428 = vunpack.c.l.bf16 %v236
    %v429 = vunpack.c.l.bf16 %v237
    %v430 = vunpack.c.l.bf16 %v238
    %v431 = vunpack.c.l.bf16 %v239
    %v432 = vunpack.c.l.bf16 %v240
    %v433 = vunpack.c.l.bf16 %v241
    %vm434 = vcmask 523264
    %v435 = vsel %vm434, %v242, 0.0
    %436 = vadd.xlane.f32.xlu0 %v435
    %v437 = vpop.xlane.xlu0 %436
    %v438 = vsel %vm434, %v243, 0.0
    %439 = vadd.xlane.f32.xlu0 %v438
    %v440 = vpop.xlane.xlu0 %439
    %v441 = vsel %vm434, %v244, 0.0
    %442 = vadd.xlane.f32.xlu0 %v441
    %v443 = vpop.xlane.xlu0 %442
    %v444 = vsel %vm434, %v245, 0.0
    %445 = vadd.xlane.f32.xlu0 %v444
    %v446 = vpop.xlane.xlu0 %445
    %v447 = vsel %vm434, %v246, 0.0
    %448 = vadd.xlane.f32.xlu0 %v447
    %v449 = vpop.xlane.xlu0 %448
    %v450 = vsel %vm434, %v247, 0.0
    %451 = vadd.xlane.f32.xlu0 %v450
    %v452 = vpop.xlane.xlu0 %451
    %v453 = vsel %vm434, %v248, 0.0
    %454 = vadd.xlane.f32.xlu0 %v453
    %v455 = vpop.xlane.xlu0 %454
    %v456 = vsel %vm434, %v249, 0.0
    %457 = vadd.xlane.f32.xlu0 %v456
    %v458 = vpop.xlane.xlu0 %457
    %v459 = vsel %vm434, %v250, 0.0
    %460 = vadd.xlane.f32.xlu0 %v459
    %v461 = vpop.xlane.xlu0 %460
    %v462 = vsel %vm434, %v251, 0.0
    %463 = vadd.xlane.f32.xlu0 %v462
    %v464 = vpop.xlane.xlu0 %463
    %v465 = vsel %vm434, %v252, 0.0
    %466 = vadd.xlane.f32.xlu0 %v465
    %v467 = vpop.xlane.xlu0 %466
    %v468 = vsel %vm434, %v253, 0.0
    %469 = vadd.xlane.f32.xlu0 %v468
    %v470 = vpop.xlane.xlu0 %469
    %v471 = vsel %vm434, %v254, 0.0
    %472 = vadd.xlane.f32.xlu0 %v471
    %v473 = vpop.xlane.xlu0 %472
    %v474 = vsel %vm434, %v255, 0.0
    %475 = vadd.xlane.f32.xlu0 %v474
    %v476 = vpop.xlane.xlu0 %475
    %v477 = vsel %vm434, %v256, 0.0
    %478 = vadd.xlane.f32.xlu0 %v477
    %v479 = vpop.xlane.xlu0 %478
    %v480 = vsel %vm434, %v257, 0.0
    %481 = vadd.xlane.f32.xlu0 %v480
    %v482 = vpop.xlane.xlu0 %481
    %v483 = vsel %vm434, %v258, 0.0
    %484 = vadd.xlane.f32.xlu0 %v483
    %v485 = vpop.xlane.xlu0 %484
    %v486 = vsel %vm434, %v259, 0.0
    %487 = vadd.xlane.f32.xlu0 %v486
    %v488 = vpop.xlane.xlu0 %487
    %v489 = vsel %vm434, %v260, 0.0
    %490 = vadd.xlane.f32.xlu0 %v489
    %v491 = vpop.xlane.xlu0 %490
    %v492 = vsel %vm434, %v261, 0.0
    %493 = vadd.xlane.f32.xlu0 %v492
    %v494 = vpop.xlane.xlu0 %493
    %v495 = vsel %vm434, %v262, 0.0
    %496 = vadd.xlane.f32.xlu0 %v495
    %v497 = vpop.xlane.xlu0 %496
    %v498 = vsel %vm434, %v263, 0.0
    %499 = vadd.xlane.f32.xlu0 %v498
    %v500 = vpop.xlane.xlu0 %499
    %v501 = vsel %vm434, %v264, 0.0
    %502 = vadd.xlane.f32.xlu0 %v501
    %v503 = vpop.xlane.xlu0 %502
    %v504 = vsel %vm434, %v265, 0.0
    %505 = vadd.xlane.f32.xlu0 %v504
    %v506 = vpop.xlane.xlu0 %505
    %v507 = vsel %vm434, %v266, 0.0
    %508 = vadd.xlane.f32.xlu0 %v507
    %v509 = vpop.xlane.xlu0 %508
    %v510 = vsel %vm434, %v267, 0.0
    %511 = vadd.xlane.f32.xlu0 %v510
    %v512 = vpop.xlane.xlu0 %511
    %v513 = vsel %vm434, %v268, 0.0
    %514 = vadd.xlane.f32.xlu0 %v513
    %v515 = vpop.xlane.xlu0 %514
    %v516 = vsel %vm434, %v269, 0.0
    %517 = vadd.xlane.f32.xlu0 %v516
    %v518 = vpop.xlane.xlu0 %517
    %v519 = vsel %vm434, %v270, 0.0
    %520 = vadd.xlane.f32.xlu0 %v519
    %v521 = vpop.xlane.xlu0 %520
    %v522 = vsel %vm434, %v271, 0.0
    %523 = vadd.xlane.f32.xlu0 %v522
    %v524 = vpop.xlane.xlu0 %523
    %v525 = vsel %vm434, %v272, 0.0
    %526 = vadd.xlane.f32.xlu0 %v525
    %v527 = vpop.xlane.xlu0 %526
    %v528 = vsel %vm434, %v273, 0.0
    %529 = vadd.xlane.f32.xlu0 %v528
    %v530 = vpop.xlane.xlu0 %529
    %v531 = vsel %vm434, %v274, 0.0
    %532 = vadd.xlane.f32.xlu0 %v531
    %v533 = vpop.xlane.xlu0 %532
    %v534 = vsel %vm434, %v275, 0.0
    %535 = vadd.xlane.f32.xlu0 %v534
    %v536 = vpop.xlane.xlu0 %535
    %v537 = vsel %vm434, %v276, 0.0
    %538 = vadd.xlane.f32.xlu0 %v537
    %v539 = vpop.xlane.xlu0 %538
    %v540 = vsel %vm434, %v277, 0.0
    %541 = vadd.xlane.f32.xlu0 %v540
    %v542 = vpop.xlane.xlu0 %541
    %v543 = vsel %vm434, %v278, 0.0
    %544 = vadd.xlane.f32.xlu0 %v543
    %v545 = vpop.xlane.xlu0 %544
    %v546 = vsel %vm434, %v279, 0.0
    %547 = vadd.xlane.f32.xlu0 %v546
    %v548 = vpop.xlane.xlu0 %547
    %v549 = vsel %vm434, %v280, 0.0
    %550 = vadd.xlane.f32.xlu0 %v549
    %v551 = vpop.xlane.xlu0 %550
    %v552 = vsel %vm434, %v281, 0.0
    %553 = vadd.xlane.f32.xlu0 %v552
    %v554 = vpop.xlane.xlu0 %553
    %v555 = vsel %vm434, %v282, 0.0
    %556 = vadd.xlane.f32.xlu0 %v555
    %v557 = vpop.xlane.xlu0 %556
    %v558 = vsel %vm434, %v283, 0.0
    %559 = vadd.xlane.f32.xlu0 %v558
    %v560 = vpop.xlane.xlu0 %559
    %v561 = vsel %vm434, %v284, 0.0
    %562 = vadd.xlane.f32.xlu0 %v561
    %v563 = vpop.xlane.xlu0 %562
    %v564 = vsel %vm434, %v285, 0.0
    %565 = vadd.xlane.f32.xlu0 %v564
    %v566 = vpop.xlane.xlu0 %565
    %v567 = vsel %vm434, %v286, 0.0
    %568 = vadd.xlane.f32.xlu0 %v567
    %v569 = vpop.xlane.xlu0 %568
    %v570 = vsel %vm434, %v287, 0.0
    %571 = vadd.xlane.f32.xlu0 %v570
    %v572 = vpop.xlane.xlu0 %571
    %v573 = vsel %vm434, %v288, 0.0
    %574 = vadd.xlane.f32.xlu0 %v573
    %v575 = vpop.xlane.xlu0 %574
    %v576 = vsel %vm434, %v289, 0.0
    %577 = vadd.xlane.f32.xlu0 %v576
    %v578 = vpop.xlane.xlu0 %577
    %v579 = vsel %vm434, %v290, 0.0
    %580 = vadd.xlane.f32.xlu0 %v579
    %v581 = vpop.xlane.xlu0 %580
    %v582 = vsel %vm434, %v291, 0.0
    %583 = vadd.xlane.f32.xlu0 %v582
    %v584 = vpop.xlane.xlu0 %583
    %v585 = vsel %vm434, %v292, 0.0
    %586 = vadd.xlane.f32.xlu0 %v585
    %v587 = vpop.xlane.xlu0 %586
    %v588 = vsel %vm434, %v293, 0.0
    %589 = vadd.xlane.f32.xlu0 %v588
    %v590 = vpop.xlane.xlu0 %589
    %v591 = vsel %vm434, %v294, 0.0
    %592 = vadd.xlane.f32.xlu0 %v591
    %v593 = vpop.xlane.xlu0 %592
    %v594 = vsel %vm434, %v295, 0.0
    %595 = vadd.xlane.f32.xlu0 %v594
    %v596 = vpop.xlane.xlu0 %595
    %v597 = vsel %vm434, %v296, 0.0
    %598 = vadd.xlane.f32.xlu0 %v597
    %v599 = vpop.xlane.xlu0 %598
    %v600 = vsel %vm434, %v297, 0.0
    %601 = vadd.xlane.f32.xlu0 %v600
    %v602 = vpop.xlane.xlu0 %601
    %v603 = vsel %vm434, %v298, 0.0
    %604 = vadd.xlane.f32.xlu0 %v603
    %v605 = vpop.xlane.xlu0 %604
    %v606 = vsel %vm434, %v299, 0.0
    %607 = vadd.xlane.f32.xlu0 %v606
    %v608 = vpop.xlane.xlu0 %607
    %v609 = vsel %vm434, %v300, 0.0
    %610 = vadd.xlane.f32.xlu0 %v609
    %v611 = vpop.xlane.xlu0 %610
    %v612 = vsel %vm434, %v301, 0.0
    %613 = vadd.xlane.f32.xlu0 %v612
    %v614 = vpop.xlane.xlu0 %613
    %v615 = vsel %vm434, %v302, 0.0
    %616 = vadd.xlane.f32.xlu0 %v615
    %v617 = vpop.xlane.xlu0 %616
    %v618 = vsel %vm434, %v303, 0.0
    %619 = vadd.xlane.f32.xlu0 %v618
    %v620 = vpop.xlane.xlu0 %619
    %v621 = vsel %vm434, %v304, 0.0
    %622 = vadd.xlane.f32.xlu0 %v621
    %v623 = vpop.xlane.xlu0 %622
    %v624 = vsel %vm434, %v305, 0.0
    %625 = vadd.xlane.f32.xlu0 %v624
    %v626 = vpop.xlane.xlu0 %625
    %v627 = vsel %vm434, %v306, 0.0
    %628 = vadd.xlane.f32.xlu0 %v627
    %v629 = vpop.xlane.xlu0 %628
    %v630 = vsel %vm434, %v307, 0.0
    %631 = vadd.xlane.f32.xlu0 %v630
    %v632 = vpop.xlane.xlu0 %631
    %v633 = vsel %vm434, %v308, 0.0
    %634 = vadd.xlane.f32.xlu0 %v633
    %v635 = vpop.xlane.xlu0 %634
    %v636 = vsel %vm434, %v309, 0.0
    %637 = vadd.xlane.f32.xlu0 %v636
    %v638 = vpop.xlane.xlu0 %637
    %v639 = vsel %vm434, %v310, 0.0
    %640 = vadd.xlane.f32.xlu0 %v639
    %v641 = vpop.xlane.xlu0 %640
    %v642 = vsel %vm434, %v311, 0.0
    %643 = vadd.xlane.f32.xlu0 %v642
    %v644 = vpop.xlane.xlu0 %643
    %v645 = vsel %vm434, %v312, 0.0
    %646 = vadd.xlane.f32.xlu0 %v645
    %v647 = vpop.xlane.xlu0 %646
    %v648 = vsel %vm434, %v313, 0.0
    %649 = vadd.xlane.f32.xlu0 %v648
    %v650 = vpop.xlane.xlu0 %649
    %v651 = vsel %vm434, %v314, 0.0
    %652 = vadd.xlane.f32.xlu0 %v651
    %v653 = vpop.xlane.xlu0 %652
    %v654 = vsel %vm434, %v315, 0.0
    %655 = vadd.xlane.f32.xlu0 %v654
    %v656 = vpop.xlane.xlu0 %655
    %v657 = vsel %vm434, %v316, 0.0
    %658 = vadd.xlane.f32.xlu0 %v657
    %v659 = vpop.xlane.xlu0 %658
    %v660 = vsel %vm434, %v317, 0.0
    %661 = vadd.xlane.f32.xlu0 %v660
    %v662 = vpop.xlane.xlu0 %661
    %v663 = vsel %vm434, %v318, 0.0
    %664 = vadd.xlane.f32.xlu0 %v663
    %v665 = vpop.xlane.xlu0 %664
    %v666 = vsel %vm434, %v319, 0.0
    %667 = vadd.xlane.f32.xlu0 %v666
    %v668 = vpop.xlane.xlu0 %667
    %v669 = vsel %vm434, %v320, 0.0
    %670 = vadd.xlane.f32.xlu0 %v669
    %v671 = vpop.xlane.xlu0 %670
    %v672 = vsel %vm434, %v321, 0.0
    %673 = vadd.xlane.f32.xlu0 %v672
    %v674 = vpop.xlane.xlu0 %673
    %v675 = vsel %vm434, %v322, 0.0
    %676 = vadd.xlane.f32.xlu0 %v675
    %v677 = vpop.xlane.xlu0 %676
    %v678 = vsel %vm434, %v323, 0.0
    %679 = vadd.xlane.f32.xlu0 %v678
    %v680 = vpop.xlane.xlu0 %679
    %v681 = vsel %vm434, %v324, 0.0
    %682 = vadd.xlane.f32.xlu0 %v681
    %v683 = vpop.xlane.xlu0 %682
    %v684 = vsel %vm434, %v325, 0.0
    %685 = vadd.xlane.f32.xlu0 %v684
    %v686 = vpop.xlane.xlu0 %685
    %v687 = vsel %vm434, %v326, 0.0
    %688 = vadd.xlane.f32.xlu0 %v687
    %v689 = vpop.xlane.xlu0 %688
    %v690 = vsel %vm434, %v327, 0.0
    %691 = vadd.xlane.f32.xlu0 %v690
    %v692 = vpop.xlane.xlu0 %691
    %v693 = vsel %vm434, %v328, 0.0
    %694 = vadd.xlane.f32.xlu0 %v693
    %v695 = vpop.xlane.xlu0 %694
    %v696 = vsel %vm434, %v329, 0.0
    %697 = vadd.xlane.f32.xlu0 %v696
    %v698 = vpop.xlane.xlu0 %697
    %v699 = vsel %vm434, %v330, 0.0
    %700 = vadd.xlane.f32.xlu0 %v699
    %v701 = vpop.xlane.xlu0 %700
    %v702 = vsel %vm434, %v331, 0.0
    %703 = vadd.xlane.f32.xlu0 %v702
    %v704 = vpop.xlane.xlu0 %703
    %v705 = vsel %vm434, %v332, 0.0
    %706 = vadd.xlane.f32.xlu0 %v705
    %v707 = vpop.xlane.xlu0 %706
    %v708 = vsel %vm434, %v333, 0.0
    %709 = vadd.xlane.f32.xlu0 %v708
    %v710 = vpop.xlane.xlu0 %709
    %v711 = vsel %vm434, %v334, 0.0
    %712 = vadd.xlane.f32.xlu0 %v711
    %v713 = vpop.xlane.xlu0 %712
    %v714 = vsel %vm434, %v335, 0.0
    %715 = vadd.xlane.f32.xlu0 %v714
    %v716 = vpop.xlane.xlu0 %715
    %v717 = vsel %vm434, %v336, 0.0
    %718 = vadd.xlane.f32.xlu0 %v717
    %v719 = vpop.xlane.xlu0 %718
    %v720 = vsel %vm434, %v337, 0.0
    %721 = vadd.xlane.f32.xlu0 %v720
    %v722 = vpop.xlane.xlu0 %721
    %v723 = vsel %vm434, %v338, 0.0
    %724 = vadd.xlane.f32.xlu0 %v723
    %v725 = vpop.xlane.xlu0 %724
    %v726 = vsel %vm434, %v339, 0.0
    %727 = vadd.xlane.f32.xlu0 %v726
    %v728 = vpop.xlane.xlu0 %727
    %v729 = vsel %vm434, %v340, 0.0
    %730 = vadd.xlane.f32.xlu0 %v729
    %v731 = vpop.xlane.xlu0 %730
    %v732 = vsel %vm434, %v341, 0.0
    %733 = vadd.xlane.f32.xlu0 %v732
    %v734 = vpop.xlane.xlu0 %733
    %v735 = vsel %vm434, %v342, 0.0
    %736 = vadd.xlane.f32.xlu0 %v735
    %v737 = vpop.xlane.xlu0 %736
    %v738 = vsel %vm434, %v343, 0.0
    %739 = vadd.xlane.f32.xlu0 %v738
    %v740 = vpop.xlane.xlu0 %739
    %v741 = vsel %vm434, %v344, 0.0
    %742 = vadd.xlane.f32.xlu0 %v741
    %v743 = vpop.xlane.xlu0 %742
    %v744 = vsel %vm434, %v345, 0.0
    %745 = vadd.xlane.f32.xlu0 %v744
    %v746 = vpop.xlane.xlu0 %745
    %v747 = vsel %vm434, %v346, 0.0
    %748 = vadd.xlane.f32.xlu0 %v747
    %v749 = vpop.xlane.xlu0 %748
    %v750 = vsel %vm434, %v347, 0.0
    %751 = vadd.xlane.f32.xlu0 %v750
    %v752 = vpop.xlane.xlu0 %751
    %v753 = vsel %vm434, %v348, 0.0
    %754 = vadd.xlane.f32.xlu0 %v753
    %v755 = vpop.xlane.xlu0 %754
    %v756 = vsel %vm434, %v349, 0.0
    %757 = vadd.xlane.f32.xlu0 %v756
    %v758 = vpop.xlane.xlu0 %757
    %v759 = vsel %vm434, %v350, 0.0
    %760 = vadd.xlane.f32.xlu0 %v759
    %v761 = vpop.xlane.xlu0 %760
    %v762 = vsel %vm434, %v351, 0.0
    %763 = vadd.xlane.f32.xlu0 %v762
    %v764 = vpop.xlane.xlu0 %763
    %v765 = vsel %vm434, %v352, 0.0
    %766 = vadd.xlane.f32.xlu0 %v765
    %v767 = vpop.xlane.xlu0 %766
    %v768 = vsel %vm434, %v353, 0.0
    %769 = vadd.xlane.f32.xlu0 %v768
    %v770 = vpop.xlane.xlu0 %769
    %v771 = vsel %vm434, %v354, 0.0
    %772 = vadd.xlane.f32.xlu0 %v771
    %v773 = vpop.xlane.xlu0 %772
    %v774 = vsel %vm434, %v355, 0.0
    %775 = vadd.xlane.f32.xlu0 %v774
    %v776 = vpop.xlane.xlu0 %775
    %v777 = vsel %vm434, %v356, 0.0
    %778 = vadd.xlane.f32.xlu0 %v777
    %v779 = vpop.xlane.xlu0 %778
    %v780 = vsel %vm434, %v357, 0.0
    %781 = vadd.xlane.f32.xlu0 %v780
    %v782 = vpop.xlane.xlu0 %781
    %v783 = vsel %vm434, %v358, 0.0
    %784 = vadd.xlane.f32.xlu0 %v783
    %v785 = vpop.xlane.xlu0 %784
    %v786 = vsel %vm434, %v359, 0.0
    %787 = vadd.xlane.f32.xlu0 %v786
    %v788 = vpop.xlane.xlu0 %787
    %v789 = vsel %vm434, %v360, 0.0
    %790 = vadd.xlane.f32.xlu0 %v789
    %v791 = vpop.xlane.xlu0 %790
    %v792 = vsel %vm434, %v361, 0.0
    %793 = vadd.xlane.f32.xlu0 %v792
    %v794 = vpop.xlane.xlu0 %793
    %v795 = vsel %vm434, %v362, 0.0
    %796 = vadd.xlane.f32.xlu0 %v795
    %v797 = vpop.xlane.xlu0 %796
    %v798 = vsel %vm434, %v363, 0.0
    %799 = vadd.xlane.f32.xlu0 %v798
    %v800 = vpop.xlane.xlu0 %799
    %v801 = vsel %vm434, %v364, 0.0
    %802 = vadd.xlane.f32.xlu0 %v801
    %v803 = vpop.xlane.xlu0 %802
    %v804 = vsel %vm434, %v365, 0.0
    %805 = vadd.xlane.f32.xlu0 %v804
    %v806 = vpop.xlane.xlu0 %805
    %v807 = vsel %vm434, %v366, 0.0
    %808 = vadd.xlane.f32.xlu0 %v807
    %v809 = vpop.xlane.xlu0 %808
    %v810 = vsel %vm434, %v367, 0.0
    %811 = vadd.xlane.f32.xlu0 %v810
    %v812 = vpop.xlane.xlu0 %811
    %v813 = vsel %vm434, %v368, 0.0
    %814 = vadd.xlane.f32.xlu0 %v813
    %v815 = vpop.xlane.xlu0 %814
    %v816 = vsel %vm434, %v369, 0.0
    %817 = vadd.xlane.f32.xlu0 %v816
    %v818 = vpop.xlane.xlu0 %817
    %v819 = vsel %vm434, %v370, 0.0
    %820 = vadd.xlane.f32.xlu0 %v819
    %v821 = vpop.xlane.xlu0 %820
    %v822 = vsel %vm434, %v371, 0.0
    %823 = vadd.xlane.f32.xlu0 %v822
    %v824 = vpop.xlane.xlu0 %823
    %v825 = vsel %vm434, %v372, 0.0
    %826 = vadd.xlane.f32.xlu0 %v825
    %v827 = vpop.xlane.xlu0 %826
    %v828 = vsel %vm434, %v373, 0.0
    %829 = vadd.xlane.f32.xlu0 %v828
    %v830 = vpop.xlane.xlu0 %829
    %v831 = vsel %vm434, %v374, 0.0
    %832 = vadd.xlane.f32.xlu0 %v831
    %v833 = vpop.xlane.xlu0 %832
    %v834 = vsel %vm434, %v375, 0.0
    %835 = vadd.xlane.f32.xlu0 %v834
    %v836 = vpop.xlane.xlu0 %835
    %v837 = vsel %vm434, %v376, 0.0
    %838 = vadd.xlane.f32.xlu0 %v837
    %v839 = vpop.xlane.xlu0 %838
    %v840 = vsel %vm434, %v377, 0.0
    %841 = vadd.xlane.f32.xlu0 %v840
    %v842 = vpop.xlane.xlu0 %841
    %v843 = vsel %vm434, %v378, 0.0
    %844 = vadd.xlane.f32.xlu0 %v843
    %v845 = vpop.xlane.xlu0 %844
    %v846 = vsel %vm434, %v379, 0.0
    %847 = vadd.xlane.f32.xlu0 %v846
    %v848 = vpop.xlane.xlu0 %847
    %v849 = vsel %vm434, %v380, 0.0
    %850 = vadd.xlane.f32.xlu0 %v849
    %v851 = vpop.xlane.xlu0 %850
    %v852 = vsel %vm434, %v381, 0.0
    %853 = vadd.xlane.f32.xlu0 %v852
    %v854 = vpop.xlane.xlu0 %853
    %v855 = vsel %vm434, %v382, 0.0
    %856 = vadd.xlane.f32.xlu0 %v855
    %v857 = vpop.xlane.xlu0 %856
    %v858 = vsel %vm434, %v383, 0.0
    %859 = vadd.xlane.f32.xlu0 %v858
    %v860 = vpop.xlane.xlu0 %859
    %v861 = vsel %vm434, %v384, 0.0
    %862 = vadd.xlane.f32.xlu0 %v861
    %v863 = vpop.xlane.xlu0 %862
    %v864 = vsel %vm434, %v385, 0.0
    %865 = vadd.xlane.f32.xlu0 %v864
    %v866 = vpop.xlane.xlu0 %865
    %v867 = vsel %vm434, %v386, 0.0
    %868 = vadd.xlane.f32.xlu0 %v867
    %v869 = vpop.xlane.xlu0 %868
    %v870 = vsel %vm434, %v387, 0.0
    %871 = vadd.xlane.f32.xlu0 %v870
    %v872 = vpop.xlane.xlu0 %871
    %v873 = vsel %vm434, %v388, 0.0
    %874 = vadd.xlane.f32.xlu0 %v873
    %v875 = vpop.xlane.xlu0 %874
    %v876 = vsel %vm434, %v389, 0.0
    %877 = vadd.xlane.f32.xlu0 %v876
    %v878 = vpop.xlane.xlu0 %877
    %v879 = vsel %vm434, %v390, 0.0
    %880 = vadd.xlane.f32.xlu0 %v879
    %v881 = vpop.xlane.xlu0 %880
    %v882 = vsel %vm434, %v391, 0.0
    %883 = vadd.xlane.f32.xlu0 %v882
    %v884 = vpop.xlane.xlu0 %883
    %v885 = vsel %vm434, %v392, 0.0
    %886 = vadd.xlane.f32.xlu0 %v885
    %v887 = vpop.xlane.xlu0 %886
    %v888 = vsel %vm434, %v393, 0.0
    %889 = vadd.xlane.f32.xlu0 %v888
    %v890 = vpop.xlane.xlu0 %889
    %v891 = vsel %vm434, %v394, 0.0
    %892 = vadd.xlane.f32.xlu0 %v891
    %v893 = vpop.xlane.xlu0 %892
    %v894 = vsel %vm434, %v395, 0.0
    %895 = vadd.xlane.f32.xlu0 %v894
    %v896 = vpop.xlane.xlu0 %895
    %v897 = vsel %vm434, %v396, 0.0
    %898 = vadd.xlane.f32.xlu0 %v897
    %v899 = vpop.xlane.xlu0 %898
    %v900 = vsel %vm434, %v397, 0.0
    %901 = vadd.xlane.f32.xlu0 %v900
    %v902 = vpop.xlane.xlu0 %901
    %v903 = vsel %vm434, %v398, 0.0
    %904 = vadd.xlane.f32.xlu0 %v903
    %v905 = vpop.xlane.xlu0 %904
    %v906 = vsel %vm434, %v399, 0.0
    %907 = vadd.xlane.f32.xlu0 %v906
    %v908 = vpop.xlane.xlu0 %907
    %v909 = vsel %vm434, %v400, 0.0
    %910 = vadd.xlane.f32.xlu0 %v909
    %v911 = vpop.xlane.xlu0 %910
    %v912 = vsel %vm434, %v401, 0.0
    %913 = vadd.xlane.f32.xlu0 %v912
    %v914 = vpop.xlane.xlu0 %913
    %v915 = vsel %vm434, %v402, 0.0
    %916 = vadd.xlane.f32.xlu0 %v915
    %v917 = vpop.xlane.xlu0 %916
    %v918 = vsel %vm434, %v403, 0.0
    %919 = vadd.xlane.f32.xlu0 %v918
    %v920 = vpop.xlane.xlu0 %919
    %v921 = vsel %vm434, %v404, 0.0
    %922 = vadd.xlane.f32.xlu0 %v921
    %v923 = vpop.xlane.xlu0 %922
    %v924 = vsel %vm434, %v405, 0.0
    %925 = vadd.xlane.f32.xlu0 %v924
    %v926 = vpop.xlane.xlu0 %925
    %v927 = vsel %vm434, %v406, 0.0
    %928 = vadd.xlane.f32.xlu0 %v927
    %v929 = vpop.xlane.xlu0 %928
    %v930 = vsel %vm434, %v407, 0.0
    %931 = vadd.xlane.f32.xlu0 %v930
    %v932 = vpop.xlane.xlu0 %931
    %v933 = vsel %vm434, %v408, 0.0
    %934 = vadd.xlane.f32.xlu0 %v933
    %v935 = vpop.xlane.xlu0 %934
    %v936 = vsel %vm434, %v409, 0.0
    %937 = vadd.xlane.f32.xlu0 %v936
    %v938 = vpop.xlane.xlu0 %937
    %v939 = vsel %vm434, %v410, 0.0
    %940 = vadd.xlane.f32.xlu0 %v939
    %v941 = vpop.xlane.xlu0 %940
    %v942 = vsel %vm434, %v411, 0.0
    %943 = vadd.xlane.f32.xlu0 %v942
    %v944 = vpop.xlane.xlu0 %943
    %v945 = vsel %vm434, %v412, 0.0
    %946 = vadd.xlane.f32.xlu0 %v945
    %v947 = vpop.xlane.xlu0 %946
    %v948 = vsel %vm434, %v413, 0.0
    %949 = vadd.xlane.f32.xlu0 %v948
    %v950 = vpop.xlane.xlu0 %949
    %v951 = vsel %vm434, %v414, 0.0
    %952 = vadd.xlane.f32.xlu0 %v951
    %v953 = vpop.xlane.xlu0 %952
    %v954 = vsel %vm434, %v415, 0.0
    %955 = vadd.xlane.f32.xlu0 %v954
    %v956 = vpop.xlane.xlu0 %955
    %v957 = vsel %vm434, %v416, 0.0
    %958 = vadd.xlane.f32.xlu0 %v957
    %v959 = vpop.xlane.xlu0 %958
    %v960 = vsel %vm434, %v417, 0.0
    %961 = vadd.xlane.f32.xlu0 %v960
    %v962 = vpop.xlane.xlu0 %961
    %v963 = vsel %vm434, %v418, 0.0
    %964 = vadd.xlane.f32.xlu0 %v963
    %v965 = vpop.xlane.xlu0 %964
    %v966 = vsel %vm434, %v419, 0.0
    %967 = vadd.xlane.f32.xlu0 %v966
    %v968 = vpop.xlane.xlu0 %967
    %v969 = vsel %vm434, %v420, 0.0
    %970 = vadd.xlane.f32.xlu0 %v969
    %v971 = vpop.xlane.xlu0 %970
    %v972 = vsel %vm434, %v421, 0.0
    %973 = vadd.xlane.f32.xlu0 %v972
    %v974 = vpop.xlane.xlu0 %973
    %v975 = vsel %vm434, %v422, 0.0
    %976 = vadd.xlane.f32.xlu0 %v975
    %v977 = vpop.xlane.xlu0 %976
    %v978 = vsel %vm434, %v423, 0.0
    %979 = vadd.xlane.f32.xlu0 %v978
    %v980 = vpop.xlane.xlu0 %979
    %v981 = vsel %vm434, %v424, 0.0
    %982 = vadd.xlane.f32.xlu0 %v981
    %v983 = vpop.xlane.xlu0 %982
    %v984 = vsel %vm434, %v425, 0.0
    %985 = vadd.xlane.f32.xlu0 %v984
    %v986 = vpop.xlane.xlu0 %985
    %v987 = vsel %vm434, %v426, 0.0
    %988 = vadd.xlane.f32.xlu0 %v987
    %v989 = vpop.xlane.xlu0 %988
    %v990 = vsel %vm434, %v427, 0.0
    %991 = vadd.xlane.f32.xlu0 %v990
    %v992 = vpop.xlane.xlu0 %991
    %v993 = vsel %vm434, %v428, 0.0
    %994 = vadd.xlane.f32.xlu0 %v993
    %v995 = vpop.xlane.xlu0 %994
    %v996 = vsel %vm434, %v429, 0.0
    %997 = vadd.xlane.f32.xlu0 %v996
    %v998 = vpop.xlane.xlu0 %997
    %v999 = vsel %vm434, %v430, 0.0
    %1000 = vadd.xlane.f32.xlu0 %v999
    %v1001 = vpop.xlane.xlu0 %1000
    %v1002 = vsel %vm434, %v431, 0.0
    %1003 = vadd.xlane.f32.xlu0 %v1002
    %v1004 = vpop.xlane.xlu0 %1003
    %v1005 = vsel %vm434, %v432, 0.0
    %1006 = vadd.xlane.f32.xlu0 %v1005
    %v1007 = vpop.xlane.xlu0 %1006
    %v1008 = vsel %vm434, %v433, 0.0
    %1009 = vadd.xlane.f32.xlu0 %v1008
    %v1010 = vpop.xlane.xlu0 %1009
    %1203 = vrot.lane.b32.xlu0 %v242, 64
    %v1204 = vpop.permute.xlu0 %1203
    %1205 = vrot.lane.b32.xlu0 %v243, 64
    %v1206 = vpop.permute.xlu0 %1205
    %1207 = vrot.lane.b32.xlu0 %v244, 64
    %v1208 = vpop.permute.xlu0 %1207
    %1209 = vrot.lane.b32.xlu0 %v245, 64
    %v1210 = vpop.permute.xlu0 %1209
    %1211 = vrot.lane.b32.xlu0 %v246, 64
    %v1212 = vpop.permute.xlu0 %1211
    %1213 = vrot.lane.b32.xlu0 %v247, 64
    %v1214 = vpop.permute.xlu0 %1213
    %1215 = vrot.lane.b32.xlu0 %v248, 64
    %v1216 = vpop.permute.xlu0 %1215
    %1217 = vrot.lane.b32.xlu0 %v249, 64
    %v1218 = vpop.permute.xlu0 %1217
    %1219 = vrot.lane.b32.xlu0 %v250, 64
    %v1220 = vpop.permute.xlu0 %1219
    %1221 = vrot.lane.b32.xlu0 %v251, 64
    %v1222 = vpop.permute.xlu0 %1221
    %1223 = vrot.lane.b32.xlu0 %v252, 64
    %v1224 = vpop.permute.xlu0 %1223
    %1225 = vrot.lane.b32.xlu0 %v253, 64
    %v1226 = vpop.permute.xlu0 %1225
    %1227 = vrot.lane.b32.xlu0 %v254, 64
    %v1228 = vpop.permute.xlu0 %1227
    %1229 = vrot.lane.b32.xlu0 %v255, 64
    %v1230 = vpop.permute.xlu0 %1229
    %1231 = vrot.lane.b32.xlu0 %v256, 64
    %v1232 = vpop.permute.xlu0 %1231
    %1233 = vrot.lane.b32.xlu0 %v257, 64
    %v1234 = vpop.permute.xlu0 %1233
    %1235 = vrot.lane.b32.xlu0 %v258, 64
    %v1236 = vpop.permute.xlu0 %1235
    %1237 = vrot.lane.b32.xlu0 %v259, 64
    %v1238 = vpop.permute.xlu0 %1237
    %1239 = vrot.lane.b32.xlu0 %v260, 64
    %v1240 = vpop.permute.xlu0 %1239
    %1241 = vrot.lane.b32.xlu0 %v261, 64
    %v1242 = vpop.permute.xlu0 %1241
    %1243 = vrot.lane.b32.xlu0 %v262, 64
    %v1244 = vpop.permute.xlu0 %1243
    %1245 = vrot.lane.b32.xlu0 %v263, 64
    %v1246 = vpop.permute.xlu0 %1245
    %1247 = vrot.lane.b32.xlu0 %v264, 64
    %v1248 = vpop.permute.xlu0 %1247
    %1249 = vrot.lane.b32.xlu0 %v265, 64
    %v1250 = vpop.permute.xlu0 %1249
    %1251 = vrot.lane.b32.xlu0 %v266, 64
    %v1252 = vpop.permute.xlu0 %1251
    %1253 = vrot.lane.b32.xlu0 %v267, 64
    %v1254 = vpop.permute.xlu0 %1253
    %1255 = vrot.lane.b32.xlu0 %v268, 64
    %v1256 = vpop.permute.xlu0 %1255
    %1257 = vrot.lane.b32.xlu0 %v269, 64
    %v1258 = vpop.permute.xlu0 %1257
    %1259 = vrot.lane.b32.xlu0 %v270, 64
    %v1260 = vpop.permute.xlu0 %1259
    %1261 = vrot.lane.b32.xlu0 %v271, 64
    %v1262 = vpop.permute.xlu0 %1261
    %1263 = vrot.lane.b32.xlu0 %v272, 64
    %v1264 = vpop.permute.xlu0 %1263
    %1265 = vrot.lane.b32.xlu0 %v273, 64
    %v1266 = vpop.permute.xlu0 %1265
    %1267 = vrot.lane.b32.xlu0 %v274, 64
    %v1268 = vpop.permute.xlu0 %1267
    %1269 = vrot.lane.b32.xlu0 %v275, 64
    %v1270 = vpop.permute.xlu0 %1269
    %1271 = vrot.lane.b32.xlu0 %v276, 64
    %v1272 = vpop.permute.xlu0 %1271
    %1273 = vrot.lane.b32.xlu0 %v277, 64
    %v1274 = vpop.permute.xlu0 %1273
    %1275 = vrot.lane.b32.xlu0 %v278, 64
    %v1276 = vpop.permute.xlu0 %1275
    %1277 = vrot.lane.b32.xlu0 %v279, 64
    %v1278 = vpop.permute.xlu0 %1277
    %1279 = vrot.lane.b32.xlu0 %v280, 64
    %v1280 = vpop.permute.xlu0 %1279
    %1281 = vrot.lane.b32.xlu0 %v281, 64
    %v1282 = vpop.permute.xlu0 %1281
    %1283 = vrot.lane.b32.xlu0 %v282, 64
    %v1284 = vpop.permute.xlu0 %1283
    %1285 = vrot.lane.b32.xlu0 %v283, 64
    %v1286 = vpop.permute.xlu0 %1285
    %1287 = vrot.lane.b32.xlu0 %v284, 64
    %v1288 = vpop.permute.xlu0 %1287
    %1289 = vrot.lane.b32.xlu0 %v285, 64
    %v1290 = vpop.permute.xlu0 %1289
    %1291 = vrot.lane.b32.xlu0 %v286, 64
    %v1292 = vpop.permute.xlu0 %1291
    %1293 = vrot.lane.b32.xlu0 %v287, 64
    %v1294 = vpop.permute.xlu0 %1293
    %1295 = vrot.lane.b32.xlu0 %v288, 64
    %v1296 = vpop.permute.xlu0 %1295
    %1297 = vrot.lane.b32.xlu0 %v289, 64
    %v1298 = vpop.permute.xlu0 %1297
    %1299 = vrot.lane.b32.xlu0 %v290, 64
    %v1300 = vpop.permute.xlu0 %1299
    %1301 = vrot.lane.b32.xlu0 %v291, 64
    %v1302 = vpop.permute.xlu0 %1301
    %1303 = vrot.lane.b32.xlu0 %v292, 64
    %v1304 = vpop.permute.xlu0 %1303
    %1305 = vrot.lane.b32.xlu0 %v293, 64
    %v1306 = vpop.permute.xlu0 %1305
    %1307 = vrot.lane.b32.xlu0 %v294, 64
    %v1308 = vpop.permute.xlu0 %1307
    %1309 = vrot.lane.b32.xlu0 %v295, 64
    %v1310 = vpop.permute.xlu0 %1309
    %1311 = vrot.lane.b32.xlu0 %v296, 64
    %v1312 = vpop.permute.xlu0 %1311
    %1313 = vrot.lane.b32.xlu0 %v297, 64
    %v1314 = vpop.permute.xlu0 %1313
    %1315 = vrot.lane.b32.xlu0 %v298, 64
    %v1316 = vpop.permute.xlu0 %1315
    %1317 = vrot.lane.b32.xlu0 %v299, 64
    %v1318 = vpop.permute.xlu0 %1317
    %1319 = vrot.lane.b32.xlu0 %v300, 64
    %v1320 = vpop.permute.xlu0 %1319
    %1321 = vrot.lane.b32.xlu0 %v301, 64
    %v1322 = vpop.permute.xlu0 %1321
    %1323 = vrot.lane.b32.xlu0 %v302, 64
    %v1324 = vpop.permute.xlu0 %1323
    %1325 = vrot.lane.b32.xlu0 %v303, 64
    %v1326 = vpop.permute.xlu0 %1325
    %1327 = vrot.lane.b32.xlu0 %v304, 64
    %v1328 = vpop.permute.xlu0 %1327
    %1329 = vrot.lane.b32.xlu0 %v305, 64
    %v1330 = vpop.permute.xlu0 %1329
    %1331 = vrot.lane.b32.xlu0 %v306, 64
    %v1332 = vpop.permute.xlu0 %1331
    %1333 = vrot.lane.b32.xlu0 %v307, 64
    %v1334 = vpop.permute.xlu0 %1333
    %1335 = vrot.lane.b32.xlu0 %v308, 64
    %v1336 = vpop.permute.xlu0 %1335
    %1337 = vrot.lane.b32.xlu0 %v309, 64
    %v1338 = vpop.permute.xlu0 %1337
    %1339 = vrot.lane.b32.xlu0 %v310, 64
    %v1340 = vpop.permute.xlu0 %1339
    %1341 = vrot.lane.b32.xlu0 %v311, 64
    %v1342 = vpop.permute.xlu0 %1341
    %1343 = vrot.lane.b32.xlu0 %v312, 64
    %v1344 = vpop.permute.xlu0 %1343
    %1345 = vrot.lane.b32.xlu0 %v313, 64
    %v1346 = vpop.permute.xlu0 %1345
    %1347 = vrot.lane.b32.xlu0 %v314, 64
    %v1348 = vpop.permute.xlu0 %1347
    %1349 = vrot.lane.b32.xlu0 %v315, 64
    %v1350 = vpop.permute.xlu0 %1349
    %1351 = vrot.lane.b32.xlu0 %v316, 64
    %v1352 = vpop.permute.xlu0 %1351
    %1353 = vrot.lane.b32.xlu0 %v317, 64
    %v1354 = vpop.permute.xlu0 %1353
    %1355 = vrot.lane.b32.xlu0 %v318, 64
    %v1356 = vpop.permute.xlu0 %1355
    %1357 = vrot.lane.b32.xlu0 %v319, 64
    %v1358 = vpop.permute.xlu0 %1357
    %1359 = vrot.lane.b32.xlu0 %v320, 64
    %v1360 = vpop.permute.xlu0 %1359
    %1361 = vrot.lane.b32.xlu0 %v321, 64
    %v1362 = vpop.permute.xlu0 %1361
    %1363 = vrot.lane.b32.xlu0 %v322, 64
    %v1364 = vpop.permute.xlu0 %1363
    %1365 = vrot.lane.b32.xlu0 %v323, 64
    %v1366 = vpop.permute.xlu0 %1365
    %1367 = vrot.lane.b32.xlu0 %v324, 64
    %v1368 = vpop.permute.xlu0 %1367
    %1369 = vrot.lane.b32.xlu0 %v325, 64
    %v1370 = vpop.permute.xlu0 %1369
    %1371 = vrot.lane.b32.xlu0 %v326, 64
    %v1372 = vpop.permute.xlu0 %1371
    %1373 = vrot.lane.b32.xlu0 %v327, 64
    %v1374 = vpop.permute.xlu0 %1373
    %1375 = vrot.lane.b32.xlu0 %v328, 64
    %v1376 = vpop.permute.xlu0 %1375
    %1377 = vrot.lane.b32.xlu0 %v329, 64
    %v1378 = vpop.permute.xlu0 %1377
    %1379 = vrot.lane.b32.xlu0 %v330, 64
    %v1380 = vpop.permute.xlu0 %1379
    %1381 = vrot.lane.b32.xlu0 %v331, 64
    %v1382 = vpop.permute.xlu0 %1381
    %1383 = vrot.lane.b32.xlu0 %v332, 64
    %v1384 = vpop.permute.xlu0 %1383
    %1385 = vrot.lane.b32.xlu0 %v333, 64
    %v1386 = vpop.permute.xlu0 %1385
    %1387 = vrot.lane.b32.xlu0 %v334, 64
    %v1388 = vpop.permute.xlu0 %1387
    %1389 = vrot.lane.b32.xlu0 %v335, 64
    %v1390 = vpop.permute.xlu0 %1389
    %1391 = vrot.lane.b32.xlu0 %v336, 64
    %v1392 = vpop.permute.xlu0 %1391
    %1393 = vrot.lane.b32.xlu0 %v337, 64
    %v1394 = vpop.permute.xlu0 %1393
    %1395 = vrot.lane.b32.xlu0 %v338, 64
    %v1396 = vpop.permute.xlu0 %1395
    %1397 = vrot.lane.b32.xlu0 %v339, 64
    %v1398 = vpop.permute.xlu0 %1397
    %1399 = vrot.lane.b32.xlu0 %v340, 64
    %v1400 = vpop.permute.xlu0 %1399
    %1401 = vrot.lane.b32.xlu0 %v341, 64
    %v1402 = vpop.permute.xlu0 %1401
    %1403 = vrot.lane.b32.xlu0 %v342, 64
    %v1404 = vpop.permute.xlu0 %1403
    %1405 = vrot.lane.b32.xlu0 %v343, 64
    %v1406 = vpop.permute.xlu0 %1405
    %1407 = vrot.lane.b32.xlu0 %v344, 64
    %v1408 = vpop.permute.xlu0 %1407
    %1409 = vrot.lane.b32.xlu0 %v345, 64
    %v1410 = vpop.permute.xlu0 %1409
    %1411 = vrot.lane.b32.xlu0 %v346, 64
    %v1412 = vpop.permute.xlu0 %1411
    %1413 = vrot.lane.b32.xlu0 %v347, 64
    %v1414 = vpop.permute.xlu0 %1413
    %1415 = vrot.lane.b32.xlu0 %v348, 64
    %v1416 = vpop.permute.xlu0 %1415
    %1417 = vrot.lane.b32.xlu0 %v349, 64
    %v1418 = vpop.permute.xlu0 %1417
    %1419 = vrot.lane.b32.xlu0 %v350, 64
    %v1420 = vpop.permute.xlu0 %1419
    %1421 = vrot.lane.b32.xlu0 %v351, 64
    %v1422 = vpop.permute.xlu0 %1421
    %1423 = vrot.lane.b32.xlu0 %v352, 64
    %v1424 = vpop.permute.xlu0 %1423
    %1425 = vrot.lane.b32.xlu0 %v353, 64
    %v1426 = vpop.permute.xlu0 %1425
    %1427 = vrot.lane.b32.xlu0 %v354, 64
    %v1428 = vpop.permute.xlu0 %1427
    %1429 = vrot.lane.b32.xlu0 %v355, 64
    %v1430 = vpop.permute.xlu0 %1429
    %1431 = vrot.lane.b32.xlu0 %v356, 64
    %v1432 = vpop.permute.xlu0 %1431
    %1433 = vrot.lane.b32.xlu0 %v357, 64
    %v1434 = vpop.permute.xlu0 %1433
    %1435 = vrot.lane.b32.xlu0 %v358, 64
    %v1436 = vpop.permute.xlu0 %1435
    %1437 = vrot.lane.b32.xlu0 %v359, 64
    %v1438 = vpop.permute.xlu0 %1437
    %1439 = vrot.lane.b32.xlu0 %v360, 64
    %v1440 = vpop.permute.xlu0 %1439
    %1441 = vrot.lane.b32.xlu0 %v361, 64
    %v1442 = vpop.permute.xlu0 %1441
    %1443 = vrot.lane.b32.xlu0 %v362, 64
    %v1444 = vpop.permute.xlu0 %1443
    %1445 = vrot.lane.b32.xlu0 %v363, 64
    %v1446 = vpop.permute.xlu0 %1445
    %1447 = vrot.lane.b32.xlu0 %v364, 64
    %v1448 = vpop.permute.xlu0 %1447
    %1449 = vrot.lane.b32.xlu0 %v365, 64
    %v1450 = vpop.permute.xlu0 %1449
    %1451 = vrot.lane.b32.xlu0 %v366, 64
    %v1452 = vpop.permute.xlu0 %1451
    %1453 = vrot.lane.b32.xlu0 %v367, 64
    %v1454 = vpop.permute.xlu0 %1453
    %1455 = vrot.lane.b32.xlu0 %v368, 64
    %v1456 = vpop.permute.xlu0 %1455
    %1457 = vrot.lane.b32.xlu0 %v369, 64
    %v1458 = vpop.permute.xlu0 %1457
    %1459 = vrot.lane.b32.xlu0 %v370, 64
    %v1460 = vpop.permute.xlu0 %1459
    %1461 = vrot.lane.b32.xlu0 %v371, 64
    %v1462 = vpop.permute.xlu0 %1461
    %1463 = vrot.lane.b32.xlu0 %v372, 64
    %v1464 = vpop.permute.xlu0 %1463
    %1465 = vrot.lane.b32.xlu0 %v373, 64
    %v1466 = vpop.permute.xlu0 %1465
    %1467 = vrot.lane.b32.xlu0 %v374, 64
    %v1468 = vpop.permute.xlu0 %1467
    %1469 = vrot.lane.b32.xlu0 %v375, 64
    %v1470 = vpop.permute.xlu0 %1469
    %1471 = vrot.lane.b32.xlu0 %v376, 64
    %v1472 = vpop.permute.xlu0 %1471
    %1473 = vrot.lane.b32.xlu0 %v377, 64
    %v1474 = vpop.permute.xlu0 %1473
    %1475 = vrot.lane.b32.xlu0 %v378, 64
    %v1476 = vpop.permute.xlu0 %1475
    %1477 = vrot.lane.b32.xlu0 %v379, 64
    %v1478 = vpop.permute.xlu0 %1477
    %1479 = vrot.lane.b32.xlu0 %v380, 64
    %v1480 = vpop.permute.xlu0 %1479
    %1481 = vrot.lane.b32.xlu0 %v381, 64
    %v1482 = vpop.permute.xlu0 %1481
    %1483 = vrot.lane.b32.xlu0 %v382, 64
    %v1484 = vpop.permute.xlu0 %1483
    %1485 = vrot.lane.b32.xlu0 %v383, 64
    %v1486 = vpop.permute.xlu0 %1485
    %1487 = vrot.lane.b32.xlu0 %v384, 64
    %v1488 = vpop.permute.xlu0 %1487
    %1489 = vrot.lane.b32.xlu0 %v385, 64
    %v1490 = vpop.permute.xlu0 %1489
    %1491 = vrot.lane.b32.xlu0 %v386, 64
    %v1492 = vpop.permute.xlu0 %1491
    %1493 = vrot.lane.b32.xlu0 %v387, 64
    %v1494 = vpop.permute.xlu0 %1493
    %1495 = vrot.lane.b32.xlu0 %v388, 64
    %v1496 = vpop.permute.xlu0 %1495
    %1497 = vrot.lane.b32.xlu0 %v389, 64
    %v1498 = vpop.permute.xlu0 %1497
    %1499 = vrot.lane.b32.xlu0 %v390, 64
    %v1500 = vpop.permute.xlu0 %1499
    %1501 = vrot.lane.b32.xlu0 %v391, 64
    %v1502 = vpop.permute.xlu0 %1501
    %1503 = vrot.lane.b32.xlu0 %v392, 64
    %v1504 = vpop.permute.xlu0 %1503
    %1505 = vrot.lane.b32.xlu0 %v393, 64
    %v1506 = vpop.permute.xlu0 %1505
    %1507 = vrot.lane.b32.xlu0 %v394, 64
    %v1508 = vpop.permute.xlu0 %1507
    %1509 = vrot.lane.b32.xlu0 %v395, 64
    %v1510 = vpop.permute.xlu0 %1509
    %1511 = vrot.lane.b32.xlu0 %v396, 64
    %v1512 = vpop.permute.xlu0 %1511
    %1513 = vrot.lane.b32.xlu0 %v397, 64
    %v1514 = vpop.permute.xlu0 %1513
    %1515 = vrot.lane.b32.xlu0 %v398, 64
    %v1516 = vpop.permute.xlu0 %1515
    %1517 = vrot.lane.b32.xlu0 %v399, 64
    %v1518 = vpop.permute.xlu0 %1517
    %1519 = vrot.lane.b32.xlu0 %v400, 64
    %v1520 = vpop.permute.xlu0 %1519
    %1521 = vrot.lane.b32.xlu0 %v401, 64
    %v1522 = vpop.permute.xlu0 %1521
    %1523 = vrot.lane.b32.xlu0 %v402, 64
    %v1524 = vpop.permute.xlu0 %1523
    %1525 = vrot.lane.b32.xlu0 %v403, 64
    %v1526 = vpop.permute.xlu0 %1525
    %1527 = vrot.lane.b32.xlu0 %v404, 64
    %v1528 = vpop.permute.xlu0 %1527
    %1529 = vrot.lane.b32.xlu0 %v405, 64
    %v1530 = vpop.permute.xlu0 %1529
    %1531 = vrot.lane.b32.xlu0 %v406, 64
    %v1532 = vpop.permute.xlu0 %1531
    %1533 = vrot.lane.b32.xlu0 %v407, 64
    %v1534 = vpop.permute.xlu0 %1533
    %1535 = vrot.lane.b32.xlu0 %v408, 64
    %v1536 = vpop.permute.xlu0 %1535
    %1537 = vrot.lane.b32.xlu0 %v409, 64
    %v1538 = vpop.permute.xlu0 %1537
    %1539 = vrot.lane.b32.xlu0 %v410, 64
    %v1540 = vpop.permute.xlu0 %1539
    %1541 = vrot.lane.b32.xlu0 %v411, 64
    %v1542 = vpop.permute.xlu0 %1541
    %1543 = vrot.lane.b32.xlu0 %v412, 64
    %v1544 = vpop.permute.xlu0 %1543
    %1545 = vrot.lane.b32.xlu0 %v413, 64
    %v1546 = vpop.permute.xlu0 %1545
    %1547 = vrot.lane.b32.xlu0 %v414, 64
    %v1548 = vpop.permute.xlu0 %1547
    %1549 = vrot.lane.b32.xlu0 %v415, 64
    %v1550 = vpop.permute.xlu0 %1549
    %1551 = vrot.lane.b32.xlu0 %v416, 64
    %v1552 = vpop.permute.xlu0 %1551
    %1553 = vrot.lane.b32.xlu0 %v417, 64
    %v1554 = vpop.permute.xlu0 %1553
    %1555 = vrot.lane.b32.xlu0 %v418, 64
    %v1556 = vpop.permute.xlu0 %1555
    %1557 = vrot.lane.b32.xlu0 %v419, 64
    %v1558 = vpop.permute.xlu0 %1557
    %1559 = vrot.lane.b32.xlu0 %v420, 64
    %v1560 = vpop.permute.xlu0 %1559
    %1561 = vrot.lane.b32.xlu0 %v421, 64
    %v1562 = vpop.permute.xlu0 %1561
    %1563 = vrot.lane.b32.xlu0 %v422, 64
    %v1564 = vpop.permute.xlu0 %1563
    %1565 = vrot.lane.b32.xlu0 %v423, 64
    %v1566 = vpop.permute.xlu0 %1565
    %1567 = vrot.lane.b32.xlu0 %v424, 64
    %v1568 = vpop.permute.xlu0 %1567
    %1569 = vrot.lane.b32.xlu0 %v425, 64
    %v1570 = vpop.permute.xlu0 %1569
    %1571 = vrot.lane.b32.xlu0 %v426, 64
    %v1572 = vpop.permute.xlu0 %1571
    %1573 = vrot.lane.b32.xlu0 %v427, 64
    %v1574 = vpop.permute.xlu0 %1573
    %1575 = vrot.lane.b32.xlu0 %v428, 64
    %v1576 = vpop.permute.xlu0 %1575
    %1577 = vrot.lane.b32.xlu0 %v429, 64
    %v1578 = vpop.permute.xlu0 %1577
    %1579 = vrot.lane.b32.xlu0 %v430, 64
    %v1580 = vpop.permute.xlu0 %1579
    %1581 = vrot.lane.b32.xlu0 %v431, 64
    %v1582 = vpop.permute.xlu0 %1581
    %1583 = vrot.lane.b32.xlu0 %v432, 64
    %v1584 = vpop.permute.xlu0 %1583
    %1585 = vrot.lane.b32.xlu0 %v433, 64
    %v1586 = vpop.permute.xlu0 %1585
    %v1779 = vsel %vm434, %v1204, 0.0
    %1780 = vadd.xlane.f32.xlu0 %v1779
    %v1781 = vpop.xlane.xlu0 %1780
    %v1782 = vsel %vm434, %v1206, 0.0
    %1783 = vadd.xlane.f32.xlu0 %v1782
    %v1784 = vpop.xlane.xlu0 %1783
    %v1785 = vsel %vm434, %v1208, 0.0
    %1786 = vadd.xlane.f32.xlu0 %v1785
    %v1787 = vpop.xlane.xlu0 %1786
    %v1788 = vsel %vm434, %v1210, 0.0
    %1789 = vadd.xlane.f32.xlu0 %v1788
    %v1790 = vpop.xlane.xlu0 %1789
    %v1791 = vsel %vm434, %v1212, 0.0
    %1792 = vadd.xlane.f32.xlu0 %v1791
    %v1793 = vpop.xlane.xlu0 %1792
    %v1794 = vsel %vm434, %v1214, 0.0
    %1795 = vadd.xlane.f32.xlu0 %v1794
    %v1796 = vpop.xlane.xlu0 %1795
    %v1797 = vsel %vm434, %v1216, 0.0
    %1798 = vadd.xlane.f32.xlu0 %v1797
    %v1799 = vpop.xlane.xlu0 %1798
    %v1800 = vsel %vm434, %v1218, 0.0
    %1801 = vadd.xlane.f32.xlu0 %v1800
    %v1802 = vpop.xlane.xlu0 %1801
    %v1803 = vsel %vm434, %v1220, 0.0
    %1804 = vadd.xlane.f32.xlu0 %v1803
    %v1805 = vpop.xlane.xlu0 %1804
    %v1806 = vsel %vm434, %v1222, 0.0
    %1807 = vadd.xlane.f32.xlu0 %v1806
    %v1808 = vpop.xlane.xlu0 %1807
    %v1809 = vsel %vm434, %v1224, 0.0
    %1810 = vadd.xlane.f32.xlu0 %v1809
    %v1811 = vpop.xlane.xlu0 %1810
    %v1812 = vsel %vm434, %v1226, 0.0
    %1813 = vadd.xlane.f32.xlu0 %v1812
    %v1814 = vpop.xlane.xlu0 %1813
    %v1815 = vsel %vm434, %v1228, 0.0
    %1816 = vadd.xlane.f32.xlu0 %v1815
    %v1817 = vpop.xlane.xlu0 %1816
    %v1818 = vsel %vm434, %v1230, 0.0
    %1819 = vadd.xlane.f32.xlu0 %v1818
    %v1820 = vpop.xlane.xlu0 %1819
    %v1821 = vsel %vm434, %v1232, 0.0
    %1822 = vadd.xlane.f32.xlu0 %v1821
    %v1823 = vpop.xlane.xlu0 %1822
    %v1824 = vsel %vm434, %v1234, 0.0
    %1825 = vadd.xlane.f32.xlu0 %v1824
    %v1826 = vpop.xlane.xlu0 %1825
    %v1827 = vsel %vm434, %v1236, 0.0
    %1828 = vadd.xlane.f32.xlu0 %v1827
    %v1829 = vpop.xlane.xlu0 %1828
    %v1830 = vsel %vm434, %v1238, 0.0
    %1831 = vadd.xlane.f32.xlu0 %v1830
    %v1832 = vpop.xlane.xlu0 %1831
    %v1833 = vsel %vm434, %v1240, 0.0
    %1834 = vadd.xlane.f32.xlu0 %v1833
    %v1835 = vpop.xlane.xlu0 %1834
    %v1836 = vsel %vm434, %v1242, 0.0
    %1837 = vadd.xlane.f32.xlu0 %v1836
    %v1838 = vpop.xlane.xlu0 %1837
    %v1839 = vsel %vm434, %v1244, 0.0
    %1840 = vadd.xlane.f32.xlu0 %v1839
    %v1841 = vpop.xlane.xlu0 %1840
    %v1842 = vsel %vm434, %v1246, 0.0
    %1843 = vadd.xlane.f32.xlu0 %v1842
    %v1844 = vpop.xlane.xlu0 %1843
    %v1845 = vsel %vm434, %v1248, 0.0
    %1846 = vadd.xlane.f32.xlu0 %v1845
    %v1847 = vpop.xlane.xlu0 %1846
    %v1848 = vsel %vm434, %v1250, 0.0
    %1849 = vadd.xlane.f32.xlu0 %v1848
    %v1850 = vpop.xlane.xlu0 %1849
    %v1851 = vsel %vm434, %v1252, 0.0
    %1852 = vadd.xlane.f32.xlu0 %v1851
    %v1853 = vpop.xlane.xlu0 %1852
    %v1854 = vsel %vm434, %v1254, 0.0
    %1855 = vadd.xlane.f32.xlu0 %v1854
    %v1856 = vpop.xlane.xlu0 %1855
    %v1857 = vsel %vm434, %v1256, 0.0
    %1858 = vadd.xlane.f32.xlu0 %v1857
    %v1859 = vpop.xlane.xlu0 %1858
    %v1860 = vsel %vm434, %v1258, 0.0
    %1861 = vadd.xlane.f32.xlu0 %v1860
    %v1862 = vpop.xlane.xlu0 %1861
    %v1863 = vsel %vm434, %v1260, 0.0
    %1864 = vadd.xlane.f32.xlu0 %v1863
    %v1865 = vpop.xlane.xlu0 %1864
    %v1866 = vsel %vm434, %v1262, 0.0
    %1867 = vadd.xlane.f32.xlu0 %v1866
    %v1868 = vpop.xlane.xlu0 %1867
    %v1869 = vsel %vm434, %v1264, 0.0
    %1870 = vadd.xlane.f32.xlu0 %v1869
    %v1871 = vpop.xlane.xlu0 %1870
    %v1872 = vsel %vm434, %v1266, 0.0
    %1873 = vadd.xlane.f32.xlu0 %v1872
    %v1874 = vpop.xlane.xlu0 %1873
    %v1875 = vsel %vm434, %v1268, 0.0
    %1876 = vadd.xlane.f32.xlu0 %v1875
    %v1877 = vpop.xlane.xlu0 %1876
    %v1878 = vsel %vm434, %v1270, 0.0
    %1879 = vadd.xlane.f32.xlu0 %v1878
    %v1880 = vpop.xlane.xlu0 %1879
    %v1881 = vsel %vm434, %v1272, 0.0
    %1882 = vadd.xlane.f32.xlu0 %v1881
    %v1883 = vpop.xlane.xlu0 %1882
    %v1884 = vsel %vm434, %v1274, 0.0
    %1885 = vadd.xlane.f32.xlu0 %v1884
    %v1886 = vpop.xlane.xlu0 %1885
    %v1887 = vsel %vm434, %v1276, 0.0
    %1888 = vadd.xlane.f32.xlu0 %v1887
    %v1889 = vpop.xlane.xlu0 %1888
    %v1890 = vsel %vm434, %v1278, 0.0
    %1891 = vadd.xlane.f32.xlu0 %v1890
    %v1892 = vpop.xlane.xlu0 %1891
    %v1893 = vsel %vm434, %v1280, 0.0
    %1894 = vadd.xlane.f32.xlu0 %v1893
    %v1895 = vpop.xlane.xlu0 %1894
    %v1896 = vsel %vm434, %v1282, 0.0
    %1897 = vadd.xlane.f32.xlu0 %v1896
    %v1898 = vpop.xlane.xlu0 %1897
    %v1899 = vsel %vm434, %v1284, 0.0
    %1900 = vadd.xlane.f32.xlu0 %v1899
    %v1901 = vpop.xlane.xlu0 %1900
    %v1902 = vsel %vm434, %v1286, 0.0
    %1903 = vadd.xlane.f32.xlu0 %v1902
    %v1904 = vpop.xlane.xlu0 %1903
    %v1905 = vsel %vm434, %v1288, 0.0
    %1906 = vadd.xlane.f32.xlu0 %v1905
    %v1907 = vpop.xlane.xlu0 %1906
    %v1908 = vsel %vm434, %v1290, 0.0
    %1909 = vadd.xlane.f32.xlu0 %v1908
    %v1910 = vpop.xlane.xlu0 %1909
    %v1911 = vsel %vm434, %v1292, 0.0
    %1912 = vadd.xlane.f32.xlu0 %v1911
    %v1913 = vpop.xlane.xlu0 %1912
    %v1914 = vsel %vm434, %v1294, 0.0
    %1915 = vadd.xlane.f32.xlu0 %v1914
    %v1916 = vpop.xlane.xlu0 %1915
    %v1917 = vsel %vm434, %v1296, 0.0
    %1918 = vadd.xlane.f32.xlu0 %v1917
    %v1919 = vpop.xlane.xlu0 %1918
    %v1920 = vsel %vm434, %v1298, 0.0
    %1921 = vadd.xlane.f32.xlu0 %v1920
    %v1922 = vpop.xlane.xlu0 %1921
    %v1923 = vsel %vm434, %v1300, 0.0
    %1924 = vadd.xlane.f32.xlu0 %v1923
    %v1925 = vpop.xlane.xlu0 %1924
    %v1926 = vsel %vm434, %v1302, 0.0
    %1927 = vadd.xlane.f32.xlu0 %v1926
    %v1928 = vpop.xlane.xlu0 %1927
    %v1929 = vsel %vm434, %v1304, 0.0
    %1930 = vadd.xlane.f32.xlu0 %v1929
    %v1931 = vpop.xlane.xlu0 %1930
    %v1932 = vsel %vm434, %v1306, 0.0
    %1933 = vadd.xlane.f32.xlu0 %v1932
    %v1934 = vpop.xlane.xlu0 %1933
    %v1935 = vsel %vm434, %v1308, 0.0
    %1936 = vadd.xlane.f32.xlu0 %v1935
    %v1937 = vpop.xlane.xlu0 %1936
    %v1938 = vsel %vm434, %v1310, 0.0
    %1939 = vadd.xlane.f32.xlu0 %v1938
    %v1940 = vpop.xlane.xlu0 %1939
    %v1941 = vsel %vm434, %v1312, 0.0
    %1942 = vadd.xlane.f32.xlu0 %v1941
    %v1943 = vpop.xlane.xlu0 %1942
    %v1944 = vsel %vm434, %v1314, 0.0
    %1945 = vadd.xlane.f32.xlu0 %v1944
    %v1946 = vpop.xlane.xlu0 %1945
    %v1947 = vsel %vm434, %v1316, 0.0
    %1948 = vadd.xlane.f32.xlu0 %v1947
    %v1949 = vpop.xlane.xlu0 %1948
    %v1950 = vsel %vm434, %v1318, 0.0
    %1951 = vadd.xlane.f32.xlu0 %v1950
    %v1952 = vpop.xlane.xlu0 %1951
    %v1953 = vsel %vm434, %v1320, 0.0
    %1954 = vadd.xlane.f32.xlu0 %v1953
    %v1955 = vpop.xlane.xlu0 %1954
    %v1956 = vsel %vm434, %v1322, 0.0
    %1957 = vadd.xlane.f32.xlu0 %v1956
    %v1958 = vpop.xlane.xlu0 %1957
    %v1959 = vsel %vm434, %v1324, 0.0
    %1960 = vadd.xlane.f32.xlu0 %v1959
    %v1961 = vpop.xlane.xlu0 %1960
    %v1962 = vsel %vm434, %v1326, 0.0
    %1963 = vadd.xlane.f32.xlu0 %v1962
    %v1964 = vpop.xlane.xlu0 %1963
    %v1965 = vsel %vm434, %v1328, 0.0
    %1966 = vadd.xlane.f32.xlu0 %v1965
    %v1967 = vpop.xlane.xlu0 %1966
    %v1968 = vsel %vm434, %v1330, 0.0
    %1969 = vadd.xlane.f32.xlu0 %v1968
    %v1970 = vpop.xlane.xlu0 %1969
    %v1971 = vsel %vm434, %v1332, 0.0
    %1972 = vadd.xlane.f32.xlu0 %v1971
    %v1973 = vpop.xlane.xlu0 %1972
    %v1974 = vsel %vm434, %v1334, 0.0
    %1975 = vadd.xlane.f32.xlu0 %v1974
    %v1976 = vpop.xlane.xlu0 %1975
    %v1977 = vsel %vm434, %v1336, 0.0
    %1978 = vadd.xlane.f32.xlu0 %v1977
    %v1979 = vpop.xlane.xlu0 %1978
    %v1980 = vsel %vm434, %v1338, 0.0
    %1981 = vadd.xlane.f32.xlu0 %v1980
    %v1982 = vpop.xlane.xlu0 %1981
    %v1983 = vsel %vm434, %v1340, 0.0
    %1984 = vadd.xlane.f32.xlu0 %v1983
    %v1985 = vpop.xlane.xlu0 %1984
    %v1986 = vsel %vm434, %v1342, 0.0
    %1987 = vadd.xlane.f32.xlu0 %v1986
    %v1988 = vpop.xlane.xlu0 %1987
    %v1989 = vsel %vm434, %v1344, 0.0
    %1990 = vadd.xlane.f32.xlu0 %v1989
    %v1991 = vpop.xlane.xlu0 %1990
    %v1992 = vsel %vm434, %v1346, 0.0
    %1993 = vadd.xlane.f32.xlu0 %v1992
    %v1994 = vpop.xlane.xlu0 %1993
    %v1995 = vsel %vm434, %v1348, 0.0
    %1996 = vadd.xlane.f32.xlu0 %v1995
    %v1997 = vpop.xlane.xlu0 %1996
    %v1998 = vsel %vm434, %v1350, 0.0
    %1999 = vadd.xlane.f32.xlu0 %v1998
    %v2000 = vpop.xlane.xlu0 %1999
    %v2001 = vsel %vm434, %v1352, 0.0
    %2002 = vadd.xlane.f32.xlu0 %v2001
    %v2003 = vpop.xlane.xlu0 %2002
    %v2004 = vsel %vm434, %v1354, 0.0
    %2005 = vadd.xlane.f32.xlu0 %v2004
    %v2006 = vpop.xlane.xlu0 %2005
    %v2007 = vsel %vm434, %v1356, 0.0
    %2008 = vadd.xlane.f32.xlu0 %v2007
    %v2009 = vpop.xlane.xlu0 %2008
    %v2010 = vsel %vm434, %v1358, 0.0
    %2011 = vadd.xlane.f32.xlu0 %v2010
    %v2012 = vpop.xlane.xlu0 %2011
    %v2013 = vsel %vm434, %v1360, 0.0
    %2014 = vadd.xlane.f32.xlu0 %v2013
    %v2015 = vpop.xlane.xlu0 %2014
    %v2016 = vsel %vm434, %v1362, 0.0
    %2017 = vadd.xlane.f32.xlu0 %v2016
    %v2018 = vpop.xlane.xlu0 %2017
    %v2019 = vsel %vm434, %v1364, 0.0
    %2020 = vadd.xlane.f32.xlu0 %v2019
    %v2021 = vpop.xlane.xlu0 %2020
    %v2022 = vsel %vm434, %v1366, 0.0
    %2023 = vadd.xlane.f32.xlu0 %v2022
    %v2024 = vpop.xlane.xlu0 %2023
    %v2025 = vsel %vm434, %v1368, 0.0
    %2026 = vadd.xlane.f32.xlu0 %v2025
    %v2027 = vpop.xlane.xlu0 %2026
    %v2028 = vsel %vm434, %v1370, 0.0
    %2029 = vadd.xlane.f32.xlu0 %v2028
    %v2030 = vpop.xlane.xlu0 %2029
    %v2031 = vsel %vm434, %v1372, 0.0
    %2032 = vadd.xlane.f32.xlu0 %v2031
    %v2033 = vpop.xlane.xlu0 %2032
    %v2034 = vsel %vm434, %v1374, 0.0
    %2035 = vadd.xlane.f32.xlu0 %v2034
    %v2036 = vpop.xlane.xlu0 %2035
    %v2037 = vsel %vm434, %v1376, 0.0
    %2038 = vadd.xlane.f32.xlu0 %v2037
    %v2039 = vpop.xlane.xlu0 %2038
    %v2040 = vsel %vm434, %v1378, 0.0
    %2041 = vadd.xlane.f32.xlu0 %v2040
    %v2042 = vpop.xlane.xlu0 %2041
    %v2043 = vsel %vm434, %v1380, 0.0
    %2044 = vadd.xlane.f32.xlu0 %v2043
    %v2045 = vpop.xlane.xlu0 %2044
    %v2046 = vsel %vm434, %v1382, 0.0
    %2047 = vadd.xlane.f32.xlu0 %v2046
    %v2048 = vpop.xlane.xlu0 %2047
    %v2049 = vsel %vm434, %v1384, 0.0
    %2050 = vadd.xlane.f32.xlu0 %v2049
    %v2051 = vpop.xlane.xlu0 %2050
    %v2052 = vsel %vm434, %v1386, 0.0
    %2053 = vadd.xlane.f32.xlu0 %v2052
    %v2054 = vpop.xlane.xlu0 %2053
    %v2055 = vsel %vm434, %v1388, 0.0
    %2056 = vadd.xlane.f32.xlu0 %v2055
    %v2057 = vpop.xlane.xlu0 %2056
    %v2058 = vsel %vm434, %v1390, 0.0
    %2059 = vadd.xlane.f32.xlu0 %v2058
    %v2060 = vpop.xlane.xlu0 %2059
    %v2061 = vsel %vm434, %v1392, 0.0
    %2062 = vadd.xlane.f32.xlu0 %v2061
    %v2063 = vpop.xlane.xlu0 %2062
    %v2064 = vsel %vm434, %v1394, 0.0
    %2065 = vadd.xlane.f32.xlu0 %v2064
    %v2066 = vpop.xlane.xlu0 %2065
    %v2067 = vsel %vm434, %v1396, 0.0
    %2068 = vadd.xlane.f32.xlu0 %v2067
    %v2069 = vpop.xlane.xlu0 %2068
    %v2070 = vsel %vm434, %v1398, 0.0
    %2071 = vadd.xlane.f32.xlu0 %v2070
    %v2072 = vpop.xlane.xlu0 %2071
    %v2073 = vsel %vm434, %v1400, 0.0
    %2074 = vadd.xlane.f32.xlu0 %v2073
    %v2075 = vpop.xlane.xlu0 %2074
    %v2076 = vsel %vm434, %v1402, 0.0
    %2077 = vadd.xlane.f32.xlu0 %v2076
    %v2078 = vpop.xlane.xlu0 %2077
    %v2079 = vsel %vm434, %v1404, 0.0
    %2080 = vadd.xlane.f32.xlu0 %v2079
    %v2081 = vpop.xlane.xlu0 %2080
    %v2082 = vsel %vm434, %v1406, 0.0
    %2083 = vadd.xlane.f32.xlu0 %v2082
    %v2084 = vpop.xlane.xlu0 %2083
    %v2085 = vsel %vm434, %v1408, 0.0
    %2086 = vadd.xlane.f32.xlu0 %v2085
    %v2087 = vpop.xlane.xlu0 %2086
    %v2088 = vsel %vm434, %v1410, 0.0
    %2089 = vadd.xlane.f32.xlu0 %v2088
    %v2090 = vpop.xlane.xlu0 %2089
    %v2091 = vsel %vm434, %v1412, 0.0
    %2092 = vadd.xlane.f32.xlu0 %v2091
    %v2093 = vpop.xlane.xlu0 %2092
    %v2094 = vsel %vm434, %v1414, 0.0
    %2095 = vadd.xlane.f32.xlu0 %v2094
    %v2096 = vpop.xlane.xlu0 %2095
    %v2097 = vsel %vm434, %v1416, 0.0
    %2098 = vadd.xlane.f32.xlu0 %v2097
    %v2099 = vpop.xlane.xlu0 %2098
    %v2100 = vsel %vm434, %v1418, 0.0
    %2101 = vadd.xlane.f32.xlu0 %v2100
    %v2102 = vpop.xlane.xlu0 %2101
    %v2103 = vsel %vm434, %v1420, 0.0
    %2104 = vadd.xlane.f32.xlu0 %v2103
    %v2105 = vpop.xlane.xlu0 %2104
    %v2106 = vsel %vm434, %v1422, 0.0
    %2107 = vadd.xlane.f32.xlu0 %v2106
    %v2108 = vpop.xlane.xlu0 %2107
    %v2109 = vsel %vm434, %v1424, 0.0
    %2110 = vadd.xlane.f32.xlu0 %v2109
    %v2111 = vpop.xlane.xlu0 %2110
    %v2112 = vsel %vm434, %v1426, 0.0
    %2113 = vadd.xlane.f32.xlu0 %v2112
    %v2114 = vpop.xlane.xlu0 %2113
    %v2115 = vsel %vm434, %v1428, 0.0
    %2116 = vadd.xlane.f32.xlu0 %v2115
    %v2117 = vpop.xlane.xlu0 %2116
    %v2118 = vsel %vm434, %v1430, 0.0
    %2119 = vadd.xlane.f32.xlu0 %v2118
    %v2120 = vpop.xlane.xlu0 %2119
    %v2121 = vsel %vm434, %v1432, 0.0
    %2122 = vadd.xlane.f32.xlu0 %v2121
    %v2123 = vpop.xlane.xlu0 %2122
    %v2124 = vsel %vm434, %v1434, 0.0
    %2125 = vadd.xlane.f32.xlu0 %v2124
    %v2126 = vpop.xlane.xlu0 %2125
    %v2127 = vsel %vm434, %v1436, 0.0
    %2128 = vadd.xlane.f32.xlu0 %v2127
    %v2129 = vpop.xlane.xlu0 %2128
    %v2130 = vsel %vm434, %v1438, 0.0
    %2131 = vadd.xlane.f32.xlu0 %v2130
    %v2132 = vpop.xlane.xlu0 %2131
    %v2133 = vsel %vm434, %v1440, 0.0
    %2134 = vadd.xlane.f32.xlu0 %v2133
    %v2135 = vpop.xlane.xlu0 %2134
    %v2136 = vsel %vm434, %v1442, 0.0
    %2137 = vadd.xlane.f32.xlu0 %v2136
    %v2138 = vpop.xlane.xlu0 %2137
    %v2139 = vsel %vm434, %v1444, 0.0
    %2140 = vadd.xlane.f32.xlu0 %v2139
    %v2141 = vpop.xlane.xlu0 %2140
    %v2142 = vsel %vm434, %v1446, 0.0
    %2143 = vadd.xlane.f32.xlu0 %v2142
    %v2144 = vpop.xlane.xlu0 %2143
    %v2145 = vsel %vm434, %v1448, 0.0
    %2146 = vadd.xlane.f32.xlu0 %v2145
    %v2147 = vpop.xlane.xlu0 %2146
    %v2148 = vsel %vm434, %v1450, 0.0
    %2149 = vadd.xlane.f32.xlu0 %v2148
    %v2150 = vpop.xlane.xlu0 %2149
    %v2151 = vsel %vm434, %v1452, 0.0
    %2152 = vadd.xlane.f32.xlu0 %v2151
    %v2153 = vpop.xlane.xlu0 %2152
    %v2154 = vsel %vm434, %v1454, 0.0
    %2155 = vadd.xlane.f32.xlu0 %v2154
    %v2156 = vpop.xlane.xlu0 %2155
    %v2157 = vsel %vm434, %v1456, 0.0
    %2158 = vadd.xlane.f32.xlu0 %v2157
    %v2159 = vpop.xlane.xlu0 %2158
    %v2160 = vsel %vm434, %v1458, 0.0
    %2161 = vadd.xlane.f32.xlu0 %v2160
    %v2162 = vpop.xlane.xlu0 %2161
    %v2163 = vsel %vm434, %v1460, 0.0
    %2164 = vadd.xlane.f32.xlu0 %v2163
    %v2165 = vpop.xlane.xlu0 %2164
    %v2166 = vsel %vm434, %v1462, 0.0
    %2167 = vadd.xlane.f32.xlu0 %v2166
    %v2168 = vpop.xlane.xlu0 %2167
    %v2169 = vsel %vm434, %v1464, 0.0
    %2170 = vadd.xlane.f32.xlu0 %v2169
    %v2171 = vpop.xlane.xlu0 %2170
    %v2172 = vsel %vm434, %v1466, 0.0
    %2173 = vadd.xlane.f32.xlu0 %v2172
    %v2174 = vpop.xlane.xlu0 %2173
    %v2175 = vsel %vm434, %v1468, 0.0
    %2176 = vadd.xlane.f32.xlu0 %v2175
    %v2177 = vpop.xlane.xlu0 %2176
    %v2178 = vsel %vm434, %v1470, 0.0
    %2179 = vadd.xlane.f32.xlu0 %v2178
    %v2180 = vpop.xlane.xlu0 %2179
    %v2181 = vsel %vm434, %v1472, 0.0
    %2182 = vadd.xlane.f32.xlu0 %v2181
    %v2183 = vpop.xlane.xlu0 %2182
    %v2184 = vsel %vm434, %v1474, 0.0
    %2185 = vadd.xlane.f32.xlu0 %v2184
    %v2186 = vpop.xlane.xlu0 %2185
    %v2187 = vsel %vm434, %v1476, 0.0
    %2188 = vadd.xlane.f32.xlu0 %v2187
    %v2189 = vpop.xlane.xlu0 %2188
    %v2190 = vsel %vm434, %v1478, 0.0
    %2191 = vadd.xlane.f32.xlu0 %v2190
    %v2192 = vpop.xlane.xlu0 %2191
    %v2193 = vsel %vm434, %v1480, 0.0
    %2194 = vadd.xlane.f32.xlu0 %v2193
    %v2195 = vpop.xlane.xlu0 %2194
    %v2196 = vsel %vm434, %v1482, 0.0
    %2197 = vadd.xlane.f32.xlu0 %v2196
    %v2198 = vpop.xlane.xlu0 %2197
    %v2199 = vsel %vm434, %v1484, 0.0
    %2200 = vadd.xlane.f32.xlu0 %v2199
    %v2201 = vpop.xlane.xlu0 %2200
    %v2202 = vsel %vm434, %v1486, 0.0
    %2203 = vadd.xlane.f32.xlu0 %v2202
    %v2204 = vpop.xlane.xlu0 %2203
    %v2205 = vsel %vm434, %v1488, 0.0
    %2206 = vadd.xlane.f32.xlu0 %v2205
    %v2207 = vpop.xlane.xlu0 %2206
    %v2208 = vsel %vm434, %v1490, 0.0
    %2209 = vadd.xlane.f32.xlu0 %v2208
    %v2210 = vpop.xlane.xlu0 %2209
    %v2211 = vsel %vm434, %v1492, 0.0
    %2212 = vadd.xlane.f32.xlu0 %v2211
    %v2213 = vpop.xlane.xlu0 %2212
    %v2214 = vsel %vm434, %v1494, 0.0
    %2215 = vadd.xlane.f32.xlu0 %v2214
    %v2216 = vpop.xlane.xlu0 %2215
    %v2217 = vsel %vm434, %v1496, 0.0
    %2218 = vadd.xlane.f32.xlu0 %v2217
    %v2219 = vpop.xlane.xlu0 %2218
    %v2220 = vsel %vm434, %v1498, 0.0
    %2221 = vadd.xlane.f32.xlu0 %v2220
    %v2222 = vpop.xlane.xlu0 %2221
    %v2223 = vsel %vm434, %v1500, 0.0
    %2224 = vadd.xlane.f32.xlu0 %v2223
    %v2225 = vpop.xlane.xlu0 %2224
    %v2226 = vsel %vm434, %v1502, 0.0
    %2227 = vadd.xlane.f32.xlu0 %v2226
    %v2228 = vpop.xlane.xlu0 %2227
    %v2229 = vsel %vm434, %v1504, 0.0
    %2230 = vadd.xlane.f32.xlu0 %v2229
    %v2231 = vpop.xlane.xlu0 %2230
    %v2232 = vsel %vm434, %v1506, 0.0
    %2233 = vadd.xlane.f32.xlu0 %v2232
    %v2234 = vpop.xlane.xlu0 %2233
    %v2235 = vsel %vm434, %v1508, 0.0
    %2236 = vadd.xlane.f32.xlu0 %v2235
    %v2237 = vpop.xlane.xlu0 %2236
    %v2238 = vsel %vm434, %v1510, 0.0
    %2239 = vadd.xlane.f32.xlu0 %v2238
    %v2240 = vpop.xlane.xlu0 %2239
    %v2241 = vsel %vm434, %v1512, 0.0
    %2242 = vadd.xlane.f32.xlu0 %v2241
    %v2243 = vpop.xlane.xlu0 %2242
    %v2244 = vsel %vm434, %v1514, 0.0
    %2245 = vadd.xlane.f32.xlu0 %v2244
    %v2246 = vpop.xlane.xlu0 %2245
    %v2247 = vsel %vm434, %v1516, 0.0
    %2248 = vadd.xlane.f32.xlu0 %v2247
    %v2249 = vpop.xlane.xlu0 %2248
    %v2250 = vsel %vm434, %v1518, 0.0
    %2251 = vadd.xlane.f32.xlu0 %v2250
    %v2252 = vpop.xlane.xlu0 %2251
    %v2253 = vsel %vm434, %v1520, 0.0
    %2254 = vadd.xlane.f32.xlu0 %v2253
    %v2255 = vpop.xlane.xlu0 %2254
    %v2256 = vsel %vm434, %v1522, 0.0
    %2257 = vadd.xlane.f32.xlu0 %v2256
    %v2258 = vpop.xlane.xlu0 %2257
    %v2259 = vsel %vm434, %v1524, 0.0
    %2260 = vadd.xlane.f32.xlu0 %v2259
    %v2261 = vpop.xlane.xlu0 %2260
    %v2262 = vsel %vm434, %v1526, 0.0
    %2263 = vadd.xlane.f32.xlu0 %v2262
    %v2264 = vpop.xlane.xlu0 %2263
    %v2265 = vsel %vm434, %v1528, 0.0
    %2266 = vadd.xlane.f32.xlu0 %v2265
    %v2267 = vpop.xlane.xlu0 %2266
    %v2268 = vsel %vm434, %v1530, 0.0
    %2269 = vadd.xlane.f32.xlu0 %v2268
    %v2270 = vpop.xlane.xlu0 %2269
    %v2271 = vsel %vm434, %v1532, 0.0
    %2272 = vadd.xlane.f32.xlu0 %v2271
    %v2273 = vpop.xlane.xlu0 %2272
    %v2274 = vsel %vm434, %v1534, 0.0
    %2275 = vadd.xlane.f32.xlu0 %v2274
    %v2276 = vpop.xlane.xlu0 %2275
    %v2277 = vsel %vm434, %v1536, 0.0
    %2278 = vadd.xlane.f32.xlu0 %v2277
    %v2279 = vpop.xlane.xlu0 %2278
    %v2280 = vsel %vm434, %v1538, 0.0
    %2281 = vadd.xlane.f32.xlu0 %v2280
    %v2282 = vpop.xlane.xlu0 %2281
    %v2283 = vsel %vm434, %v1540, 0.0
    %2284 = vadd.xlane.f32.xlu0 %v2283
    %v2285 = vpop.xlane.xlu0 %2284
    %v2286 = vsel %vm434, %v1542, 0.0
    %2287 = vadd.xlane.f32.xlu0 %v2286
    %v2288 = vpop.xlane.xlu0 %2287
    %v2289 = vsel %vm434, %v1544, 0.0
    %2290 = vadd.xlane.f32.xlu0 %v2289
    %v2291 = vpop.xlane.xlu0 %2290
    %v2292 = vsel %vm434, %v1546, 0.0
    %2293 = vadd.xlane.f32.xlu0 %v2292
    %v2294 = vpop.xlane.xlu0 %2293
    %v2295 = vsel %vm434, %v1548, 0.0
    %2296 = vadd.xlane.f32.xlu0 %v2295
    %v2297 = vpop.xlane.xlu0 %2296
    %v2298 = vsel %vm434, %v1550, 0.0
    %2299 = vadd.xlane.f32.xlu0 %v2298
    %v2300 = vpop.xlane.xlu0 %2299
    %v2301 = vsel %vm434, %v1552, 0.0
    %2302 = vadd.xlane.f32.xlu0 %v2301
    %v2303 = vpop.xlane.xlu0 %2302
    %v2304 = vsel %vm434, %v1554, 0.0
    %2305 = vadd.xlane.f32.xlu0 %v2304
    %v2306 = vpop.xlane.xlu0 %2305
    %v2307 = vsel %vm434, %v1556, 0.0
    %2308 = vadd.xlane.f32.xlu0 %v2307
    %v2309 = vpop.xlane.xlu0 %2308
    %v2310 = vsel %vm434, %v1558, 0.0
    %2311 = vadd.xlane.f32.xlu0 %v2310
    %v2312 = vpop.xlane.xlu0 %2311
    %v2313 = vsel %vm434, %v1560, 0.0
    %2314 = vadd.xlane.f32.xlu0 %v2313
    %v2315 = vpop.xlane.xlu0 %2314
    %v2316 = vsel %vm434, %v1562, 0.0
    %2317 = vadd.xlane.f32.xlu0 %v2316
    %v2318 = vpop.xlane.xlu0 %2317
    %v2319 = vsel %vm434, %v1564, 0.0
    %2320 = vadd.xlane.f32.xlu0 %v2319
    %v2321 = vpop.xlane.xlu0 %2320
    %v2322 = vsel %vm434, %v1566, 0.0
    %2323 = vadd.xlane.f32.xlu0 %v2322
    %v2324 = vpop.xlane.xlu0 %2323
    %v2325 = vsel %vm434, %v1568, 0.0
    %2326 = vadd.xlane.f32.xlu0 %v2325
    %v2327 = vpop.xlane.xlu0 %2326
    %v2328 = vsel %vm434, %v1570, 0.0
    %2329 = vadd.xlane.f32.xlu0 %v2328
    %v2330 = vpop.xlane.xlu0 %2329
    %v2331 = vsel %vm434, %v1572, 0.0
    %2332 = vadd.xlane.f32.xlu0 %v2331
    %v2333 = vpop.xlane.xlu0 %2332
    %v2334 = vsel %vm434, %v1574, 0.0
    %2335 = vadd.xlane.f32.xlu0 %v2334
    %v2336 = vpop.xlane.xlu0 %2335
    %v2337 = vsel %vm434, %v1576, 0.0
    %2338 = vadd.xlane.f32.xlu0 %v2337
    %v2339 = vpop.xlane.xlu0 %2338
    %v2340 = vsel %vm434, %v1578, 0.0
    %2341 = vadd.xlane.f32.xlu0 %v2340
    %v2342 = vpop.xlane.xlu0 %2341
    %v2343 = vsel %vm434, %v1580, 0.0
    %2344 = vadd.xlane.f32.xlu0 %v2343
    %v2345 = vpop.xlane.xlu0 %2344
    %v2346 = vsel %vm434, %v1582, 0.0
    %2347 = vadd.xlane.f32.xlu0 %v2346
    %v2348 = vpop.xlane.xlu0 %2347
    %v2349 = vsel %vm434, %v1584, 0.0
    %2350 = vadd.xlane.f32.xlu0 %v2349
    %v2351 = vpop.xlane.xlu0 %2350
    %v2352 = vsel %vm434, %v1586, 0.0
    %2353 = vadd.xlane.f32.xlu0 %v2352
    %v2354 = vpop.xlane.xlu0 %2353
    %v2547 = vlaneseq
    %v2548 = vand.u32 %v2547, 127
    %v2549 = vlaneseq
    %v2550 = vshrl.u32 %v2549, 7
    %v2551 = vsub.s32 %v2548, %v2550
    %v2552 = vrot.slane %v437, %v2551
    %v2553 = vadd.s32 %v2548, 4294967288
    %v2554 = vlaneseq
    %v2555 = vshrl.u32 %v2554, 7
    %v2556 = vsub.s32 %v2553, %v2555
    %v2557 = vrot.slane %v440, %v2556
    %vm2558 = vcmask 130112
    %v2559 = vsel %vm2558, %v2557, %v2552
    %v2560 = vadd.s32 %v2548, 4294967280
    %v2561 = vlaneseq
    %v2562 = vshrl.u32 %v2561, 7
    %v2563 = vsub.s32 %v2560, %v2562
    %v2564 = vrot.slane %v443, %v2563
    %vm2565 = vcmask 195712
    %v2566 = vsel %vm2565, %v2564, %v2559
    %v2567 = vadd.s32 %v2548, 4294967272
    %v2568 = vlaneseq
    %v2569 = vshrl.u32 %v2568, 7
    %v2570 = vsub.s32 %v2567, %v2569
    %v2571 = vrot.slane %v446, %v2570
    %vm2572 = vcmask 261312
    %v2573 = vsel %vm2572, %v2571, %v2566
    %v2574 = vadd.s32 %v2548, 4294967264
    %v2575 = vlaneseq
    %v2576 = vshrl.u32 %v2575, 7
    %v2577 = vsub.s32 %v2574, %v2576
    %v2578 = vrot.slane %v449, %v2577
    %vm2579 = vcmask 326912
    %v2580 = vsel %vm2579, %v2578, %v2573
    %v2581 = vadd.s32 %v2548, 4294967256
    %v2582 = vlaneseq
    %v2583 = vshrl.u32 %v2582, 7
    %v2584 = vsub.s32 %v2581, %v2583
    %v2585 = vrot.slane %v452, %v2584
    %vm2586 = vcmask 392512
    %v2587 = vsel %vm2586, %v2585, %v2580
    %v2588 = vadd.s32 %v2548, 4294967248
    %v2589 = vlaneseq
    %v2590 = vshrl.u32 %v2589, 7
    %v2591 = vsub.s32 %v2588, %v2590
    %v2592 = vrot.slane %v455, %v2591
    %vm2593 = vcmask 458112
    %v2594 = vsel %vm2593, %v2592, %v2587
    %v2595 = vadd.s32 %v2548, 4294967240
    %v2596 = vlaneseq
    %v2597 = vshrl.u32 %v2596, 7
    %v2598 = vsub.s32 %v2595, %v2597
    %v2599 = vrot.slane %v458, %v2598
    %vm2600 = vcmask 523712
    %v2601 = vsel %vm2600, %v2599, %v2594
    %v2602 = vadd.s32 %v2548, 4294967232
    %v2603 = vlaneseq
    %v2604 = vshrl.u32 %v2603, 7
    %v2605 = vsub.s32 %v2602, %v2604
    %v2606 = vrot.slane %v461, %v2605
    %vm2607 = vcmask 589312
    %v2608 = vsel %vm2607, %v2606, %v2601
    %v2609 = vadd.s32 %v2548, 4294967224
    %v2610 = vlaneseq
    %v2611 = vshrl.u32 %v2610, 7
    %v2612 = vsub.s32 %v2609, %v2611
    %v2613 = vrot.slane %v464, %v2612
    %vm2614 = vcmask 654912
    %v2615 = vsel %vm2614, %v2613, %v2608
    %v2616 = vadd.s32 %v2548, 4294967216
    %v2617 = vlaneseq
    %v2618 = vshrl.u32 %v2617, 7
    %v2619 = vsub.s32 %v2616, %v2618
    %v2620 = vrot.slane %v467, %v2619
    %vm2621 = vcmask 720512
    %v2622 = vsel %vm2621, %v2620, %v2615
    %v2623 = vadd.s32 %v2548, 4294967208
    %v2624 = vlaneseq
    %v2625 = vshrl.u32 %v2624, 7
    %v2626 = vsub.s32 %v2623, %v2625
    %v2627 = vrot.slane %v470, %v2626
    %vm2628 = vcmask 786112
    %v2629 = vsel %vm2628, %v2627, %v2622
    %v2630 = vadd.s32 %v2548, 4294967200
    %v2631 = vlaneseq
    %v2632 = vshrl.u32 %v2631, 7
    %v2633 = vsub.s32 %v2630, %v2632
    %v2634 = vrot.slane %v473, %v2633
    %vm2635 = vcmask 851712
    %v2636 = vsel %vm2635, %v2634, %v2629
    %v2637 = vadd.s32 %v2548, 4294967192
    %v2638 = vlaneseq
    %v2639 = vshrl.u32 %v2638, 7
    %v2640 = vsub.s32 %v2637, %v2639
    %v2641 = vrot.slane %v476, %v2640
    %vm2642 = vcmask 917312
    %v2643 = vsel %vm2642, %v2641, %v2636
    %v2644 = vadd.s32 %v2548, 4294967184
    %v2645 = vlaneseq
    %v2646 = vshrl.u32 %v2645, 7
    %v2647 = vsub.s32 %v2644, %v2646
    %v2648 = vrot.slane %v479, %v2647
    %vm2649 = vcmask 982912
    %v2650 = vsel %vm2649, %v2648, %v2643
    %v2651 = vadd.s32 %v2548, 4294967176
    %v2652 = vlaneseq
    %v2653 = vshrl.u32 %v2652, 7
    %v2654 = vsub.s32 %v2651, %v2653
    %v2655 = vrot.slane %v482, %v2654
    %vm2656 = vcmask 1048512
    %v2657 = vsel %vm2656, %v2655, %v2650
    %v2658 = vlaneseq
    %v2659 = vshrl.u32 %v2658, 7
    %v2660 = vsub.s32 %v2548, %v2659
    %v2661 = vrot.slane %v485, %v2660
    %v2662 = vlaneseq
    %v2663 = vshrl.u32 %v2662, 7
    %v2664 = vsub.s32 %v2553, %v2663
    %v2665 = vrot.slane %v488, %v2664
    %v2666 = vsel %vm2558, %v2665, %v2661
    %v2667 = vlaneseq
    %v2668 = vshrl.u32 %v2667, 7
    %v2669 = vsub.s32 %v2560, %v2668
    %v2670 = vrot.slane %v491, %v2669
    %v2671 = vsel %vm2565, %v2670, %v2666
    %v2672 = vlaneseq
    %v2673 = vshrl.u32 %v2672, 7
    %v2674 = vsub.s32 %v2567, %v2673
    %v2675 = vrot.slane %v494, %v2674
    %v2676 = vsel %vm2572, %v2675, %v2671
    %v2677 = vlaneseq
    %v2678 = vshrl.u32 %v2677, 7
    %v2679 = vsub.s32 %v2574, %v2678
    %v2680 = vrot.slane %v497, %v2679
    %v2681 = vsel %vm2579, %v2680, %v2676
    %v2682 = vlaneseq
    %v2683 = vshrl.u32 %v2682, 7
    %v2684 = vsub.s32 %v2581, %v2683
    %v2685 = vrot.slane %v500, %v2684
    %v2686 = vsel %vm2586, %v2685, %v2681
    %v2687 = vlaneseq
    %v2688 = vshrl.u32 %v2687, 7
    %v2689 = vsub.s32 %v2588, %v2688
    %v2690 = vrot.slane %v503, %v2689
    %v2691 = vsel %vm2593, %v2690, %v2686
    %v2692 = vlaneseq
    %v2693 = vshrl.u32 %v2692, 7
    %v2694 = vsub.s32 %v2595, %v2693
    %v2695 = vrot.slane %v506, %v2694
    %v2696 = vsel %vm2600, %v2695, %v2691
    %v2697 = vlaneseq
    %v2698 = vshrl.u32 %v2697, 7
    %v2699 = vsub.s32 %v2602, %v2698
    %v2700 = vrot.slane %v509, %v2699
    %v2701 = vsel %vm2607, %v2700, %v2696
    %v2702 = vlaneseq
    %v2703 = vshrl.u32 %v2702, 7
    %v2704 = vsub.s32 %v2609, %v2703
    %v2705 = vrot.slane %v512, %v2704
    %v2706 = vsel %vm2614, %v2705, %v2701
    %v2707 = vlaneseq
    %v2708 = vshrl.u32 %v2707, 7
    %v2709 = vsub.s32 %v2616, %v2708
    %v2710 = vrot.slane %v515, %v2709
    %v2711 = vsel %vm2621, %v2710, %v2706
    %v2712 = vlaneseq
    %v2713 = vshrl.u32 %v2712, 7
    %v2714 = vsub.s32 %v2623, %v2713
    %v2715 = vrot.slane %v518, %v2714
    %v2716 = vsel %vm2628, %v2715, %v2711
    %v2717 = vlaneseq
    %v2718 = vshrl.u32 %v2717, 7
    %v2719 = vsub.s32 %v2630, %v2718
    %v2720 = vrot.slane %v521, %v2719
    %v2721 = vsel %vm2635, %v2720, %v2716
    %v2722 = vlaneseq
    %v2723 = vshrl.u32 %v2722, 7
    %v2724 = vsub.s32 %v2637, %v2723
    %v2725 = vrot.slane %v524, %v2724
    %v2726 = vsel %vm2642, %v2725, %v2721
    %v2727 = vlaneseq
    %v2728 = vshrl.u32 %v2727, 7
    %v2729 = vsub.s32 %v2644, %v2728
    %v2730 = vrot.slane %v527, %v2729
    %v2731 = vsel %vm2649, %v2730, %v2726
    %v2732 = vlaneseq
    %v2733 = vshrl.u32 %v2732, 7
    %v2734 = vsub.s32 %v2651, %v2733
    %v2735 = vrot.slane %v530, %v2734
    %v2736 = vsel %vm2656, %v2735, %v2731
    %v2737 = vlaneseq
    %v2738 = vshrl.u32 %v2737, 7
    %v2739 = vsub.s32 %v2548, %v2738
    %v2740 = vrot.slane %v533, %v2739
    %v2741 = vlaneseq
    %v2742 = vshrl.u32 %v2741, 7
    %v2743 = vsub.s32 %v2553, %v2742
    %v2744 = vrot.slane %v536, %v2743
    %v2745 = vsel %vm2558, %v2744, %v2740
    %v2746 = vlaneseq
    %v2747 = vshrl.u32 %v2746, 7
    %v2748 = vsub.s32 %v2560, %v2747
    %v2749 = vrot.slane %v539, %v2748
    %v2750 = vsel %vm2565, %v2749, %v2745
    %v2751 = vlaneseq
    %v2752 = vshrl.u32 %v2751, 7
    %v2753 = vsub.s32 %v2567, %v2752
    %v2754 = vrot.slane %v542, %v2753
    %v2755 = vsel %vm2572, %v2754, %v2750
    %v2756 = vlaneseq
    %v2757 = vshrl.u32 %v2756, 7
    %v2758 = vsub.s32 %v2574, %v2757
    %v2759 = vrot.slane %v545, %v2758
    %v2760 = vsel %vm2579, %v2759, %v2755
    %v2761 = vlaneseq
    %v2762 = vshrl.u32 %v2761, 7
    %v2763 = vsub.s32 %v2581, %v2762
    %v2764 = vrot.slane %v548, %v2763
    %v2765 = vsel %vm2586, %v2764, %v2760
    %v2766 = vlaneseq
    %v2767 = vshrl.u32 %v2766, 7
    %v2768 = vsub.s32 %v2588, %v2767
    %v2769 = vrot.slane %v551, %v2768
    %v2770 = vsel %vm2593, %v2769, %v2765
    %v2771 = vlaneseq
    %v2772 = vshrl.u32 %v2771, 7
    %v2773 = vsub.s32 %v2595, %v2772
    %v2774 = vrot.slane %v554, %v2773
    %v2775 = vsel %vm2600, %v2774, %v2770
    %v2776 = vlaneseq
    %v2777 = vshrl.u32 %v2776, 7
    %v2778 = vsub.s32 %v2602, %v2777
    %v2779 = vrot.slane %v557, %v2778
    %v2780 = vsel %vm2607, %v2779, %v2775
    %v2781 = vlaneseq
    %v2782 = vshrl.u32 %v2781, 7
    %v2783 = vsub.s32 %v2609, %v2782
    %v2784 = vrot.slane %v560, %v2783
    %v2785 = vsel %vm2614, %v2784, %v2780
    %v2786 = vlaneseq
    %v2787 = vshrl.u32 %v2786, 7
    %v2788 = vsub.s32 %v2616, %v2787
    %v2789 = vrot.slane %v563, %v2788
    %v2790 = vsel %vm2621, %v2789, %v2785
    %v2791 = vlaneseq
    %v2792 = vshrl.u32 %v2791, 7
    %v2793 = vsub.s32 %v2623, %v2792
    %v2794 = vrot.slane %v566, %v2793
    %v2795 = vsel %vm2628, %v2794, %v2790
    %v2796 = vlaneseq
    %v2797 = vshrl.u32 %v2796, 7
    %v2798 = vsub.s32 %v2630, %v2797
    %v2799 = vrot.slane %v569, %v2798
    %v2800 = vsel %vm2635, %v2799, %v2795
    %v2801 = vlaneseq
    %v2802 = vshrl.u32 %v2801, 7
    %v2803 = vsub.s32 %v2637, %v2802
    %v2804 = vrot.slane %v572, %v2803
    %v2805 = vsel %vm2642, %v2804, %v2800
    %v2806 = vlaneseq
    %v2807 = vshrl.u32 %v2806, 7
    %v2808 = vsub.s32 %v2644, %v2807
    %v2809 = vrot.slane %v575, %v2808
    %v2810 = vsel %vm2649, %v2809, %v2805
    %v2811 = vlaneseq
    %v2812 = vshrl.u32 %v2811, 7
    %v2813 = vsub.s32 %v2651, %v2812
    %v2814 = vrot.slane %v578, %v2813
    %v2815 = vsel %vm2656, %v2814, %v2810
    %v2816 = vlaneseq
    %v2817 = vshrl.u32 %v2816, 7
    %v2818 = vsub.s32 %v2548, %v2817
    %v2819 = vrot.slane %v581, %v2818
    %v2820 = vlaneseq
    %v2821 = vshrl.u32 %v2820, 7
    %v2822 = vsub.s32 %v2553, %v2821
    %v2823 = vrot.slane %v584, %v2822
    %v2824 = vsel %vm2558, %v2823, %v2819
    %v2825 = vlaneseq
    %v2826 = vshrl.u32 %v2825, 7
    %v2827 = vsub.s32 %v2560, %v2826
    %v2828 = vrot.slane %v587, %v2827
    %v2829 = vsel %vm2565, %v2828, %v2824
    %v2830 = vlaneseq
    %v2831 = vshrl.u32 %v2830, 7
    %v2832 = vsub.s32 %v2567, %v2831
    %v2833 = vrot.slane %v590, %v2832
    %v2834 = vsel %vm2572, %v2833, %v2829
    %v2835 = vlaneseq
    %v2836 = vshrl.u32 %v2835, 7
    %v2837 = vsub.s32 %v2574, %v2836
    %v2838 = vrot.slane %v593, %v2837
    %v2839 = vsel %vm2579, %v2838, %v2834
    %v2840 = vlaneseq
    %v2841 = vshrl.u32 %v2840, 7
    %v2842 = vsub.s32 %v2581, %v2841
    %v2843 = vrot.slane %v596, %v2842
    %v2844 = vsel %vm2586, %v2843, %v2839
    %v2845 = vlaneseq
    %v2846 = vshrl.u32 %v2845, 7
    %v2847 = vsub.s32 %v2588, %v2846
    %v2848 = vrot.slane %v599, %v2847
    %v2849 = vsel %vm2593, %v2848, %v2844
    %v2850 = vlaneseq
    %v2851 = vshrl.u32 %v2850, 7
    %v2852 = vsub.s32 %v2595, %v2851
    %v2853 = vrot.slane %v602, %v2852
    %v2854 = vsel %vm2600, %v2853, %v2849
    %v2855 = vlaneseq
    %v2856 = vshrl.u32 %v2855, 7
    %v2857 = vsub.s32 %v2602, %v2856
    %v2858 = vrot.slane %v605, %v2857
    %v2859 = vsel %vm2607, %v2858, %v2854
    %v2860 = vlaneseq
    %v2861 = vshrl.u32 %v2860, 7
    %v2862 = vsub.s32 %v2609, %v2861
    %v2863 = vrot.slane %v608, %v2862
    %v2864 = vsel %vm2614, %v2863, %v2859
    %v2865 = vlaneseq
    %v2866 = vshrl.u32 %v2865, 7
    %v2867 = vsub.s32 %v2616, %v2866
    %v2868 = vrot.slane %v611, %v2867
    %v2869 = vsel %vm2621, %v2868, %v2864
    %v2870 = vlaneseq
    %v2871 = vshrl.u32 %v2870, 7
    %v2872 = vsub.s32 %v2623, %v2871
    %v2873 = vrot.slane %v614, %v2872
    %v2874 = vsel %vm2628, %v2873, %v2869
    %v2875 = vlaneseq
    %v2876 = vshrl.u32 %v2875, 7
    %v2877 = vsub.s32 %v2630, %v2876
    %v2878 = vrot.slane %v617, %v2877
    %v2879 = vsel %vm2635, %v2878, %v2874
    %v2880 = vlaneseq
    %v2881 = vshrl.u32 %v2880, 7
    %v2882 = vsub.s32 %v2637, %v2881
    %v2883 = vrot.slane %v620, %v2882
    %v2884 = vsel %vm2642, %v2883, %v2879
    %v2885 = vlaneseq
    %v2886 = vshrl.u32 %v2885, 7
    %v2887 = vsub.s32 %v2644, %v2886
    %v2888 = vrot.slane %v623, %v2887
    %v2889 = vsel %vm2649, %v2888, %v2884
    %v2890 = vlaneseq
    %v2891 = vshrl.u32 %v2890, 7
    %v2892 = vsub.s32 %v2651, %v2891
    %v2893 = vrot.slane %v626, %v2892
    %v2894 = vsel %vm2656, %v2893, %v2889
    %v2895 = vlaneseq
    %v2896 = vshrl.u32 %v2895, 7
    %v2897 = vsub.s32 %v2548, %v2896
    %v2898 = vrot.slane %v629, %v2897
    %v2899 = vlaneseq
    %v2900 = vshrl.u32 %v2899, 7
    %v2901 = vsub.s32 %v2553, %v2900
    %v2902 = vrot.slane %v632, %v2901
    %v2903 = vsel %vm2558, %v2902, %v2898
    %v2904 = vlaneseq
    %v2905 = vshrl.u32 %v2904, 7
    %v2906 = vsub.s32 %v2560, %v2905
    %v2907 = vrot.slane %v635, %v2906
    %v2908 = vsel %vm2565, %v2907, %v2903
    %v2909 = vlaneseq
    %v2910 = vshrl.u32 %v2909, 7
    %v2911 = vsub.s32 %v2567, %v2910
    %v2912 = vrot.slane %v638, %v2911
    %v2913 = vsel %vm2572, %v2912, %v2908
    %v2914 = vlaneseq
    %v2915 = vshrl.u32 %v2914, 7
    %v2916 = vsub.s32 %v2574, %v2915
    %v2917 = vrot.slane %v641, %v2916
    %v2918 = vsel %vm2579, %v2917, %v2913
    %v2919 = vlaneseq
    %v2920 = vshrl.u32 %v2919, 7
    %v2921 = vsub.s32 %v2581, %v2920
    %v2922 = vrot.slane %v644, %v2921
    %v2923 = vsel %vm2586, %v2922, %v2918
    %v2924 = vlaneseq
    %v2925 = vshrl.u32 %v2924, 7
    %v2926 = vsub.s32 %v2588, %v2925
    %v2927 = vrot.slane %v647, %v2926
    %v2928 = vsel %vm2593, %v2927, %v2923
    %v2929 = vlaneseq
    %v2930 = vshrl.u32 %v2929, 7
    %v2931 = vsub.s32 %v2595, %v2930
    %v2932 = vrot.slane %v650, %v2931
    %v2933 = vsel %vm2600, %v2932, %v2928
    %v2934 = vlaneseq
    %v2935 = vshrl.u32 %v2934, 7
    %v2936 = vsub.s32 %v2602, %v2935
    %v2937 = vrot.slane %v653, %v2936
    %v2938 = vsel %vm2607, %v2937, %v2933
    %v2939 = vlaneseq
    %v2940 = vshrl.u32 %v2939, 7
    %v2941 = vsub.s32 %v2609, %v2940
    %v2942 = vrot.slane %v656, %v2941
    %v2943 = vsel %vm2614, %v2942, %v2938
    %v2944 = vlaneseq
    %v2945 = vshrl.u32 %v2944, 7
    %v2946 = vsub.s32 %v2616, %v2945
    %v2947 = vrot.slane %v659, %v2946
    %v2948 = vsel %vm2621, %v2947, %v2943
    %v2949 = vlaneseq
    %v2950 = vshrl.u32 %v2949, 7
    %v2951 = vsub.s32 %v2623, %v2950
    %v2952 = vrot.slane %v662, %v2951
    %v2953 = vsel %vm2628, %v2952, %v2948
    %v2954 = vlaneseq
    %v2955 = vshrl.u32 %v2954, 7
    %v2956 = vsub.s32 %v2630, %v2955
    %v2957 = vrot.slane %v665, %v2956
    %v2958 = vsel %vm2635, %v2957, %v2953
    %v2959 = vlaneseq
    %v2960 = vshrl.u32 %v2959, 7
    %v2961 = vsub.s32 %v2637, %v2960
    %v2962 = vrot.slane %v668, %v2961
    %v2963 = vsel %vm2642, %v2962, %v2958
    %v2964 = vlaneseq
    %v2965 = vshrl.u32 %v2964, 7
    %v2966 = vsub.s32 %v2644, %v2965
    %v2967 = vrot.slane %v671, %v2966
    %v2968 = vsel %vm2649, %v2967, %v2963
    %v2969 = vlaneseq
    %v2970 = vshrl.u32 %v2969, 7
    %v2971 = vsub.s32 %v2651, %v2970
    %v2972 = vrot.slane %v674, %v2971
    %v2973 = vsel %vm2656, %v2972, %v2968
    %v2974 = vlaneseq
    %v2975 = vshrl.u32 %v2974, 7
    %v2976 = vsub.s32 %v2548, %v2975
    %v2977 = vrot.slane %v677, %v2976
    %v2978 = vlaneseq
    %v2979 = vshrl.u32 %v2978, 7
    %v2980 = vsub.s32 %v2553, %v2979
    %v2981 = vrot.slane %v680, %v2980
    %v2982 = vsel %vm2558, %v2981, %v2977
    %v2983 = vlaneseq
    %v2984 = vshrl.u32 %v2983, 7
    %v2985 = vsub.s32 %v2560, %v2984
    %v2986 = vrot.slane %v683, %v2985
    %v2987 = vsel %vm2565, %v2986, %v2982
    %v2988 = vlaneseq
    %v2989 = vshrl.u32 %v2988, 7
    %v2990 = vsub.s32 %v2567, %v2989
    %v2991 = vrot.slane %v686, %v2990
    %v2992 = vsel %vm2572, %v2991, %v2987
    %v2993 = vlaneseq
    %v2994 = vshrl.u32 %v2993, 7
    %v2995 = vsub.s32 %v2574, %v2994
    %v2996 = vrot.slane %v689, %v2995
    %v2997 = vsel %vm2579, %v2996, %v2992
    %v2998 = vlaneseq
    %v2999 = vshrl.u32 %v2998, 7
    %v3000 = vsub.s32 %v2581, %v2999
    %v3001 = vrot.slane %v692, %v3000
    %v3002 = vsel %vm2586, %v3001, %v2997
    %v3003 = vlaneseq
    %v3004 = vshrl.u32 %v3003, 7
    %v3005 = vsub.s32 %v2588, %v3004
    %v3006 = vrot.slane %v695, %v3005
    %v3007 = vsel %vm2593, %v3006, %v3002
    %v3008 = vlaneseq
    %v3009 = vshrl.u32 %v3008, 7
    %v3010 = vsub.s32 %v2595, %v3009
    %v3011 = vrot.slane %v698, %v3010
    %v3012 = vsel %vm2600, %v3011, %v3007
    %v3013 = vlaneseq
    %v3014 = vshrl.u32 %v3013, 7
    %v3015 = vsub.s32 %v2602, %v3014
    %v3016 = vrot.slane %v701, %v3015
    %v3017 = vsel %vm2607, %v3016, %v3012
    %v3018 = vlaneseq
    %v3019 = vshrl.u32 %v3018, 7
    %v3020 = vsub.s32 %v2609, %v3019
    %v3021 = vrot.slane %v704, %v3020
    %v3022 = vsel %vm2614, %v3021, %v3017
    %v3023 = vlaneseq
    %v3024 = vshrl.u32 %v3023, 7
    %v3025 = vsub.s32 %v2616, %v3024
    %v3026 = vrot.slane %v707, %v3025
    %v3027 = vsel %vm2621, %v3026, %v3022
    %v3028 = vlaneseq
    %v3029 = vshrl.u32 %v3028, 7
    %v3030 = vsub.s32 %v2623, %v3029
    %v3031 = vrot.slane %v710, %v3030
    %v3032 = vsel %vm2628, %v3031, %v3027
    %v3033 = vlaneseq
    %v3034 = vshrl.u32 %v3033, 7
    %v3035 = vsub.s32 %v2630, %v3034
    %v3036 = vrot.slane %v713, %v3035
    %v3037 = vsel %vm2635, %v3036, %v3032
    %v3038 = vlaneseq
    %v3039 = vshrl.u32 %v3038, 7
    %v3040 = vsub.s32 %v2637, %v3039
    %v3041 = vrot.slane %v716, %v3040
    %v3042 = vsel %vm2642, %v3041, %v3037
    %v3043 = vlaneseq
    %v3044 = vshrl.u32 %v3043, 7
    %v3045 = vsub.s32 %v2644, %v3044
    %v3046 = vrot.slane %v719, %v3045
    %v3047 = vsel %vm2649, %v3046, %v3042
    %v3048 = vlaneseq
    %v3049 = vshrl.u32 %v3048, 7
    %v3050 = vsub.s32 %v2651, %v3049
    %v3051 = vrot.slane %v722, %v3050
    %v3052 = vsel %vm2656, %v3051, %v3047
    %v3053 = vlaneseq
    %v3054 = vshrl.u32 %v3053, 7
    %v3055 = vsub.s32 %v2548, %v3054
    %v3056 = vrot.slane %v725, %v3055
    %v3057 = vlaneseq
    %v3058 = vshrl.u32 %v3057, 7
    %v3059 = vsub.s32 %v2553, %v3058
    %v3060 = vrot.slane %v728, %v3059
    %v3061 = vsel %vm2558, %v3060, %v3056
    %v3062 = vlaneseq
    %v3063 = vshrl.u32 %v3062, 7
    %v3064 = vsub.s32 %v2560, %v3063
    %v3065 = vrot.slane %v731, %v3064
    %v3066 = vsel %vm2565, %v3065, %v3061
    %v3067 = vlaneseq
    %v3068 = vshrl.u32 %v3067, 7
    %v3069 = vsub.s32 %v2567, %v3068
    %v3070 = vrot.slane %v734, %v3069
    %v3071 = vsel %vm2572, %v3070, %v3066
    %v3072 = vlaneseq
    %v3073 = vshrl.u32 %v3072, 7
    %v3074 = vsub.s32 %v2574, %v3073
    %v3075 = vrot.slane %v737, %v3074
    %v3076 = vsel %vm2579, %v3075, %v3071
    %v3077 = vlaneseq
    %v3078 = vshrl.u32 %v3077, 7
    %v3079 = vsub.s32 %v2581, %v3078
    %v3080 = vrot.slane %v740, %v3079
    %v3081 = vsel %vm2586, %v3080, %v3076
    %v3082 = vlaneseq
    %v3083 = vshrl.u32 %v3082, 7
    %v3084 = vsub.s32 %v2588, %v3083
    %v3085 = vrot.slane %v743, %v3084
    %v3086 = vsel %vm2593, %v3085, %v3081
    %v3087 = vlaneseq
    %v3088 = vshrl.u32 %v3087, 7
    %v3089 = vsub.s32 %v2595, %v3088
    %v3090 = vrot.slane %v746, %v3089
    %v3091 = vsel %vm2600, %v3090, %v3086
    %v3092 = vlaneseq
    %v3093 = vshrl.u32 %v3092, 7
    %v3094 = vsub.s32 %v2602, %v3093
    %v3095 = vrot.slane %v749, %v3094
    %v3096 = vsel %vm2607, %v3095, %v3091
    %v3097 = vlaneseq
    %v3098 = vshrl.u32 %v3097, 7
    %v3099 = vsub.s32 %v2609, %v3098
    %v3100 = vrot.slane %v752, %v3099
    %v3101 = vsel %vm2614, %v3100, %v3096
    %v3102 = vlaneseq
    %v3103 = vshrl.u32 %v3102, 7
    %v3104 = vsub.s32 %v2616, %v3103
    %v3105 = vrot.slane %v755, %v3104
    %v3106 = vsel %vm2621, %v3105, %v3101
    %v3107 = vlaneseq
    %v3108 = vshrl.u32 %v3107, 7
    %v3109 = vsub.s32 %v2623, %v3108
    %v3110 = vrot.slane %v758, %v3109
    %v3111 = vsel %vm2628, %v3110, %v3106
    %v3112 = vlaneseq
    %v3113 = vshrl.u32 %v3112, 7
    %v3114 = vsub.s32 %v2630, %v3113
    %v3115 = vrot.slane %v761, %v3114
    %v3116 = vsel %vm2635, %v3115, %v3111
    %v3117 = vlaneseq
    %v3118 = vshrl.u32 %v3117, 7
    %v3119 = vsub.s32 %v2637, %v3118
    %v3120 = vrot.slane %v764, %v3119
    %v3121 = vsel %vm2642, %v3120, %v3116
    %v3122 = vlaneseq
    %v3123 = vshrl.u32 %v3122, 7
    %v3124 = vsub.s32 %v2644, %v3123
    %v3125 = vrot.slane %v767, %v3124
    %v3126 = vsel %vm2649, %v3125, %v3121
    %v3127 = vlaneseq
    %v3128 = vshrl.u32 %v3127, 7
    %v3129 = vsub.s32 %v2651, %v3128
    %v3130 = vrot.slane %v770, %v3129
    %v3131 = vsel %vm2656, %v3130, %v3126
    %v3132 = vlaneseq
    %v3133 = vshrl.u32 %v3132, 7
    %v3134 = vsub.s32 %v2548, %v3133
    %v3135 = vrot.slane %v773, %v3134
    %v3136 = vlaneseq
    %v3137 = vshrl.u32 %v3136, 7
    %v3138 = vsub.s32 %v2553, %v3137
    %v3139 = vrot.slane %v776, %v3138
    %v3140 = vsel %vm2558, %v3139, %v3135
    %v3141 = vlaneseq
    %v3142 = vshrl.u32 %v3141, 7
    %v3143 = vsub.s32 %v2560, %v3142
    %v3144 = vrot.slane %v779, %v3143
    %v3145 = vsel %vm2565, %v3144, %v3140
    %v3146 = vlaneseq
    %v3147 = vshrl.u32 %v3146, 7
    %v3148 = vsub.s32 %v2567, %v3147
    %v3149 = vrot.slane %v782, %v3148
    %v3150 = vsel %vm2572, %v3149, %v3145
    %v3151 = vlaneseq
    %v3152 = vshrl.u32 %v3151, 7
    %v3153 = vsub.s32 %v2574, %v3152
    %v3154 = vrot.slane %v785, %v3153
    %v3155 = vsel %vm2579, %v3154, %v3150
    %v3156 = vlaneseq
    %v3157 = vshrl.u32 %v3156, 7
    %v3158 = vsub.s32 %v2581, %v3157
    %v3159 = vrot.slane %v788, %v3158
    %v3160 = vsel %vm2586, %v3159, %v3155
    %v3161 = vlaneseq
    %v3162 = vshrl.u32 %v3161, 7
    %v3163 = vsub.s32 %v2588, %v3162
    %v3164 = vrot.slane %v791, %v3163
    %v3165 = vsel %vm2593, %v3164, %v3160
    %v3166 = vlaneseq
    %v3167 = vshrl.u32 %v3166, 7
    %v3168 = vsub.s32 %v2595, %v3167
    %v3169 = vrot.slane %v794, %v3168
    %v3170 = vsel %vm2600, %v3169, %v3165
    %v3171 = vlaneseq
    %v3172 = vshrl.u32 %v3171, 7
    %v3173 = vsub.s32 %v2602, %v3172
    %v3174 = vrot.slane %v797, %v3173
    %v3175 = vsel %vm2607, %v3174, %v3170
    %v3176 = vlaneseq
    %v3177 = vshrl.u32 %v3176, 7
    %v3178 = vsub.s32 %v2609, %v3177
    %v3179 = vrot.slane %v800, %v3178
    %v3180 = vsel %vm2614, %v3179, %v3175
    %v3181 = vlaneseq
    %v3182 = vshrl.u32 %v3181, 7
    %v3183 = vsub.s32 %v2616, %v3182
    %v3184 = vrot.slane %v803, %v3183
    %v3185 = vsel %vm2621, %v3184, %v3180
    %v3186 = vlaneseq
    %v3187 = vshrl.u32 %v3186, 7
    %v3188 = vsub.s32 %v2623, %v3187
    %v3189 = vrot.slane %v806, %v3188
    %v3190 = vsel %vm2628, %v3189, %v3185
    %v3191 = vlaneseq
    %v3192 = vshrl.u32 %v3191, 7
    %v3193 = vsub.s32 %v2630, %v3192
    %v3194 = vrot.slane %v809, %v3193
    %v3195 = vsel %vm2635, %v3194, %v3190
    %v3196 = vlaneseq
    %v3197 = vshrl.u32 %v3196, 7
    %v3198 = vsub.s32 %v2637, %v3197
    %v3199 = vrot.slane %v812, %v3198
    %v3200 = vsel %vm2642, %v3199, %v3195
    %v3201 = vlaneseq
    %v3202 = vshrl.u32 %v3201, 7
    %v3203 = vsub.s32 %v2644, %v3202
    %v3204 = vrot.slane %v815, %v3203
    %v3205 = vsel %vm2649, %v3204, %v3200
    %v3206 = vlaneseq
    %v3207 = vshrl.u32 %v3206, 7
    %v3208 = vsub.s32 %v2651, %v3207
    %v3209 = vrot.slane %v818, %v3208
    %v3210 = vsel %vm2656, %v3209, %v3205
    %v3211 = vlaneseq
    %v3212 = vshrl.u32 %v3211, 7
    %v3213 = vsub.s32 %v2548, %v3212
    %v3214 = vrot.slane %v821, %v3213
    %v3215 = vlaneseq
    %v3216 = vshrl.u32 %v3215, 7
    %v3217 = vsub.s32 %v2553, %v3216
    %v3218 = vrot.slane %v824, %v3217
    %v3219 = vsel %vm2558, %v3218, %v3214
    %v3220 = vlaneseq
    %v3221 = vshrl.u32 %v3220, 7
    %v3222 = vsub.s32 %v2560, %v3221
    %v3223 = vrot.slane %v827, %v3222
    %v3224 = vsel %vm2565, %v3223, %v3219
    %v3225 = vlaneseq
    %v3226 = vshrl.u32 %v3225, 7
    %v3227 = vsub.s32 %v2567, %v3226
    %v3228 = vrot.slane %v830, %v3227
    %v3229 = vsel %vm2572, %v3228, %v3224
    %v3230 = vlaneseq
    %v3231 = vshrl.u32 %v3230, 7
    %v3232 = vsub.s32 %v2574, %v3231
    %v3233 = vrot.slane %v833, %v3232
    %v3234 = vsel %vm2579, %v3233, %v3229
    %v3235 = vlaneseq
    %v3236 = vshrl.u32 %v3235, 7
    %v3237 = vsub.s32 %v2581, %v3236
    %v3238 = vrot.slane %v836, %v3237
    %v3239 = vsel %vm2586, %v3238, %v3234
    %v3240 = vlaneseq
    %v3241 = vshrl.u32 %v3240, 7
    %v3242 = vsub.s32 %v2588, %v3241
    %v3243 = vrot.slane %v839, %v3242
    %v3244 = vsel %vm2593, %v3243, %v3239
    %v3245 = vlaneseq
    %v3246 = vshrl.u32 %v3245, 7
    %v3247 = vsub.s32 %v2595, %v3246
    %v3248 = vrot.slane %v842, %v3247
    %v3249 = vsel %vm2600, %v3248, %v3244
    %v3250 = vlaneseq
    %v3251 = vshrl.u32 %v3250, 7
    %v3252 = vsub.s32 %v2602, %v3251
    %v3253 = vrot.slane %v845, %v3252
    %v3254 = vsel %vm2607, %v3253, %v3249
    %v3255 = vlaneseq
    %v3256 = vshrl.u32 %v3255, 7
    %v3257 = vsub.s32 %v2609, %v3256
    %v3258 = vrot.slane %v848, %v3257
    %v3259 = vsel %vm2614, %v3258, %v3254
    %v3260 = vlaneseq
    %v3261 = vshrl.u32 %v3260, 7
    %v3262 = vsub.s32 %v2616, %v3261
    %v3263 = vrot.slane %v851, %v3262
    %v3264 = vsel %vm2621, %v3263, %v3259
    %v3265 = vlaneseq
    %v3266 = vshrl.u32 %v3265, 7
    %v3267 = vsub.s32 %v2623, %v3266
    %v3268 = vrot.slane %v854, %v3267
    %v3269 = vsel %vm2628, %v3268, %v3264
    %v3270 = vlaneseq
    %v3271 = vshrl.u32 %v3270, 7
    %v3272 = vsub.s32 %v2630, %v3271
    %v3273 = vrot.slane %v857, %v3272
    %v3274 = vsel %vm2635, %v3273, %v3269
    %v3275 = vlaneseq
    %v3276 = vshrl.u32 %v3275, 7
    %v3277 = vsub.s32 %v2637, %v3276
    %v3278 = vrot.slane %v860, %v3277
    %v3279 = vsel %vm2642, %v3278, %v3274
    %v3280 = vlaneseq
    %v3281 = vshrl.u32 %v3280, 7
    %v3282 = vsub.s32 %v2644, %v3281
    %v3283 = vrot.slane %v863, %v3282
    %v3284 = vsel %vm2649, %v3283, %v3279
    %v3285 = vlaneseq
    %v3286 = vshrl.u32 %v3285, 7
    %v3287 = vsub.s32 %v2651, %v3286
    %v3288 = vrot.slane %v866, %v3287
    %v3289 = vsel %vm2656, %v3288, %v3284
    %v3290 = vlaneseq
    %v3291 = vshrl.u32 %v3290, 7
    %v3292 = vsub.s32 %v2548, %v3291
    %v3293 = vrot.slane %v869, %v3292
    %v3294 = vlaneseq
    %v3295 = vshrl.u32 %v3294, 7
    %v3296 = vsub.s32 %v2553, %v3295
    %v3297 = vrot.slane %v872, %v3296
    %v3298 = vsel %vm2558, %v3297, %v3293
    %v3299 = vlaneseq
    %v3300 = vshrl.u32 %v3299, 7
    %v3301 = vsub.s32 %v2560, %v3300
    %v3302 = vrot.slane %v875, %v3301
    %v3303 = vsel %vm2565, %v3302, %v3298
    %v3304 = vlaneseq
    %v3305 = vshrl.u32 %v3304, 7
    %v3306 = vsub.s32 %v2567, %v3305
    %v3307 = vrot.slane %v878, %v3306
    %v3308 = vsel %vm2572, %v3307, %v3303
    %v3309 = vlaneseq
    %v3310 = vshrl.u32 %v3309, 7
    %v3311 = vsub.s32 %v2574, %v3310
    %v3312 = vrot.slane %v881, %v3311
    %v3313 = vsel %vm2579, %v3312, %v3308
    %v3314 = vlaneseq
    %v3315 = vshrl.u32 %v3314, 7
    %v3316 = vsub.s32 %v2581, %v3315
    %v3317 = vrot.slane %v884, %v3316
    %v3318 = vsel %vm2586, %v3317, %v3313
    %v3319 = vlaneseq
    %v3320 = vshrl.u32 %v3319, 7
    %v3321 = vsub.s32 %v2588, %v3320
    %v3322 = vrot.slane %v887, %v3321
    %v3323 = vsel %vm2593, %v3322, %v3318
    %v3324 = vlaneseq
    %v3325 = vshrl.u32 %v3324, 7
    %v3326 = vsub.s32 %v2595, %v3325
    %v3327 = vrot.slane %v890, %v3326
    %v3328 = vsel %vm2600, %v3327, %v3323
    %v3329 = vlaneseq
    %v3330 = vshrl.u32 %v3329, 7
    %v3331 = vsub.s32 %v2602, %v3330
    %v3332 = vrot.slane %v893, %v3331
    %v3333 = vsel %vm2607, %v3332, %v3328
    %v3334 = vlaneseq
    %v3335 = vshrl.u32 %v3334, 7
    %v3336 = vsub.s32 %v2609, %v3335
    %v3337 = vrot.slane %v896, %v3336
    %v3338 = vsel %vm2614, %v3337, %v3333
    %v3339 = vlaneseq
    %v3340 = vshrl.u32 %v3339, 7
    %v3341 = vsub.s32 %v2616, %v3340
    %v3342 = vrot.slane %v899, %v3341
    %v3343 = vsel %vm2621, %v3342, %v3338
    %v3344 = vlaneseq
    %v3345 = vshrl.u32 %v3344, 7
    %v3346 = vsub.s32 %v2623, %v3345
    %v3347 = vrot.slane %v902, %v3346
    %v3348 = vsel %vm2628, %v3347, %v3343
    %v3349 = vlaneseq
    %v3350 = vshrl.u32 %v3349, 7
    %v3351 = vsub.s32 %v2630, %v3350
    %v3352 = vrot.slane %v905, %v3351
    %v3353 = vsel %vm2635, %v3352, %v3348
    %v3354 = vlaneseq
    %v3355 = vshrl.u32 %v3354, 7
    %v3356 = vsub.s32 %v2637, %v3355
    %v3357 = vrot.slane %v908, %v3356
    %v3358 = vsel %vm2642, %v3357, %v3353
    %v3359 = vlaneseq
    %v3360 = vshrl.u32 %v3359, 7
    %v3361 = vsub.s32 %v2644, %v3360
    %v3362 = vrot.slane %v911, %v3361
    %v3363 = vsel %vm2649, %v3362, %v3358
    %v3364 = vlaneseq
    %v3365 = vshrl.u32 %v3364, 7
    %v3366 = vsub.s32 %v2651, %v3365
    %v3367 = vrot.slane %v914, %v3366
    %v3368 = vsel %vm2656, %v3367, %v3363
    %v3369 = vlaneseq
    %v3370 = vshrl.u32 %v3369, 7
    %v3371 = vsub.s32 %v2548, %v3370
    %v3372 = vrot.slane %v917, %v3371
    %v3373 = vlaneseq
    %v3374 = vshrl.u32 %v3373, 7
    %v3375 = vsub.s32 %v2553, %v3374
    %v3376 = vrot.slane %v920, %v3375
    %v3377 = vsel %vm2558, %v3376, %v3372
    %v3378 = vlaneseq
    %v3379 = vshrl.u32 %v3378, 7
    %v3380 = vsub.s32 %v2560, %v3379
    %v3381 = vrot.slane %v923, %v3380
    %v3382 = vsel %vm2565, %v3381, %v3377
    %v3383 = vlaneseq
    %v3384 = vshrl.u32 %v3383, 7
    %v3385 = vsub.s32 %v2567, %v3384
    %v3386 = vrot.slane %v926, %v3385
    %v3387 = vsel %vm2572, %v3386, %v3382
    %v3388 = vlaneseq
    %v3389 = vshrl.u32 %v3388, 7
    %v3390 = vsub.s32 %v2574, %v3389
    %v3391 = vrot.slane %v929, %v3390
    %v3392 = vsel %vm2579, %v3391, %v3387
    %v3393 = vlaneseq
    %v3394 = vshrl.u32 %v3393, 7
    %v3395 = vsub.s32 %v2581, %v3394
    %v3396 = vrot.slane %v932, %v3395
    %v3397 = vsel %vm2586, %v3396, %v3392
    %v3398 = vlaneseq
    %v3399 = vshrl.u32 %v3398, 7
    %v3400 = vsub.s32 %v2588, %v3399
    %v3401 = vrot.slane %v935, %v3400
    %v3402 = vsel %vm2593, %v3401, %v3397
    %v3403 = vlaneseq
    %v3404 = vshrl.u32 %v3403, 7
    %v3405 = vsub.s32 %v2595, %v3404
    %v3406 = vrot.slane %v938, %v3405
    %v3407 = vsel %vm2600, %v3406, %v3402
    %v3408 = vlaneseq
    %v3409 = vshrl.u32 %v3408, 7
    %v3410 = vsub.s32 %v2602, %v3409
    %v3411 = vrot.slane %v941, %v3410
    %v3412 = vsel %vm2607, %v3411, %v3407
    %v3413 = vlaneseq
    %v3414 = vshrl.u32 %v3413, 7
    %v3415 = vsub.s32 %v2609, %v3414
    %v3416 = vrot.slane %v944, %v3415
    %v3417 = vsel %vm2614, %v3416, %v3412
    %v3418 = vlaneseq
    %v3419 = vshrl.u32 %v3418, 7
    %v3420 = vsub.s32 %v2616, %v3419
    %v3421 = vrot.slane %v947, %v3420
    %v3422 = vsel %vm2621, %v3421, %v3417
    %v3423 = vlaneseq
    %v3424 = vshrl.u32 %v3423, 7
    %v3425 = vsub.s32 %v2623, %v3424
    %v3426 = vrot.slane %v950, %v3425
    %v3427 = vsel %vm2628, %v3426, %v3422
    %v3428 = vlaneseq
    %v3429 = vshrl.u32 %v3428, 7
    %v3430 = vsub.s32 %v2630, %v3429
    %v3431 = vrot.slane %v953, %v3430
    %v3432 = vsel %vm2635, %v3431, %v3427
    %v3433 = vlaneseq
    %v3434 = vshrl.u32 %v3433, 7
    %v3435 = vsub.s32 %v2637, %v3434
    %v3436 = vrot.slane %v956, %v3435
    %v3437 = vsel %vm2642, %v3436, %v3432
    %v3438 = vlaneseq
    %v3439 = vshrl.u32 %v3438, 7
    %v3440 = vsub.s32 %v2644, %v3439
    %v3441 = vrot.slane %v959, %v3440
    %v3442 = vsel %vm2649, %v3441, %v3437
    %v3443 = vlaneseq
    %v3444 = vshrl.u32 %v3443, 7
    %v3445 = vsub.s32 %v2651, %v3444
    %v3446 = vrot.slane %v962, %v3445
    %v3447 = vsel %vm2656, %v3446, %v3442
    %v3448 = vlaneseq
    %v3449 = vshrl.u32 %v3448, 7
    %v3450 = vsub.s32 %v2548, %v3449
    %v3451 = vrot.slane %v965, %v3450
    %v3452 = vlaneseq
    %v3453 = vshrl.u32 %v3452, 7
    %v3454 = vsub.s32 %v2553, %v3453
    %v3455 = vrot.slane %v968, %v3454
    %v3456 = vsel %vm2558, %v3455, %v3451
    %v3457 = vlaneseq
    %v3458 = vshrl.u32 %v3457, 7
    %v3459 = vsub.s32 %v2560, %v3458
    %v3460 = vrot.slane %v971, %v3459
    %v3461 = vsel %vm2565, %v3460, %v3456
    %v3462 = vlaneseq
    %v3463 = vshrl.u32 %v3462, 7
    %v3464 = vsub.s32 %v2567, %v3463
    %v3465 = vrot.slane %v974, %v3464
    %v3466 = vsel %vm2572, %v3465, %v3461
    %v3467 = vlaneseq
    %v3468 = vshrl.u32 %v3467, 7
    %v3469 = vsub.s32 %v2574, %v3468
    %v3470 = vrot.slane %v977, %v3469
    %v3471 = vsel %vm2579, %v3470, %v3466
    %v3472 = vlaneseq
    %v3473 = vshrl.u32 %v3472, 7
    %v3474 = vsub.s32 %v2581, %v3473
    %v3475 = vrot.slane %v980, %v3474
    %v3476 = vsel %vm2586, %v3475, %v3471
    %v3477 = vlaneseq
    %v3478 = vshrl.u32 %v3477, 7
    %v3479 = vsub.s32 %v2588, %v3478
    %v3480 = vrot.slane %v983, %v3479
    %v3481 = vsel %vm2593, %v3480, %v3476
    %v3482 = vlaneseq
    %v3483 = vshrl.u32 %v3482, 7
    %v3484 = vsub.s32 %v2595, %v3483
    %v3485 = vrot.slane %v986, %v3484
    %v3486 = vsel %vm2600, %v3485, %v3481
    %v3487 = vlaneseq
    %v3488 = vshrl.u32 %v3487, 7
    %v3489 = vsub.s32 %v2602, %v3488
    %v3490 = vrot.slane %v989, %v3489
    %v3491 = vsel %vm2607, %v3490, %v3486
    %v3492 = vlaneseq
    %v3493 = vshrl.u32 %v3492, 7
    %v3494 = vsub.s32 %v2609, %v3493
    %v3495 = vrot.slane %v992, %v3494
    %v3496 = vsel %vm2614, %v3495, %v3491
    %v3497 = vlaneseq
    %v3498 = vshrl.u32 %v3497, 7
    %v3499 = vsub.s32 %v2616, %v3498
    %v3500 = vrot.slane %v995, %v3499
    %v3501 = vsel %vm2621, %v3500, %v3496
    %v3502 = vlaneseq
    %v3503 = vshrl.u32 %v3502, 7
    %v3504 = vsub.s32 %v2623, %v3503
    %v3505 = vrot.slane %v998, %v3504
    %v3506 = vsel %vm2628, %v3505, %v3501
    %v3507 = vlaneseq
    %v3508 = vshrl.u32 %v3507, 7
    %v3509 = vsub.s32 %v2630, %v3508
    %v3510 = vrot.slane %v1001, %v3509
    %v3511 = vsel %vm2635, %v3510, %v3506
    %v3512 = vlaneseq
    %v3513 = vshrl.u32 %v3512, 7
    %v3514 = vsub.s32 %v2637, %v3513
    %v3515 = vrot.slane %v1004, %v3514
    %v3516 = vsel %vm2642, %v3515, %v3511
    %v3517 = vlaneseq
    %v3518 = vshrl.u32 %v3517, 7
    %v3519 = vsub.s32 %v2644, %v3518
    %v3520 = vrot.slane %v1007, %v3519
    %v3521 = vsel %vm2649, %v3520, %v3516
    %v3522 = vlaneseq
    %v3523 = vshrl.u32 %v3522, 7
    %v3524 = vsub.s32 %v2651, %v3523
    %v3525 = vrot.slane %v1010, %v3524
    %v3526 = vsel %vm2656, %v3525, %v3521
    %vm3527 = vcmask 1041409
    %v3528 = vsel %vm3527, %v3131, %v2657
    %v3529 = vsel %vm3527, %v3210, %v2736
    %v3530 = vsel %vm3527, %v3289, %v2815
    %v3531 = vsel %vm3527, %v3368, %v2894
    %v3532 = vsel %vm3527, %v3447, %v2973
    %v3533 = vsel %vm3527, %v3526, %v3052
    %v3732 = vlaneseq
    %v3733 = vshrl.u32 %v3732, 7
    %v3734 = vsub.s32 %v2548, %v3733
    %v3735 = vrot.slane %v1781, %v3734
    %v3736 = vlaneseq
    %v3737 = vshrl.u32 %v3736, 7
    %v3738 = vsub.s32 %v2553, %v3737
    %v3739 = vrot.slane %v1784, %v3738
    %v3740 = vsel %vm2558, %v3739, %v3735
    %v3741 = vlaneseq
    %v3742 = vshrl.u32 %v3741, 7
    %v3743 = vsub.s32 %v2560, %v3742
    %v3744 = vrot.slane %v1787, %v3743
    %v3745 = vsel %vm2565, %v3744, %v3740
    %v3746 = vlaneseq
    %v3747 = vshrl.u32 %v3746, 7
    %v3748 = vsub.s32 %v2567, %v3747
    %v3749 = vrot.slane %v1790, %v3748
    %v3750 = vsel %vm2572, %v3749, %v3745
    %v3751 = vlaneseq
    %v3752 = vshrl.u32 %v3751, 7
    %v3753 = vsub.s32 %v2574, %v3752
    %v3754 = vrot.slane %v1793, %v3753
    %v3755 = vsel %vm2579, %v3754, %v3750
    %v3756 = vlaneseq
    %v3757 = vshrl.u32 %v3756, 7
    %v3758 = vsub.s32 %v2581, %v3757
    %v3759 = vrot.slane %v1796, %v3758
    %v3760 = vsel %vm2586, %v3759, %v3755
    %v3761 = vlaneseq
    %v3762 = vshrl.u32 %v3761, 7
    %v3763 = vsub.s32 %v2588, %v3762
    %v3764 = vrot.slane %v1799, %v3763
    %v3765 = vsel %vm2593, %v3764, %v3760
    %v3766 = vlaneseq
    %v3767 = vshrl.u32 %v3766, 7
    %v3768 = vsub.s32 %v2595, %v3767
    %v3769 = vrot.slane %v1802, %v3768
    %v3770 = vsel %vm2600, %v3769, %v3765
    %v3771 = vlaneseq
    %v3772 = vshrl.u32 %v3771, 7
    %v3773 = vsub.s32 %v2602, %v3772
    %v3774 = vrot.slane %v1805, %v3773
    %v3775 = vsel %vm2607, %v3774, %v3770
    %v3776 = vlaneseq
    %v3777 = vshrl.u32 %v3776, 7
    %v3778 = vsub.s32 %v2609, %v3777
    %v3779 = vrot.slane %v1808, %v3778
    %v3780 = vsel %vm2614, %v3779, %v3775
    %v3781 = vlaneseq
    %v3782 = vshrl.u32 %v3781, 7
    %v3783 = vsub.s32 %v2616, %v3782
    %v3784 = vrot.slane %v1811, %v3783
    %v3785 = vsel %vm2621, %v3784, %v3780
    %v3786 = vlaneseq
    %v3787 = vshrl.u32 %v3786, 7
    %v3788 = vsub.s32 %v2623, %v3787
    %v3789 = vrot.slane %v1814, %v3788
    %v3790 = vsel %vm2628, %v3789, %v3785
    %v3791 = vlaneseq
    %v3792 = vshrl.u32 %v3791, 7
    %v3793 = vsub.s32 %v2630, %v3792
    %v3794 = vrot.slane %v1817, %v3793
    %v3795 = vsel %vm2635, %v3794, %v3790
    %v3796 = vlaneseq
    %v3797 = vshrl.u32 %v3796, 7
    %v3798 = vsub.s32 %v2637, %v3797
    %v3799 = vrot.slane %v1820, %v3798
    %v3800 = vsel %vm2642, %v3799, %v3795
    %v3801 = vlaneseq
    %v3802 = vshrl.u32 %v3801, 7
    %v3803 = vsub.s32 %v2644, %v3802
    %v3804 = vrot.slane %v1823, %v3803
    %v3805 = vsel %vm2649, %v3804, %v3800
    %v3806 = vlaneseq
    %v3807 = vshrl.u32 %v3806, 7
    %v3808 = vsub.s32 %v2651, %v3807
    %v3809 = vrot.slane %v1826, %v3808
    %v3810 = vsel %vm2656, %v3809, %v3805
    %v3811 = vlaneseq
    %v3812 = vshrl.u32 %v3811, 7
    %v3813 = vsub.s32 %v2548, %v3812
    %v3814 = vrot.slane %v1829, %v3813
    %v3815 = vlaneseq
    %v3816 = vshrl.u32 %v3815, 7
    %v3817 = vsub.s32 %v2553, %v3816
    %v3818 = vrot.slane %v1832, %v3817
    %v3819 = vsel %vm2558, %v3818, %v3814
    %v3820 = vlaneseq
    %v3821 = vshrl.u32 %v3820, 7
    %v3822 = vsub.s32 %v2560, %v3821
    %v3823 = vrot.slane %v1835, %v3822
    %v3824 = vsel %vm2565, %v3823, %v3819
    %v3825 = vlaneseq
    %v3826 = vshrl.u32 %v3825, 7
    %v3827 = vsub.s32 %v2567, %v3826
    %v3828 = vrot.slane %v1838, %v3827
    %v3829 = vsel %vm2572, %v3828, %v3824
    %v3830 = vlaneseq
    %v3831 = vshrl.u32 %v3830, 7
    %v3832 = vsub.s32 %v2574, %v3831
    %v3833 = vrot.slane %v1841, %v3832
    %v3834 = vsel %vm2579, %v3833, %v3829
    %v3835 = vlaneseq
    %v3836 = vshrl.u32 %v3835, 7
    %v3837 = vsub.s32 %v2581, %v3836
    %v3838 = vrot.slane %v1844, %v3837
    %v3839 = vsel %vm2586, %v3838, %v3834
    %v3840 = vlaneseq
    %v3841 = vshrl.u32 %v3840, 7
    %v3842 = vsub.s32 %v2588, %v3841
    %v3843 = vrot.slane %v1847, %v3842
    %v3844 = vsel %vm2593, %v3843, %v3839
    %v3845 = vlaneseq
    %v3846 = vshrl.u32 %v3845, 7
    %v3847 = vsub.s32 %v2595, %v3846
    %v3848 = vrot.slane %v1850, %v3847
    %v3849 = vsel %vm2600, %v3848, %v3844
    %v3850 = vlaneseq
    %v3851 = vshrl.u32 %v3850, 7
    %v3852 = vsub.s32 %v2602, %v3851
    %v3853 = vrot.slane %v1853, %v3852
    %v3854 = vsel %vm2607, %v3853, %v3849
    %v3855 = vlaneseq
    %v3856 = vshrl.u32 %v3855, 7
    %v3857 = vsub.s32 %v2609, %v3856
    %v3858 = vrot.slane %v1856, %v3857
    %v3859 = vsel %vm2614, %v3858, %v3854
    %v3860 = vlaneseq
    %v3861 = vshrl.u32 %v3860, 7
    %v3862 = vsub.s32 %v2616, %v3861
    %v3863 = vrot.slane %v1859, %v3862
    %v3864 = vsel %vm2621, %v3863, %v3859
    %v3865 = vlaneseq
    %v3866 = vshrl.u32 %v3865, 7
    %v3867 = vsub.s32 %v2623, %v3866
    %v3868 = vrot.slane %v1862, %v3867
    %v3869 = vsel %vm2628, %v3868, %v3864
    %v3870 = vlaneseq
    %v3871 = vshrl.u32 %v3870, 7
    %v3872 = vsub.s32 %v2630, %v3871
    %v3873 = vrot.slane %v1865, %v3872
    %v3874 = vsel %vm2635, %v3873, %v3869
    %v3875 = vlaneseq
    %v3876 = vshrl.u32 %v3875, 7
    %v3877 = vsub.s32 %v2637, %v3876
    %v3878 = vrot.slane %v1868, %v3877
    %v3879 = vsel %vm2642, %v3878, %v3874
    %v3880 = vlaneseq
    %v3881 = vshrl.u32 %v3880, 7
    %v3882 = vsub.s32 %v2644, %v3881
    %v3883 = vrot.slane %v1871, %v3882
    %v3884 = vsel %vm2649, %v3883, %v3879
    %v3885 = vlaneseq
    %v3886 = vshrl.u32 %v3885, 7
    %v3887 = vsub.s32 %v2651, %v3886
    %v3888 = vrot.slane %v1874, %v3887
    %v3889 = vsel %vm2656, %v3888, %v3884
    %v3890 = vlaneseq
    %v3891 = vshrl.u32 %v3890, 7
    %v3892 = vsub.s32 %v2548, %v3891
    %v3893 = vrot.slane %v1877, %v3892
    %v3894 = vlaneseq
    %v3895 = vshrl.u32 %v3894, 7
    %v3896 = vsub.s32 %v2553, %v3895
    %v3897 = vrot.slane %v1880, %v3896
    %v3898 = vsel %vm2558, %v3897, %v3893
    %v3899 = vlaneseq
    %v3900 = vshrl.u32 %v3899, 7
    %v3901 = vsub.s32 %v2560, %v3900
    %v3902 = vrot.slane %v1883, %v3901
    %v3903 = vsel %vm2565, %v3902, %v3898
    %v3904 = vlaneseq
    %v3905 = vshrl.u32 %v3904, 7
    %v3906 = vsub.s32 %v2567, %v3905
    %v3907 = vrot.slane %v1886, %v3906
    %v3908 = vsel %vm2572, %v3907, %v3903
    %v3909 = vlaneseq
    %v3910 = vshrl.u32 %v3909, 7
    %v3911 = vsub.s32 %v2574, %v3910
    %v3912 = vrot.slane %v1889, %v3911
    %v3913 = vsel %vm2579, %v3912, %v3908
    %v3914 = vlaneseq
    %v3915 = vshrl.u32 %v3914, 7
    %v3916 = vsub.s32 %v2581, %v3915
    %v3917 = vrot.slane %v1892, %v3916
    %v3918 = vsel %vm2586, %v3917, %v3913
    %v3919 = vlaneseq
    %v3920 = vshrl.u32 %v3919, 7
    %v3921 = vsub.s32 %v2588, %v3920
    %v3922 = vrot.slane %v1895, %v3921
    %v3923 = vsel %vm2593, %v3922, %v3918
    %v3924 = vlaneseq
    %v3925 = vshrl.u32 %v3924, 7
    %v3926 = vsub.s32 %v2595, %v3925
    %v3927 = vrot.slane %v1898, %v3926
    %v3928 = vsel %vm2600, %v3927, %v3923
    %v3929 = vlaneseq
    %v3930 = vshrl.u32 %v3929, 7
    %v3931 = vsub.s32 %v2602, %v3930
    %v3932 = vrot.slane %v1901, %v3931
    %v3933 = vsel %vm2607, %v3932, %v3928
    %v3934 = vlaneseq
    %v3935 = vshrl.u32 %v3934, 7
    %v3936 = vsub.s32 %v2609, %v3935
    %v3937 = vrot.slane %v1904, %v3936
    %v3938 = vsel %vm2614, %v3937, %v3933
    %v3939 = vlaneseq
    %v3940 = vshrl.u32 %v3939, 7
    %v3941 = vsub.s32 %v2616, %v3940
    %v3942 = vrot.slane %v1907, %v3941
    %v3943 = vsel %vm2621, %v3942, %v3938
    %v3944 = vlaneseq
    %v3945 = vshrl.u32 %v3944, 7
    %v3946 = vsub.s32 %v2623, %v3945
    %v3947 = vrot.slane %v1910, %v3946
    %v3948 = vsel %vm2628, %v3947, %v3943
    %v3949 = vlaneseq
    %v3950 = vshrl.u32 %v3949, 7
    %v3951 = vsub.s32 %v2630, %v3950
    %v3952 = vrot.slane %v1913, %v3951
    %v3953 = vsel %vm2635, %v3952, %v3948
    %v3954 = vlaneseq
    %v3955 = vshrl.u32 %v3954, 7
    %v3956 = vsub.s32 %v2637, %v3955
    %v3957 = vrot.slane %v1916, %v3956
    %v3958 = vsel %vm2642, %v3957, %v3953
    %v3959 = vlaneseq
    %v3960 = vshrl.u32 %v3959, 7
    %v3961 = vsub.s32 %v2644, %v3960
    %v3962 = vrot.slane %v1919, %v3961
    %v3963 = vsel %vm2649, %v3962, %v3958
    %v3964 = vlaneseq
    %v3965 = vshrl.u32 %v3964, 7
    %v3966 = vsub.s32 %v2651, %v3965
    %v3967 = vrot.slane %v1922, %v3966
    %v3968 = vsel %vm2656, %v3967, %v3963
    %v3969 = vlaneseq
    %v3970 = vshrl.u32 %v3969, 7
    %v3971 = vsub.s32 %v2548, %v3970
    %v3972 = vrot.slane %v1925, %v3971
    %v3973 = vlaneseq
    %v3974 = vshrl.u32 %v3973, 7
    %v3975 = vsub.s32 %v2553, %v3974
    %v3976 = vrot.slane %v1928, %v3975
    %v3977 = vsel %vm2558, %v3976, %v3972
    %v3978 = vlaneseq
    %v3979 = vshrl.u32 %v3978, 7
    %v3980 = vsub.s32 %v2560, %v3979
    %v3981 = vrot.slane %v1931, %v3980
    %v3982 = vsel %vm2565, %v3981, %v3977
    %v3983 = vlaneseq
    %v3984 = vshrl.u32 %v3983, 7
    %v3985 = vsub.s32 %v2567, %v3984
    %v3986 = vrot.slane %v1934, %v3985
    %v3987 = vsel %vm2572, %v3986, %v3982
    %v3988 = vlaneseq
    %v3989 = vshrl.u32 %v3988, 7
    %v3990 = vsub.s32 %v2574, %v3989
    %v3991 = vrot.slane %v1937, %v3990
    %v3992 = vsel %vm2579, %v3991, %v3987
    %v3993 = vlaneseq
    %v3994 = vshrl.u32 %v3993, 7
    %v3995 = vsub.s32 %v2581, %v3994
    %v3996 = vrot.slane %v1940, %v3995
    %v3997 = vsel %vm2586, %v3996, %v3992
    %v3998 = vlaneseq
    %v3999 = vshrl.u32 %v3998, 7
    %v4000 = vsub.s32 %v2588, %v3999
    %v4001 = vrot.slane %v1943, %v4000
    %v4002 = vsel %vm2593, %v4001, %v3997
    %v4003 = vlaneseq
    %v4004 = vshrl.u32 %v4003, 7
    %v4005 = vsub.s32 %v2595, %v4004
    %v4006 = vrot.slane %v1946, %v4005
    %v4007 = vsel %vm2600, %v4006, %v4002
    %v4008 = vlaneseq
    %v4009 = vshrl.u32 %v4008, 7
    %v4010 = vsub.s32 %v2602, %v4009
    %v4011 = vrot.slane %v1949, %v4010
    %v4012 = vsel %vm2607, %v4011, %v4007
    %v4013 = vlaneseq
    %v4014 = vshrl.u32 %v4013, 7
    %v4015 = vsub.s32 %v2609, %v4014
    %v4016 = vrot.slane %v1952, %v4015
    %v4017 = vsel %vm2614, %v4016, %v4012
    %v4018 = vlaneseq
    %v4019 = vshrl.u32 %v4018, 7
    %v4020 = vsub.s32 %v2616, %v4019
    %v4021 = vrot.slane %v1955, %v4020
    %v4022 = vsel %vm2621, %v4021, %v4017
    %v4023 = vlaneseq
    %v4024 = vshrl.u32 %v4023, 7
    %v4025 = vsub.s32 %v2623, %v4024
    %v4026 = vrot.slane %v1958, %v4025
    %v4027 = vsel %vm2628, %v4026, %v4022
    %v4028 = vlaneseq
    %v4029 = vshrl.u32 %v4028, 7
    %v4030 = vsub.s32 %v2630, %v4029
    %v4031 = vrot.slane %v1961, %v4030
    %v4032 = vsel %vm2635, %v4031, %v4027
    %v4033 = vlaneseq
    %v4034 = vshrl.u32 %v4033, 7
    %v4035 = vsub.s32 %v2637, %v4034
    %v4036 = vrot.slane %v1964, %v4035
    %v4037 = vsel %vm2642, %v4036, %v4032
    %v4038 = vlaneseq
    %v4039 = vshrl.u32 %v4038, 7
    %v4040 = vsub.s32 %v2644, %v4039
    %v4041 = vrot.slane %v1967, %v4040
    %v4042 = vsel %vm2649, %v4041, %v4037
    %v4043 = vlaneseq
    %v4044 = vshrl.u32 %v4043, 7
    %v4045 = vsub.s32 %v2651, %v4044
    %v4046 = vrot.slane %v1970, %v4045
    %v4047 = vsel %vm2656, %v4046, %v4042
    %v4048 = vlaneseq
    %v4049 = vshrl.u32 %v4048, 7
    %v4050 = vsub.s32 %v2548, %v4049
    %v4051 = vrot.slane %v1973, %v4050
    %v4052 = vlaneseq
    %v4053 = vshrl.u32 %v4052, 7
    %v4054 = vsub.s32 %v2553, %v4053
    %v4055 = vrot.slane %v1976, %v4054
    %v4056 = vsel %vm2558, %v4055, %v4051
    %v4057 = vlaneseq
    %v4058 = vshrl.u32 %v4057, 7
    %v4059 = vsub.s32 %v2560, %v4058
    %v4060 = vrot.slane %v1979, %v4059
    %v4061 = vsel %vm2565, %v4060, %v4056
    %v4062 = vlaneseq
    %v4063 = vshrl.u32 %v4062, 7
    %v4064 = vsub.s32 %v2567, %v4063
    %v4065 = vrot.slane %v1982, %v4064
    %v4066 = vsel %vm2572, %v4065, %v4061
    %v4067 = vlaneseq
    %v4068 = vshrl.u32 %v4067, 7
    %v4069 = vsub.s32 %v2574, %v4068
    %v4070 = vrot.slane %v1985, %v4069
    %v4071 = vsel %vm2579, %v4070, %v4066
    %v4072 = vlaneseq
    %v4073 = vshrl.u32 %v4072, 7
    %v4074 = vsub.s32 %v2581, %v4073
    %v4075 = vrot.slane %v1988, %v4074
    %v4076 = vsel %vm2586, %v4075, %v4071
    %v4077 = vlaneseq
    %v4078 = vshrl.u32 %v4077, 7
    %v4079 = vsub.s32 %v2588, %v4078
    %v4080 = vrot.slane %v1991, %v4079
    %v4081 = vsel %vm2593, %v4080, %v4076
    %v4082 = vlaneseq
    %v4083 = vshrl.u32 %v4082, 7
    %v4084 = vsub.s32 %v2595, %v4083
    %v4085 = vrot.slane %v1994, %v4084
    %v4086 = vsel %vm2600, %v4085, %v4081
    %v4087 = vlaneseq
    %v4088 = vshrl.u32 %v4087, 7
    %v4089 = vsub.s32 %v2602, %v4088
    %v4090 = vrot.slane %v1997, %v4089
    %v4091 = vsel %vm2607, %v4090, %v4086
    %v4092 = vlaneseq
    %v4093 = vshrl.u32 %v4092, 7
    %v4094 = vsub.s32 %v2609, %v4093
    %v4095 = vrot.slane %v2000, %v4094
    %v4096 = vsel %vm2614, %v4095, %v4091
    %v4097 = vlaneseq
    %v4098 = vshrl.u32 %v4097, 7
    %v4099 = vsub.s32 %v2616, %v4098
    %v4100 = vrot.slane %v2003, %v4099
    %v4101 = vsel %vm2621, %v4100, %v4096
    %v4102 = vlaneseq
    %v4103 = vshrl.u32 %v4102, 7
    %v4104 = vsub.s32 %v2623, %v4103
    %v4105 = vrot.slane %v2006, %v4104
    %v4106 = vsel %vm2628, %v4105, %v4101
    %v4107 = vlaneseq
    %v4108 = vshrl.u32 %v4107, 7
    %v4109 = vsub.s32 %v2630, %v4108
    %v4110 = vrot.slane %v2009, %v4109
    %v4111 = vsel %vm2635, %v4110, %v4106
    %v4112 = vlaneseq
    %v4113 = vshrl.u32 %v4112, 7
    %v4114 = vsub.s32 %v2637, %v4113
    %v4115 = vrot.slane %v2012, %v4114
    %v4116 = vsel %vm2642, %v4115, %v4111
    %v4117 = vlaneseq
    %v4118 = vshrl.u32 %v4117, 7
    %v4119 = vsub.s32 %v2644, %v4118
    %v4120 = vrot.slane %v2015, %v4119
    %v4121 = vsel %vm2649, %v4120, %v4116
    %v4122 = vlaneseq
    %v4123 = vshrl.u32 %v4122, 7
    %v4124 = vsub.s32 %v2651, %v4123
    %v4125 = vrot.slane %v2018, %v4124
    %v4126 = vsel %vm2656, %v4125, %v4121
    %v4127 = vlaneseq
    %v4128 = vshrl.u32 %v4127, 7
    %v4129 = vsub.s32 %v2548, %v4128
    %v4130 = vrot.slane %v2021, %v4129
    %v4131 = vlaneseq
    %v4132 = vshrl.u32 %v4131, 7
    %v4133 = vsub.s32 %v2553, %v4132
    %v4134 = vrot.slane %v2024, %v4133
    %v4135 = vsel %vm2558, %v4134, %v4130
    %v4136 = vlaneseq
    %v4137 = vshrl.u32 %v4136, 7
    %v4138 = vsub.s32 %v2560, %v4137
    %v4139 = vrot.slane %v2027, %v4138
    %v4140 = vsel %vm2565, %v4139, %v4135
    %v4141 = vlaneseq
    %v4142 = vshrl.u32 %v4141, 7
    %v4143 = vsub.s32 %v2567, %v4142
    %v4144 = vrot.slane %v2030, %v4143
    %v4145 = vsel %vm2572, %v4144, %v4140
    %v4146 = vlaneseq
    %v4147 = vshrl.u32 %v4146, 7
    %v4148 = vsub.s32 %v2574, %v4147
    %v4149 = vrot.slane %v2033, %v4148
    %v4150 = vsel %vm2579, %v4149, %v4145
    %v4151 = vlaneseq
    %v4152 = vshrl.u32 %v4151, 7
    %v4153 = vsub.s32 %v2581, %v4152
    %v4154 = vrot.slane %v2036, %v4153
    %v4155 = vsel %vm2586, %v4154, %v4150
    %v4156 = vlaneseq
    %v4157 = vshrl.u32 %v4156, 7
    %v4158 = vsub.s32 %v2588, %v4157
    %v4159 = vrot.slane %v2039, %v4158
    %v4160 = vsel %vm2593, %v4159, %v4155
    %v4161 = vlaneseq
    %v4162 = vshrl.u32 %v4161, 7
    %v4163 = vsub.s32 %v2595, %v4162
    %v4164 = vrot.slane %v2042, %v4163
    %v4165 = vsel %vm2600, %v4164, %v4160
    %v4166 = vlaneseq
    %v4167 = vshrl.u32 %v4166, 7
    %v4168 = vsub.s32 %v2602, %v4167
    %v4169 = vrot.slane %v2045, %v4168
    %v4170 = vsel %vm2607, %v4169, %v4165
    %v4171 = vlaneseq
    %v4172 = vshrl.u32 %v4171, 7
    %v4173 = vsub.s32 %v2609, %v4172
    %v4174 = vrot.slane %v2048, %v4173
    %v4175 = vsel %vm2614, %v4174, %v4170
    %v4176 = vlaneseq
    %v4177 = vshrl.u32 %v4176, 7
    %v4178 = vsub.s32 %v2616, %v4177
    %v4179 = vrot.slane %v2051, %v4178
    %v4180 = vsel %vm2621, %v4179, %v4175
    %v4181 = vlaneseq
    %v4182 = vshrl.u32 %v4181, 7
    %v4183 = vsub.s32 %v2623, %v4182
    %v4184 = vrot.slane %v2054, %v4183
    %v4185 = vsel %vm2628, %v4184, %v4180
    %v4186 = vlaneseq
    %v4187 = vshrl.u32 %v4186, 7
    %v4188 = vsub.s32 %v2630, %v4187
    %v4189 = vrot.slane %v2057, %v4188
    %v4190 = vsel %vm2635, %v4189, %v4185
    %v4191 = vlaneseq
    %v4192 = vshrl.u32 %v4191, 7
    %v4193 = vsub.s32 %v2637, %v4192
    %v4194 = vrot.slane %v2060, %v4193
    %v4195 = vsel %vm2642, %v4194, %v4190
    %v4196 = vlaneseq
    %v4197 = vshrl.u32 %v4196, 7
    %v4198 = vsub.s32 %v2644, %v4197
    %v4199 = vrot.slane %v2063, %v4198
    %v4200 = vsel %vm2649, %v4199, %v4195
    %v4201 = vlaneseq
    %v4202 = vshrl.u32 %v4201, 7
    %v4203 = vsub.s32 %v2651, %v4202
    %v4204 = vrot.slane %v2066, %v4203
    %v4205 = vsel %vm2656, %v4204, %v4200
    %v4206 = vlaneseq
    %v4207 = vshrl.u32 %v4206, 7
    %v4208 = vsub.s32 %v2548, %v4207
    %v4209 = vrot.slane %v2069, %v4208
    %v4210 = vlaneseq
    %v4211 = vshrl.u32 %v4210, 7
    %v4212 = vsub.s32 %v2553, %v4211
    %v4213 = vrot.slane %v2072, %v4212
    %v4214 = vsel %vm2558, %v4213, %v4209
    %v4215 = vlaneseq
    %v4216 = vshrl.u32 %v4215, 7
    %v4217 = vsub.s32 %v2560, %v4216
    %v4218 = vrot.slane %v2075, %v4217
    %v4219 = vsel %vm2565, %v4218, %v4214
    %v4220 = vlaneseq
    %v4221 = vshrl.u32 %v4220, 7
    %v4222 = vsub.s32 %v2567, %v4221
    %v4223 = vrot.slane %v2078, %v4222
    %v4224 = vsel %vm2572, %v4223, %v4219
    %v4225 = vlaneseq
    %v4226 = vshrl.u32 %v4225, 7
    %v4227 = vsub.s32 %v2574, %v4226
    %v4228 = vrot.slane %v2081, %v4227
    %v4229 = vsel %vm2579, %v4228, %v4224
    %v4230 = vlaneseq
    %v4231 = vshrl.u32 %v4230, 7
    %v4232 = vsub.s32 %v2581, %v4231
    %v4233 = vrot.slane %v2084, %v4232
    %v4234 = vsel %vm2586, %v4233, %v4229
    %v4235 = vlaneseq
    %v4236 = vshrl.u32 %v4235, 7
    %v4237 = vsub.s32 %v2588, %v4236
    %v4238 = vrot.slane %v2087, %v4237
    %v4239 = vsel %vm2593, %v4238, %v4234
    %v4240 = vlaneseq
    %v4241 = vshrl.u32 %v4240, 7
    %v4242 = vsub.s32 %v2595, %v4241
    %v4243 = vrot.slane %v2090, %v4242
    %v4244 = vsel %vm2600, %v4243, %v4239
    %v4245 = vlaneseq
    %v4246 = vshrl.u32 %v4245, 7
    %v4247 = vsub.s32 %v2602, %v4246
    %v4248 = vrot.slane %v2093, %v4247
    %v4249 = vsel %vm2607, %v4248, %v4244
    %v4250 = vlaneseq
    %v4251 = vshrl.u32 %v4250, 7
    %v4252 = vsub.s32 %v2609, %v4251
    %v4253 = vrot.slane %v2096, %v4252
    %v4254 = vsel %vm2614, %v4253, %v4249
    %v4255 = vlaneseq
    %v4256 = vshrl.u32 %v4255, 7
    %v4257 = vsub.s32 %v2616, %v4256
    %v4258 = vrot.slane %v2099, %v4257
    %v4259 = vsel %vm2621, %v4258, %v4254
    %v4260 = vlaneseq
    %v4261 = vshrl.u32 %v4260, 7
    %v4262 = vsub.s32 %v2623, %v4261
    %v4263 = vrot.slane %v2102, %v4262
    %v4264 = vsel %vm2628, %v4263, %v4259
    %v4265 = vlaneseq
    %v4266 = vshrl.u32 %v4265, 7
    %v4267 = vsub.s32 %v2630, %v4266
    %v4268 = vrot.slane %v2105, %v4267
    %v4269 = vsel %vm2635, %v4268, %v4264
    %v4270 = vlaneseq
    %v4271 = vshrl.u32 %v4270, 7
    %v4272 = vsub.s32 %v2637, %v4271
    %v4273 = vrot.slane %v2108, %v4272
    %v4274 = vsel %vm2642, %v4273, %v4269
    %v4275 = vlaneseq
    %v4276 = vshrl.u32 %v4275, 7
    %v4277 = vsub.s32 %v2644, %v4276
    %v4278 = vrot.slane %v2111, %v4277
    %v4279 = vsel %vm2649, %v4278, %v4274
    %v4280 = vlaneseq
    %v4281 = vshrl.u32 %v4280, 7
    %v4282 = vsub.s32 %v2651, %v4281
    %v4283 = vrot.slane %v2114, %v4282
    %v4284 = vsel %vm2656, %v4283, %v4279
    %v4285 = vlaneseq
    %v4286 = vshrl.u32 %v4285, 7
    %v4287 = vsub.s32 %v2548, %v4286
    %v4288 = vrot.slane %v2117, %v4287
    %v4289 = vlaneseq
    %v4290 = vshrl.u32 %v4289, 7
    %v4291 = vsub.s32 %v2553, %v4290
    %v4292 = vrot.slane %v2120, %v4291
    %v4293 = vsel %vm2558, %v4292, %v4288
    %v4294 = vlaneseq
    %v4295 = vshrl.u32 %v4294, 7
    %v4296 = vsub.s32 %v2560, %v4295
    %v4297 = vrot.slane %v2123, %v4296
    %v4298 = vsel %vm2565, %v4297, %v4293
    %v4299 = vlaneseq
    %v4300 = vshrl.u32 %v4299, 7
    %v4301 = vsub.s32 %v2567, %v4300
    %v4302 = vrot.slane %v2126, %v4301
    %v4303 = vsel %vm2572, %v4302, %v4298
    %v4304 = vlaneseq
    %v4305 = vshrl.u32 %v4304, 7
    %v4306 = vsub.s32 %v2574, %v4305
    %v4307 = vrot.slane %v2129, %v4306
    %v4308 = vsel %vm2579, %v4307, %v4303
    %v4309 = vlaneseq
    %v4310 = vshrl.u32 %v4309, 7
    %v4311 = vsub.s32 %v2581, %v4310
    %v4312 = vrot.slane %v2132, %v4311
    %v4313 = vsel %vm2586, %v4312, %v4308
    %v4314 = vlaneseq
    %v4315 = vshrl.u32 %v4314, 7
    %v4316 = vsub.s32 %v2588, %v4315
    %v4317 = vrot.slane %v2135, %v4316
    %v4318 = vsel %vm2593, %v4317, %v4313
    %v4319 = vlaneseq
    %v4320 = vshrl.u32 %v4319, 7
    %v4321 = vsub.s32 %v2595, %v4320
    %v4322 = vrot.slane %v2138, %v4321
    %v4323 = vsel %vm2600, %v4322, %v4318
    %v4324 = vlaneseq
    %v4325 = vshrl.u32 %v4324, 7
    %v4326 = vsub.s32 %v2602, %v4325
    %v4327 = vrot.slane %v2141, %v4326
    %v4328 = vsel %vm2607, %v4327, %v4323
    %v4329 = vlaneseq
    %v4330 = vshrl.u32 %v4329, 7
    %v4331 = vsub.s32 %v2609, %v4330
    %v4332 = vrot.slane %v2144, %v4331
    %v4333 = vsel %vm2614, %v4332, %v4328
    %v4334 = vlaneseq
    %v4335 = vshrl.u32 %v4334, 7
    %v4336 = vsub.s32 %v2616, %v4335
    %v4337 = vrot.slane %v2147, %v4336
    %v4338 = vsel %vm2621, %v4337, %v4333
    %v4339 = vlaneseq
    %v4340 = vshrl.u32 %v4339, 7
    %v4341 = vsub.s32 %v2623, %v4340
    %v4342 = vrot.slane %v2150, %v4341
    %v4343 = vsel %vm2628, %v4342, %v4338
    %v4344 = vlaneseq
    %v4345 = vshrl.u32 %v4344, 7
    %v4346 = vsub.s32 %v2630, %v4345
    %v4347 = vrot.slane %v2153, %v4346
    %v4348 = vsel %vm2635, %v4347, %v4343
    %v4349 = vlaneseq
    %v4350 = vshrl.u32 %v4349, 7
    %v4351 = vsub.s32 %v2637, %v4350
    %v4352 = vrot.slane %v2156, %v4351
    %v4353 = vsel %vm2642, %v4352, %v4348
    %v4354 = vlaneseq
    %v4355 = vshrl.u32 %v4354, 7
    %v4356 = vsub.s32 %v2644, %v4355
    %v4357 = vrot.slane %v2159, %v4356
    %v4358 = vsel %vm2649, %v4357, %v4353
    %v4359 = vlaneseq
    %v4360 = vshrl.u32 %v4359, 7
    %v4361 = vsub.s32 %v2651, %v4360
    %v4362 = vrot.slane %v2162, %v4361
    %v4363 = vsel %vm2656, %v4362, %v4358
    %v4364 = vlaneseq
    %v4365 = vshrl.u32 %v4364, 7
    %v4366 = vsub.s32 %v2548, %v4365
    %v4367 = vrot.slane %v2165, %v4366
    %v4368 = vlaneseq
    %v4369 = vshrl.u32 %v4368, 7
    %v4370 = vsub.s32 %v2553, %v4369
    %v4371 = vrot.slane %v2168, %v4370
    %v4372 = vsel %vm2558, %v4371, %v4367
    %v4373 = vlaneseq
    %v4374 = vshrl.u32 %v4373, 7
    %v4375 = vsub.s32 %v2560, %v4374
    %v4376 = vrot.slane %v2171, %v4375
    %v4377 = vsel %vm2565, %v4376, %v4372
    %v4378 = vlaneseq
    %v4379 = vshrl.u32 %v4378, 7
    %v4380 = vsub.s32 %v2567, %v4379
    %v4381 = vrot.slane %v2174, %v4380
    %v4382 = vsel %vm2572, %v4381, %v4377
    %v4383 = vlaneseq
    %v4384 = vshrl.u32 %v4383, 7
    %v4385 = vsub.s32 %v2574, %v4384
    %v4386 = vrot.slane %v2177, %v4385
    %v4387 = vsel %vm2579, %v4386, %v4382
    %v4388 = vlaneseq
    %v4389 = vshrl.u32 %v4388, 7
    %v4390 = vsub.s32 %v2581, %v4389
    %v4391 = vrot.slane %v2180, %v4390
    %v4392 = vsel %vm2586, %v4391, %v4387
    %v4393 = vlaneseq
    %v4394 = vshrl.u32 %v4393, 7
    %v4395 = vsub.s32 %v2588, %v4394
    %v4396 = vrot.slane %v2183, %v4395
    %v4397 = vsel %vm2593, %v4396, %v4392
    %v4398 = vlaneseq
    %v4399 = vshrl.u32 %v4398, 7
    %v4400 = vsub.s32 %v2595, %v4399
    %v4401 = vrot.slane %v2186, %v4400
    %v4402 = vsel %vm2600, %v4401, %v4397
    %v4403 = vlaneseq
    %v4404 = vshrl.u32 %v4403, 7
    %v4405 = vsub.s32 %v2602, %v4404
    %v4406 = vrot.slane %v2189, %v4405
    %v4407 = vsel %vm2607, %v4406, %v4402
    %v4408 = vlaneseq
    %v4409 = vshrl.u32 %v4408, 7
    %v4410 = vsub.s32 %v2609, %v4409
    %v4411 = vrot.slane %v2192, %v4410
    %v4412 = vsel %vm2614, %v4411, %v4407
    %v4413 = vlaneseq
    %v4414 = vshrl.u32 %v4413, 7
    %v4415 = vsub.s32 %v2616, %v4414
    %v4416 = vrot.slane %v2195, %v4415
    %v4417 = vsel %vm2621, %v4416, %v4412
    %v4418 = vlaneseq
    %v4419 = vshrl.u32 %v4418, 7
    %v4420 = vsub.s32 %v2623, %v4419
    %v4421 = vrot.slane %v2198, %v4420
    %v4422 = vsel %vm2628, %v4421, %v4417
    %v4423 = vlaneseq
    %v4424 = vshrl.u32 %v4423, 7
    %v4425 = vsub.s32 %v2630, %v4424
    %v4426 = vrot.slane %v2201, %v4425
    %v4427 = vsel %vm2635, %v4426, %v4422
    %v4428 = vlaneseq
    %v4429 = vshrl.u32 %v4428, 7
    %v4430 = vsub.s32 %v2637, %v4429
    %v4431 = vrot.slane %v2204, %v4430
    %v4432 = vsel %vm2642, %v4431, %v4427
    %v4433 = vlaneseq
    %v4434 = vshrl.u32 %v4433, 7
    %v4435 = vsub.s32 %v2644, %v4434
    %v4436 = vrot.slane %v2207, %v4435
    %v4437 = vsel %vm2649, %v4436, %v4432
    %v4438 = vlaneseq
    %v4439 = vshrl.u32 %v4438, 7
    %v4440 = vsub.s32 %v2651, %v4439
    %v4441 = vrot.slane %v2210, %v4440
    %v4442 = vsel %vm2656, %v4441, %v4437
    %v4443 = vlaneseq
    %v4444 = vshrl.u32 %v4443, 7
    %v4445 = vsub.s32 %v2548, %v4444
    %v4446 = vrot.slane %v2213, %v4445
    %v4447 = vlaneseq
    %v4448 = vshrl.u32 %v4447, 7
    %v4449 = vsub.s32 %v2553, %v4448
    %v4450 = vrot.slane %v2216, %v4449
    %v4451 = vsel %vm2558, %v4450, %v4446
    %v4452 = vlaneseq
    %v4453 = vshrl.u32 %v4452, 7
    %v4454 = vsub.s32 %v2560, %v4453
    %v4455 = vrot.slane %v2219, %v4454
    %v4456 = vsel %vm2565, %v4455, %v4451
    %v4457 = vlaneseq
    %v4458 = vshrl.u32 %v4457, 7
    %v4459 = vsub.s32 %v2567, %v4458
    %v4460 = vrot.slane %v2222, %v4459
    %v4461 = vsel %vm2572, %v4460, %v4456
    %v4462 = vlaneseq
    %v4463 = vshrl.u32 %v4462, 7
    %v4464 = vsub.s32 %v2574, %v4463
    %v4465 = vrot.slane %v2225, %v4464
    %v4466 = vsel %vm2579, %v4465, %v4461
    %v4467 = vlaneseq
    %v4468 = vshrl.u32 %v4467, 7
    %v4469 = vsub.s32 %v2581, %v4468
    %v4470 = vrot.slane %v2228, %v4469
    %v4471 = vsel %vm2586, %v4470, %v4466
    %v4472 = vlaneseq
    %v4473 = vshrl.u32 %v4472, 7
    %v4474 = vsub.s32 %v2588, %v4473
    %v4475 = vrot.slane %v2231, %v4474
    %v4476 = vsel %vm2593, %v4475, %v4471
    %v4477 = vlaneseq
    %v4478 = vshrl.u32 %v4477, 7
    %v4479 = vsub.s32 %v2595, %v4478
    %v4480 = vrot.slane %v2234, %v4479
    %v4481 = vsel %vm2600, %v4480, %v4476
    %v4482 = vlaneseq
    %v4483 = vshrl.u32 %v4482, 7
    %v4484 = vsub.s32 %v2602, %v4483
    %v4485 = vrot.slane %v2237, %v4484
    %v4486 = vsel %vm2607, %v4485, %v4481
    %v4487 = vlaneseq
    %v4488 = vshrl.u32 %v4487, 7
    %v4489 = vsub.s32 %v2609, %v4488
    %v4490 = vrot.slane %v2240, %v4489
    %v4491 = vsel %vm2614, %v4490, %v4486
    %v4492 = vlaneseq
    %v4493 = vshrl.u32 %v4492, 7
    %v4494 = vsub.s32 %v2616, %v4493
    %v4495 = vrot.slane %v2243, %v4494
    %v4496 = vsel %vm2621, %v4495, %v4491
    %v4497 = vlaneseq
    %v4498 = vshrl.u32 %v4497, 7
    %v4499 = vsub.s32 %v2623, %v4498
    %v4500 = vrot.slane %v2246, %v4499
    %v4501 = vsel %vm2628, %v4500, %v4496
    %v4502 = vlaneseq
    %v4503 = vshrl.u32 %v4502, 7
    %v4504 = vsub.s32 %v2630, %v4503
    %v4505 = vrot.slane %v2249, %v4504
    %v4506 = vsel %vm2635, %v4505, %v4501
    %v4507 = vlaneseq
    %v4508 = vshrl.u32 %v4507, 7
    %v4509 = vsub.s32 %v2637, %v4508
    %v4510 = vrot.slane %v2252, %v4509
    %v4511 = vsel %vm2642, %v4510, %v4506
    %v4512 = vlaneseq
    %v4513 = vshrl.u32 %v4512, 7
    %v4514 = vsub.s32 %v2644, %v4513
    %v4515 = vrot.slane %v2255, %v4514
    %v4516 = vsel %vm2649, %v4515, %v4511
    %v4517 = vlaneseq
    %v4518 = vshrl.u32 %v4517, 7
    %v4519 = vsub.s32 %v2651, %v4518
    %v4520 = vrot.slane %v2258, %v4519
    %v4521 = vsel %vm2656, %v4520, %v4516
    %v4522 = vlaneseq
    %v4523 = vshrl.u32 %v4522, 7
    %v4524 = vsub.s32 %v2548, %v4523
    %v4525 = vrot.slane %v2261, %v4524
    %v4526 = vlaneseq
    %v4527 = vshrl.u32 %v4526, 7
    %v4528 = vsub.s32 %v2553, %v4527
    %v4529 = vrot.slane %v2264, %v4528
    %v4530 = vsel %vm2558, %v4529, %v4525
    %v4531 = vlaneseq
    %v4532 = vshrl.u32 %v4531, 7
    %v4533 = vsub.s32 %v2560, %v4532
    %v4534 = vrot.slane %v2267, %v4533
    %v4535 = vsel %vm2565, %v4534, %v4530
    %v4536 = vlaneseq
    %v4537 = vshrl.u32 %v4536, 7
    %v4538 = vsub.s32 %v2567, %v4537
    %v4539 = vrot.slane %v2270, %v4538
    %v4540 = vsel %vm2572, %v4539, %v4535
    %v4541 = vlaneseq
    %v4542 = vshrl.u32 %v4541, 7
    %v4543 = vsub.s32 %v2574, %v4542
    %v4544 = vrot.slane %v2273, %v4543
    %v4545 = vsel %vm2579, %v4544, %v4540
    %v4546 = vlaneseq
    %v4547 = vshrl.u32 %v4546, 7
    %v4548 = vsub.s32 %v2581, %v4547
    %v4549 = vrot.slane %v2276, %v4548
    %v4550 = vsel %vm2586, %v4549, %v4545
    %v4551 = vlaneseq
    %v4552 = vshrl.u32 %v4551, 7
    %v4553 = vsub.s32 %v2588, %v4552
    %v4554 = vrot.slane %v2279, %v4553
    %v4555 = vsel %vm2593, %v4554, %v4550
    %v4556 = vlaneseq
    %v4557 = vshrl.u32 %v4556, 7
    %v4558 = vsub.s32 %v2595, %v4557
    %v4559 = vrot.slane %v2282, %v4558
    %v4560 = vsel %vm2600, %v4559, %v4555
    %v4561 = vlaneseq
    %v4562 = vshrl.u32 %v4561, 7
    %v4563 = vsub.s32 %v2602, %v4562
    %v4564 = vrot.slane %v2285, %v4563
    %v4565 = vsel %vm2607, %v4564, %v4560
    %v4566 = vlaneseq
    %v4567 = vshrl.u32 %v4566, 7
    %v4568 = vsub.s32 %v2609, %v4567
    %v4569 = vrot.slane %v2288, %v4568
    %v4570 = vsel %vm2614, %v4569, %v4565
    %v4571 = vlaneseq
    %v4572 = vshrl.u32 %v4571, 7
    %v4573 = vsub.s32 %v2616, %v4572
    %v4574 = vrot.slane %v2291, %v4573
    %v4575 = vsel %vm2621, %v4574, %v4570
    %v4576 = vlaneseq
    %v4577 = vshrl.u32 %v4576, 7
    %v4578 = vsub.s32 %v2623, %v4577
    %v4579 = vrot.slane %v2294, %v4578
    %v4580 = vsel %vm2628, %v4579, %v4575
    %v4581 = vlaneseq
    %v4582 = vshrl.u32 %v4581, 7
    %v4583 = vsub.s32 %v2630, %v4582
    %v4584 = vrot.slane %v2297, %v4583
    %v4585 = vsel %vm2635, %v4584, %v4580
    %v4586 = vlaneseq
    %v4587 = vshrl.u32 %v4586, 7
    %v4588 = vsub.s32 %v2637, %v4587
    %v4589 = vrot.slane %v2300, %v4588
    %v4590 = vsel %vm2642, %v4589, %v4585
    %v4591 = vlaneseq
    %v4592 = vshrl.u32 %v4591, 7
    %v4593 = vsub.s32 %v2644, %v4592
    %v4594 = vrot.slane %v2303, %v4593
    %v4595 = vsel %vm2649, %v4594, %v4590
    %v4596 = vlaneseq
    %v4597 = vshrl.u32 %v4596, 7
    %v4598 = vsub.s32 %v2651, %v4597
    %v4599 = vrot.slane %v2306, %v4598
    %v4600 = vsel %vm2656, %v4599, %v4595
    %v4601 = vlaneseq
    %v4602 = vshrl.u32 %v4601, 7
    %v4603 = vsub.s32 %v2548, %v4602
    %v4604 = vrot.slane %v2309, %v4603
    %v4605 = vlaneseq
    %v4606 = vshrl.u32 %v4605, 7
    %v4607 = vsub.s32 %v2553, %v4606
    %v4608 = vrot.slane %v2312, %v4607
    %v4609 = vsel %vm2558, %v4608, %v4604
    %v4610 = vlaneseq
    %v4611 = vshrl.u32 %v4610, 7
    %v4612 = vsub.s32 %v2560, %v4611
    %v4613 = vrot.slane %v2315, %v4612
    %v4614 = vsel %vm2565, %v4613, %v4609
    %v4615 = vlaneseq
    %v4616 = vshrl.u32 %v4615, 7
    %v4617 = vsub.s32 %v2567, %v4616
    %v4618 = vrot.slane %v2318, %v4617
    %v4619 = vsel %vm2572, %v4618, %v4614
    %v4620 = vlaneseq
    %v4621 = vshrl.u32 %v4620, 7
    %v4622 = vsub.s32 %v2574, %v4621
    %v4623 = vrot.slane %v2321, %v4622
    %v4624 = vsel %vm2579, %v4623, %v4619
    %v4625 = vlaneseq
    %v4626 = vshrl.u32 %v4625, 7
    %v4627 = vsub.s32 %v2581, %v4626
    %v4628 = vrot.slane %v2324, %v4627
    %v4629 = vsel %vm2586, %v4628, %v4624
    %v4630 = vlaneseq
    %v4631 = vshrl.u32 %v4630, 7
    %v4632 = vsub.s32 %v2588, %v4631
    %v4633 = vrot.slane %v2327, %v4632
    %v4634 = vsel %vm2593, %v4633, %v4629
    %v4635 = vlaneseq
    %v4636 = vshrl.u32 %v4635, 7
    %v4637 = vsub.s32 %v2595, %v4636
    %v4638 = vrot.slane %v2330, %v4637
    %v4639 = vsel %vm2600, %v4638, %v4634
    %v4640 = vlaneseq
    %v4641 = vshrl.u32 %v4640, 7
    %v4642 = vsub.s32 %v2602, %v4641
    %v4643 = vrot.slane %v2333, %v4642
    %v4644 = vsel %vm2607, %v4643, %v4639
    %v4645 = vlaneseq
    %v4646 = vshrl.u32 %v4645, 7
    %v4647 = vsub.s32 %v2609, %v4646
    %v4648 = vrot.slane %v2336, %v4647
    %v4649 = vsel %vm2614, %v4648, %v4644
    %v4650 = vlaneseq
    %v4651 = vshrl.u32 %v4650, 7
    %v4652 = vsub.s32 %v2616, %v4651
    %v4653 = vrot.slane %v2339, %v4652
    %v4654 = vsel %vm2621, %v4653, %v4649
    %v4655 = vlaneseq
    %v4656 = vshrl.u32 %v4655, 7
    %v4657 = vsub.s32 %v2623, %v4656
    %v4658 = vrot.slane %v2342, %v4657
    %v4659 = vsel %vm2628, %v4658, %v4654
    %v4660 = vlaneseq
    %v4661 = vshrl.u32 %v4660, 7
    %v4662 = vsub.s32 %v2630, %v4661
    %v4663 = vrot.slane %v2345, %v4662
    %v4664 = vsel %vm2635, %v4663, %v4659
    %v4665 = vlaneseq
    %v4666 = vshrl.u32 %v4665, 7
    %v4667 = vsub.s32 %v2637, %v4666
    %v4668 = vrot.slane %v2348, %v4667
    %v4669 = vsel %vm2642, %v4668, %v4664
    %v4670 = vlaneseq
    %v4671 = vshrl.u32 %v4670, 7
    %v4672 = vsub.s32 %v2644, %v4671
    %v4673 = vrot.slane %v2351, %v4672
    %v4674 = vsel %vm2649, %v4673, %v4669
    %v4675 = vlaneseq
    %v4676 = vshrl.u32 %v4675, 7
    %v4677 = vsub.s32 %v2651, %v4676
    %v4678 = vrot.slane %v2354, %v4677
    %v4679 = vsel %vm2656, %v4678, %v4674
    %v4680 = vsel %vm3527, %v4284, %v3810
    %v4681 = vsel %vm3527, %v4363, %v3889
    %v4682 = vsel %vm3527, %v4442, %v3968
    %v4683 = vsel %vm3527, %v4521, %v4047
    %v4684 = vsel %vm3527, %v4600, %v4126
    %v4685 = vsel %vm3527, %v4679, %v4205
    %v4692 = vmul.f32 %v3528, 0.015625
    %v4693 = vmul.f32 %v3529, 0.015625
    %v4694 = vmul.f32 %v3530, 0.015625
    %v4695 = vmul.f32 %v3531, 0.015625
    %v4696 = vmul.f32 %v3532, 0.015625
    %v4697 = vmul.f32 %v3533, 0.015625
    %v4698 = vmul.f32 %v4680, 0.015625
    %v4699 = vmul.f32 %v4681, 0.015625
    %v4700 = vmul.f32 %v4682, 0.015625
    %v4701 = vmul.f32 %v4683, 0.015625
    %v4702 = vmul.f32 %v4684, 0.015625
    %v4703 = vmul.f32 %v4685, 0.015625
    %v4704 = vpack.c.bf16 %v4692, %v4692
    %v4705 = vpack.c.bf16 %v4693, %v4693
    %v4706 = vpack.c.bf16 %v4694, %v4694
    %v4707 = vpack.c.bf16 %v4695, %v4695
    %v4708 = vpack.c.bf16 %v4696, %v4696
    %v4709 = vpack.c.bf16 %v4697, %v4697
    %v4710 = vpack.c.bf16 %v4698, %v4698
    %v4711 = vpack.c.bf16 %v4699, %v4699
    %v4712 = vpack.c.bf16 %v4700, %v4700
    %v4713 = vpack.c.bf16 %v4701, %v4701
    %v4714 = vpack.c.bf16 %v4702, %v4702
    %v4715 = vpack.c.bf16 %v4703, %v4703
    %v4716 = vld [vmem:[#allocation5] sm:$0xff]
    %v4717 = vld [vmem:[#allocation5 + $0x8] sm:$0xff]
    %v4718 = vld [vmem:[#allocation5 + $0x10] sm:$0xff]
    %v4719 = vld [vmem:[#allocation5 + $0x18] sm:$0xff]
    %v4720 = vld [vmem:[#allocation5 + $0x20] sm:$0xff]
    %v4721 = vld [vmem:[#allocation5 + $0x28] sm:$0xff]
    %v4722 = vld [vmem:[#allocation5 + $0x30] sm:$0xff]
    %v4723 = vld [vmem:[#allocation5 + $0x38] sm:$0xff]
    %v4724 = vld [vmem:[#allocation5 + $0x40] sm:$0xff]
    %v4725 = vld [vmem:[#allocation5 + $0x48] sm:$0xff]
    %v4726 = vld [vmem:[#allocation5 + $0x50] sm:$0xff]
    %v4727 = vld [vmem:[#allocation5 + $0x58] sm:$0xff]
    %v4728 = vld [vmem:[#allocation5 + $0x60] sm:$0xff]
    %v4729 = vld [vmem:[#allocation5 + $0x68] sm:$0xff]
    %v4730 = vld [vmem:[#allocation5 + $0x70] sm:$0xff]
    %v4731 = vld [vmem:[#allocation5 + $0x78] sm:$0xff]
    %v4732 = vld [vmem:[#allocation5 + $0x80] sm:$0xff]
    %v4733 = vld [vmem:[#allocation5 + $0x88] sm:$0xff]
    %v4734 = vld [vmem:[#allocation5 + $0x90] sm:$0xff]
    %v4735 = vld [vmem:[#allocation5 + $0x98] sm:$0xff]
    %v4736 = vld [vmem:[#allocation5 + $0xa0] sm:$0xff]
    %v4737 = vld [vmem:[#allocation5 + $0xa8] sm:$0xff]
    %v4738 = vld [vmem:[#allocation5 + $0xb0] sm:$0xff]
    %v4739 = vld [vmem:[#allocation5 + $0xb8] sm:$0xff]
    %v4740 = vld [vmem:[#allocation5 + $0xc0] sm:$0xff]
    %v4741 = vld [vmem:[#allocation5 + $0xc8] sm:$0xff]
    %v4742 = vld [vmem:[#allocation5 + $0xd0] sm:$0xff]
    %v4743 = vld [vmem:[#allocation5 + $0xd8] sm:$0xff]
    %v4744 = vld [vmem:[#allocation5 + $0xe0] sm:$0xff]
    %v4745 = vld [vmem:[#allocation5 + $0xe8] sm:$0xff]
    %v4746 = vld [vmem:[#allocation5 + $0xf0] sm:$0xff]
    %v4747 = vld [vmem:[#allocation5 + $0xf8] sm:$0xff]
    %v4748 = vld [vmem:[#allocation5 + $0x100] sm:$0xff]
    %v4749 = vld [vmem:[#allocation5 + $0x108] sm:$0xff]
    %v4750 = vld [vmem:[#allocation5 + $0x110] sm:$0xff]
    %v4751 = vld [vmem:[#allocation5 + $0x118] sm:$0xff]
    %v4752 = vld [vmem:[#allocation5 + $0x120] sm:$0xff]
    %v4753 = vld [vmem:[#allocation5 + $0x128] sm:$0xff]
    %v4754 = vld [vmem:[#allocation5 + $0x130] sm:$0xff]
    %v4755 = vld [vmem:[#allocation5 + $0x138] sm:$0xff]
    %v4756 = vld [vmem:[#allocation5 + $0x140] sm:$0xff]
    %v4757 = vld [vmem:[#allocation5 + $0x148] sm:$0xff]
    %v4758 = vld [vmem:[#allocation5 + $0x150] sm:$0xff]
    %v4759 = vld [vmem:[#allocation5 + $0x158] sm:$0xff]
    %v4760 = vld [vmem:[#allocation5 + $0x160] sm:$0xff]
    %v4761 = vld [vmem:[#allocation5 + $0x168] sm:$0xff]
    %v4762 = vld [vmem:[#allocation5 + $0x170] sm:$0xff]
    %v4763 = vld [vmem:[#allocation5 + $0x178] sm:$0xff]
    %v4764 = vld [vmem:[#allocation5 + $0x180] sm:$0xff]
    %v4765 = vld [vmem:[#allocation5 + $0x188] sm:$0xff]
    %v4766 = vld [vmem:[#allocation5 + $0x190] sm:$0xff]
    %v4767 = vld [vmem:[#allocation5 + $0x198] sm:$0xff]
    %v4768 = vld [vmem:[#allocation5 + $0x1a0] sm:$0xff]
    %v4769 = vld [vmem:[#allocation5 + $0x1a8] sm:$0xff]
    %v4770 = vld [vmem:[#allocation5 + $0x1b0] sm:$0xff]
    %v4771 = vld [vmem:[#allocation5 + $0x1b8] sm:$0xff]
    %v4772 = vld [vmem:[#allocation5 + $0x1c0] sm:$0xff]
    %v4773 = vld [vmem:[#allocation5 + $0x1c8] sm:$0xff]
    %v4774 = vld [vmem:[#allocation5 + $0x1d0] sm:$0xff]
    %v4775 = vld [vmem:[#allocation5 + $0x1d8] sm:$0xff]
    %v4776 = vld [vmem:[#allocation5 + $0x1e0] sm:$0xff]
    %v4777 = vld [vmem:[#allocation5 + $0x1e8] sm:$0xff]
    %v4778 = vld [vmem:[#allocation5 + $0x1f0] sm:$0xff]
    %v4779 = vld [vmem:[#allocation5 + $0x1f8] sm:$0xff]
    %v4780 = vld [vmem:[#allocation5 + $0x200] sm:$0xff]
    %v4781 = vld [vmem:[#allocation5 + $0x208] sm:$0xff]
    %v4782 = vld [vmem:[#allocation5 + $0x210] sm:$0xff]
    %v4783 = vld [vmem:[#allocation5 + $0x218] sm:$0xff]
    %v4784 = vld [vmem:[#allocation5 + $0x220] sm:$0xff]
    %v4785 = vld [vmem:[#allocation5 + $0x228] sm:$0xff]
    %v4786 = vld [vmem:[#allocation5 + $0x230] sm:$0xff]
    %v4787 = vld [vmem:[#allocation5 + $0x238] sm:$0xff]
    %v4788 = vld [vmem:[#allocation5 + $0x240] sm:$0xff]
    %v4789 = vld [vmem:[#allocation5 + $0x248] sm:$0xff]
    %v4790 = vld [vmem:[#allocation5 + $0x250] sm:$0xff]
    %v4791 = vld [vmem:[#allocation5 + $0x258] sm:$0xff]
    %v4792 = vld [vmem:[#allocation5 + $0x260] sm:$0xff]
    %v4793 = vld [vmem:[#allocation5 + $0x268] sm:$0xff]
    %v4794 = vld [vmem:[#allocation5 + $0x270] sm:$0xff]
    %v4795 = vld [vmem:[#allocation5 + $0x278] sm:$0xff]
    %v4796 = vld [vmem:[#allocation5 + $0x280] sm:$0xff]
    %v4797 = vld [vmem:[#allocation5 + $0x288] sm:$0xff]
    %v4798 = vld [vmem:[#allocation5 + $0x290] sm:$0xff]
    %v4799 = vld [vmem:[#allocation5 + $0x298] sm:$0xff]
    %v4800 = vld [vmem:[#allocation5 + $0x2a0] sm:$0xff]
    %v4801 = vld [vmem:[#allocation5 + $0x2a8] sm:$0xff]
    %v4802 = vld [vmem:[#allocation5 + $0x2b0] sm:$0xff]
    %v4803 = vld [vmem:[#allocation5 + $0x2b8] sm:$0xff]
    %v4804 = vld [vmem:[#allocation5 + $0x2c0] sm:$0xff]
    %v4805 = vld [vmem:[#allocation5 + $0x2c8] sm:$0xff]
    %v4806 = vld [vmem:[#allocation5 + $0x2d0] sm:$0xff]
    %v4807 = vld [vmem:[#allocation5 + $0x2d8] sm:$0xff]
    %v4808 = vld [vmem:[#allocation5 + $0x2e0] sm:$0xff]
    %v4809 = vld [vmem:[#allocation5 + $0x2e8] sm:$0xff]
    %v4810 = vld [vmem:[#allocation5 + $0x2f0] sm:$0xff]
    %v4811 = vld [vmem:[#allocation5 + $0x2f8] sm:$0xff]
    %v4812 = vld [vmem:[#allocation5 + $0x300] sm:$0xff]
    %v4813 = vld [vmem:[#allocation5 + $0x308] sm:$0xff]
    %v4814 = vld [vmem:[#allocation5 + $0x310] sm:$0xff]
    %v4815 = vld [vmem:[#allocation5 + $0x318] sm:$0xff]
    %v4816 = vld [vmem:[#allocation5 + $0x320] sm:$0xff]
    %v4817 = vld [vmem:[#allocation5 + $0x328] sm:$0xff]
    %v4818 = vld [vmem:[#allocation5 + $0x330] sm:$0xff]
    %v4819 = vld [vmem:[#allocation5 + $0x338] sm:$0xff]
    %v4820 = vld [vmem:[#allocation5 + $0x340] sm:$0xff]
    %v4821 = vld [vmem:[#allocation5 + $0x348] sm:$0xff]
    %v4822 = vld [vmem:[#allocation5 + $0x350] sm:$0xff]
    %v4823 = vld [vmem:[#allocation5 + $0x358] sm:$0xff]
    %v4824 = vld [vmem:[#allocation5 + $0x360] sm:$0xff]
    %v4825 = vld [vmem:[#allocation5 + $0x368] sm:$0xff]
    %v4826 = vld [vmem:[#allocation5 + $0x370] sm:$0xff]
    %v4827 = vld [vmem:[#allocation5 + $0x378] sm:$0xff]
    %v4828 = vld [vmem:[#allocation5 + $0x380] sm:$0xff]
    %v4829 = vld [vmem:[#allocation5 + $0x388] sm:$0xff]
    %v4830 = vld [vmem:[#allocation5 + $0x390] sm:$0xff]
    %v4831 = vld [vmem:[#allocation5 + $0x398] sm:$0xff]
    %v4832 = vld [vmem:[#allocation5 + $0x3a0] sm:$0xff]
    %v4833 = vld [vmem:[#allocation5 + $0x3a8] sm:$0xff]
    %v4834 = vld [vmem:[#allocation5 + $0x3b0] sm:$0xff]
    %v4835 = vld [vmem:[#allocation5 + $0x3b8] sm:$0xff]
    %v4836 = vld [vmem:[#allocation5 + $0x3c0] sm:$0xff]
    %v4837 = vld [vmem:[#allocation5 + $0x3c8] sm:$0xff]
    %v4838 = vld [vmem:[#allocation5 + $0x3d0] sm:$0xff]
    %v4839 = vld [vmem:[#allocation5 + $0x3d8] sm:$0xff]
    %v4840 = vld [vmem:[#allocation5 + $0x3e0] sm:$0xff]
    %v4841 = vld [vmem:[#allocation5 + $0x3e8] sm:$0xff]
    %v4842 = vld [vmem:[#allocation5 + $0x3f0] sm:$0xff]
    %v4843 = vld [vmem:[#allocation5 + $0x3f8] sm:$0xff]
    %v4844 = vld [vmem:[#allocation5 + $0x400] sm:$0xff]
    %v4845 = vld [vmem:[#allocation5 + $0x408] sm:$0xff]
    %v4846 = vld [vmem:[#allocation5 + $0x410] sm:$0xff]
    %v4847 = vld [vmem:[#allocation5 + $0x418] sm:$0xff]
    %v4848 = vld [vmem:[#allocation5 + $0x420] sm:$0xff]
    %v4849 = vld [vmem:[#allocation5 + $0x428] sm:$0xff]
    %v4850 = vld [vmem:[#allocation5 + $0x430] sm:$0xff]
    %v4851 = vld [vmem:[#allocation5 + $0x438] sm:$0xff]
    %v4852 = vld [vmem:[#allocation5 + $0x440] sm:$0xff]
    %v4853 = vld [vmem:[#allocation5 + $0x448] sm:$0xff]
    %v4854 = vld [vmem:[#allocation5 + $0x450] sm:$0xff]
    %v4855 = vld [vmem:[#allocation5 + $0x458] sm:$0xff]
    %v4856 = vld [vmem:[#allocation5 + $0x460] sm:$0xff]
    %v4857 = vld [vmem:[#allocation5 + $0x468] sm:$0xff]
    %v4858 = vld [vmem:[#allocation5 + $0x470] sm:$0xff]
    %v4859 = vld [vmem:[#allocation5 + $0x478] sm:$0xff]
    %v4860 = vld [vmem:[#allocation5 + $0x480] sm:$0xff]
    %v4861 = vld [vmem:[#allocation5 + $0x488] sm:$0xff]
    %v4862 = vld [vmem:[#allocation5 + $0x490] sm:$0xff]
    %v4863 = vld [vmem:[#allocation5 + $0x498] sm:$0xff]
    %v4864 = vld [vmem:[#allocation5 + $0x4a0] sm:$0xff]
    %v4865 = vld [vmem:[#allocation5 + $0x4a8] sm:$0xff]
    %v4866 = vld [vmem:[#allocation5 + $0x4b0] sm:$0xff]
    %v4867 = vld [vmem:[#allocation5 + $0x4b8] sm:$0xff]
    %v4868 = vld [vmem:[#allocation5 + $0x4c0] sm:$0xff]
    %v4869 = vld [vmem:[#allocation5 + $0x4c8] sm:$0xff]
    %v4870 = vld [vmem:[#allocation5 + $0x4d0] sm:$0xff]
    %v4871 = vld [vmem:[#allocation5 + $0x4d8] sm:$0xff]
    %v4872 = vld [vmem:[#allocation5 + $0x4e0] sm:$0xff]
    %v4873 = vld [vmem:[#allocation5 + $0x4e8] sm:$0xff]
    %v4874 = vld [vmem:[#allocation5 + $0x4f0] sm:$0xff]
    %v4875 = vld [vmem:[#allocation5 + $0x4f8] sm:$0xff]
    %v4876 = vld [vmem:[#allocation5 + $0x500] sm:$0xff]
    %v4877 = vld [vmem:[#allocation5 + $0x508] sm:$0xff]
    %v4878 = vld [vmem:[#allocation5 + $0x510] sm:$0xff]
    %v4879 = vld [vmem:[#allocation5 + $0x518] sm:$0xff]
    %v4880 = vld [vmem:[#allocation5 + $0x520] sm:$0xff]
    %v4881 = vld [vmem:[#allocation5 + $0x528] sm:$0xff]
    %v4882 = vld [vmem:[#allocation5 + $0x530] sm:$0xff]
    %v4883 = vld [vmem:[#allocation5 + $0x538] sm:$0xff]
    %v4884 = vld [vmem:[#allocation5 + $0x540] sm:$0xff]
    %v4885 = vld [vmem:[#allocation5 + $0x548] sm:$0xff]
    %v4886 = vld [vmem:[#allocation5 + $0x550] sm:$0xff]
    %v4887 = vld [vmem:[#allocation5 + $0x558] sm:$0xff]
    %v4888 = vld [vmem:[#allocation5 + $0x560] sm:$0xff]
    %v4889 = vld [vmem:[#allocation5 + $0x568] sm:$0xff]
    %v4890 = vld [vmem:[#allocation5 + $0x570] sm:$0xff]
    %v4891 = vld [vmem:[#allocation5 + $0x578] sm:$0xff]
    %v4892 = vld [vmem:[#allocation5 + $0x580] sm:$0xff]
    %v4893 = vld [vmem:[#allocation5 + $0x588] sm:$0xff]
    %v4894 = vld [vmem:[#allocation5 + $0x590] sm:$0xff]
    %v4895 = vld [vmem:[#allocation5 + $0x598] sm:$0xff]
    %v4896 = vld [vmem:[#allocation5 + $0x5a0] sm:$0xff]
    %v4897 = vld [vmem:[#allocation5 + $0x5a8] sm:$0xff]
    %v4898 = vld [vmem:[#allocation5 + $0x5b0] sm:$0xff]
    %v4899 = vld [vmem:[#allocation5 + $0x5b8] sm:$0xff]
    %v4900 = vld [vmem:[#allocation5 + $0x5c0] sm:$0xff]
    %v4901 = vld [vmem:[#allocation5 + $0x5c8] sm:$0xff]
    %v4902 = vld [vmem:[#allocation5 + $0x5d0] sm:$0xff]
    %v4903 = vld [vmem:[#allocation5 + $0x5d8] sm:$0xff]
    %v4904 = vld [vmem:[#allocation5 + $0x5e0] sm:$0xff]
    %v4905 = vld [vmem:[#allocation5 + $0x5e8] sm:$0xff]
    %v4906 = vld [vmem:[#allocation5 + $0x5f0] sm:$0xff]
    %v4907 = vld [vmem:[#allocation5 + $0x5f8] sm:$0xff]
    %v4908 = vld [vmem:[%s2] sm:$0x3]
    %v4910 = vlaneseq
    %v4911 = vshrl.u32 %v4910, 7
    %v4912 = vsub.s32 0, %v4911
    %v4913 = vrot.slane %v4908, %v4912
    %v4914 = vlaneseq
    %v4915 = vshrl.u32 %v4914, 7
    %v4916 = vsub.s32 1, %v4915
    %v4917 = vrot.slane %v4908, %v4916
    %v5112 = vunpack.c.l.b16 %v4716
    %v5113 = vunpack.c.h.b16 %v4716
    %v5114 = vunpack.c.l.b16 %v4717
    %v5115 = vunpack.c.h.b16 %v4717
    %v5116 = vunpack.c.l.b16 %v4718
    %v5117 = vunpack.c.h.b16 %v4718
    %v5118 = vunpack.c.l.b16 %v4719
    %v5119 = vunpack.c.h.b16 %v4719
    %v5120 = vunpack.c.l.b16 %v4720
    %v5121 = vunpack.c.h.b16 %v4720
    %v5122 = vunpack.c.l.b16 %v4721
    %v5123 = vunpack.c.h.b16 %v4721
    %v5124 = vunpack.c.l.b16 %v4722
    %v5125 = vunpack.c.h.b16 %v4722
    %v5126 = vunpack.c.l.b16 %v4723
    %v5127 = vunpack.c.h.b16 %v4723
    %v5128 = vunpack.c.l.b16 %v4724
    %v5129 = vunpack.c.h.b16 %v4724
    %v5130 = vunpack.c.l.b16 %v4725
    %v5131 = vunpack.c.h.b16 %v4725
    %v5132 = vunpack.c.l.b16 %v4726
    %v5133 = vunpack.c.h.b16 %v4726
    %v5134 = vunpack.c.l.b16 %v4727
    %v5135 = vunpack.c.h.b16 %v4727
    %v5136 = vunpack.c.l.b16 %v4728
    %v5137 = vunpack.c.h.b16 %v4728
    %v5138 = vunpack.c.l.b16 %v4729
    %v5139 = vunpack.c.h.b16 %v4729
    %v5140 = vunpack.c.l.b16 %v4730
    %v5141 = vunpack.c.h.b16 %v4730
    %v5142 = vunpack.c.l.b16 %v4731
    %v5143 = vunpack.c.h.b16 %v4731
    %v5144 = vunpack.c.l.b16 %v4732
    %v5145 = vunpack.c.h.b16 %v4732
    %v5146 = vunpack.c.l.b16 %v4733
    %v5147 = vunpack.c.h.b16 %v4733
    %v5148 = vunpack.c.l.b16 %v4734
    %v5149 = vunpack.c.h.b16 %v4734
    %v5150 = vunpack.c.l.b16 %v4735
    %v5151 = vunpack.c.h.b16 %v4735
    %v5152 = vunpack.c.l.b16 %v4736
    %v5153 = vunpack.c.h.b16 %v4736
    %v5154 = vunpack.c.l.b16 %v4737
    %v5155 = vunpack.c.h.b16 %v4737
    %v5156 = vunpack.c.l.b16 %v4738
    %v5157 = vunpack.c.h.b16 %v4738
    %v5158 = vunpack.c.l.b16 %v4739
    %v5159 = vunpack.c.h.b16 %v4739
    %v5160 = vunpack.c.l.b16 %v4740
    %v5161 = vunpack.c.h.b16 %v4740
    %v5162 = vunpack.c.l.b16 %v4741
    %v5163 = vunpack.c.h.b16 %v4741
    %v5164 = vunpack.c.l.b16 %v4742
    %v5165 = vunpack.c.h.b16 %v4742
    %v5166 = vunpack.c.l.b16 %v4743
    %v5167 = vunpack.c.h.b16 %v4743
    %v5168 = vunpack.c.l.b16 %v4744
    %v5169 = vunpack.c.h.b16 %v4744
    %v5170 = vunpack.c.l.b16 %v4745
    %v5171 = vunpack.c.h.b16 %v4745
    %v5172 = vunpack.c.l.b16 %v4746
    %v5173 = vunpack.c.h.b16 %v4746
    %v5174 = vunpack.c.l.b16 %v4747
    %v5175 = vunpack.c.h.b16 %v4747
    %v5176 = vunpack.c.l.b16 %v4748
    %v5177 = vunpack.c.h.b16 %v4748
    %v5178 = vunpack.c.l.b16 %v4749
    %v5179 = vunpack.c.h.b16 %v4749
    %v5180 = vunpack.c.l.b16 %v4750
    %v5181 = vunpack.c.h.b16 %v4750
    %v5182 = vunpack.c.l.b16 %v4751
    %v5183 = vunpack.c.h.b16 %v4751
    %v5184 = vunpack.c.l.b16 %v4752
    %v5185 = vunpack.c.h.b16 %v4752
    %v5186 = vunpack.c.l.b16 %v4753
    %v5187 = vunpack.c.h.b16 %v4753
    %v5188 = vunpack.c.l.b16 %v4754
    %v5189 = vunpack.c.h.b16 %v4754
    %v5190 = vunpack.c.l.b16 %v4755
    %v5191 = vunpack.c.h.b16 %v4755
    %v5192 = vunpack.c.l.b16 %v4756
    %v5193 = vunpack.c.h.b16 %v4756
    %v5194 = vunpack.c.l.b16 %v4757
    %v5195 = vunpack.c.h.b16 %v4757
    %v5196 = vunpack.c.l.b16 %v4758
    %v5197 = vunpack.c.h.b16 %v4758
    %v5198 = vunpack.c.l.b16 %v4759
    %v5199 = vunpack.c.h.b16 %v4759
    %v5200 = vunpack.c.l.b16 %v4760
    %v5201 = vunpack.c.h.b16 %v4760
    %v5202 = vunpack.c.l.b16 %v4761
    %v5203 = vunpack.c.h.b16 %v4761
    %v5204 = vunpack.c.l.b16 %v4762
    %v5205 = vunpack.c.h.b16 %v4762
    %v5206 = vunpack.c.l.b16 %v4763
    %v5207 = vunpack.c.h.b16 %v4763
    %v5208 = vunpack.c.l.b16 %v4764
    %v5209 = vunpack.c.h.b16 %v4764
    %v5210 = vunpack.c.l.b16 %v4765
    %v5211 = vunpack.c.h.b16 %v4765
    %v5212 = vunpack.c.l.b16 %v4766
    %v5213 = vunpack.c.h.b16 %v4766
    %v5214 = vunpack.c.l.b16 %v4767
    %v5215 = vunpack.c.h.b16 %v4767
    %v5216 = vunpack.c.l.b16 %v4768
    %v5217 = vunpack.c.h.b16 %v4768
    %v5218 = vunpack.c.l.b16 %v4769
    %v5219 = vunpack.c.h.b16 %v4769
    %v5220 = vunpack.c.l.b16 %v4770
    %v5221 = vunpack.c.h.b16 %v4770
    %v5222 = vunpack.c.l.b16 %v4771
    %v5223 = vunpack.c.h.b16 %v4771
    %v5224 = vunpack.c.l.b16 %v4772
    %v5225 = vunpack.c.h.b16 %v4772
    %v5226 = vunpack.c.l.b16 %v4773
    %v5227 = vunpack.c.h.b16 %v4773
    %v5228 = vunpack.c.l.b16 %v4774
    %v5229 = vunpack.c.h.b16 %v4774
    %v5230 = vunpack.c.l.b16 %v4775
    %v5231 = vunpack.c.h.b16 %v4775
    %v5232 = vunpack.c.l.b16 %v4776
    %v5233 = vunpack.c.h.b16 %v4776
    %v5234 = vunpack.c.l.b16 %v4777
    %v5235 = vunpack.c.h.b16 %v4777
    %v5236 = vunpack.c.l.b16 %v4778
    %v5237 = vunpack.c.h.b16 %v4778
    %v5238 = vunpack.c.l.b16 %v4779
    %v5239 = vunpack.c.h.b16 %v4779
    %v5240 = vunpack.c.l.b16 %v4780
    %v5241 = vunpack.c.h.b16 %v4780
    %v5242 = vunpack.c.l.b16 %v4781
    %v5243 = vunpack.c.h.b16 %v4781
    %v5244 = vunpack.c.l.b16 %v4782
    %v5245 = vunpack.c.h.b16 %v4782
    %v5246 = vunpack.c.l.b16 %v4783
    %v5247 = vunpack.c.h.b16 %v4783
    %v5248 = vunpack.c.l.b16 %v4784
    %v5249 = vunpack.c.h.b16 %v4784
    %v5250 = vunpack.c.l.b16 %v4785
    %v5251 = vunpack.c.h.b16 %v4785
    %v5252 = vunpack.c.l.b16 %v4786
    %v5253 = vunpack.c.h.b16 %v4786
    %v5254 = vunpack.c.l.b16 %v4787
    %v5255 = vunpack.c.h.b16 %v4787
    %v5256 = vunpack.c.l.b16 %v4788
    %v5257 = vunpack.c.h.b16 %v4788
    %v5258 = vunpack.c.l.b16 %v4789
    %v5259 = vunpack.c.h.b16 %v4789
    %v5260 = vunpack.c.l.b16 %v4790
    %v5261 = vunpack.c.h.b16 %v4790
    %v5262 = vunpack.c.l.b16 %v4791
    %v5263 = vunpack.c.h.b16 %v4791
    %v5264 = vunpack.c.l.b16 %v4792
    %v5265 = vunpack.c.h.b16 %v4792
    %v5266 = vunpack.c.l.b16 %v4793
    %v5267 = vunpack.c.h.b16 %v4793
    %v5268 = vunpack.c.l.b16 %v4794
    %v5269 = vunpack.c.h.b16 %v4794
    %v5270 = vunpack.c.l.b16 %v4795
    %v5271 = vunpack.c.h.b16 %v4795
    %v5272 = vunpack.c.l.b16 %v4796
    %v5273 = vunpack.c.h.b16 %v4796
    %v5274 = vunpack.c.l.b16 %v4797
    %v5275 = vunpack.c.h.b16 %v4797
    %v5276 = vunpack.c.l.b16 %v4798
    %v5277 = vunpack.c.h.b16 %v4798
    %v5278 = vunpack.c.l.b16 %v4799
    %v5279 = vunpack.c.h.b16 %v4799
    %v5280 = vunpack.c.l.b16 %v4800
    %v5281 = vunpack.c.h.b16 %v4800
    %v5282 = vunpack.c.l.b16 %v4801
    %v5283 = vunpack.c.h.b16 %v4801
    %v5284 = vunpack.c.l.b16 %v4802
    %v5285 = vunpack.c.h.b16 %v4802
    %v5286 = vunpack.c.l.b16 %v4803
    %v5287 = vunpack.c.h.b16 %v4803
    %v5288 = vunpack.c.l.b16 %v4804
    %v5289 = vunpack.c.h.b16 %v4804
    %v5290 = vunpack.c.l.b16 %v4805
    %v5291 = vunpack.c.h.b16 %v4805
    %v5292 = vunpack.c.l.b16 %v4806
    %v5293 = vunpack.c.h.b16 %v4806
    %v5294 = vunpack.c.l.b16 %v4807
    %v5295 = vunpack.c.h.b16 %v4807
    %v5296 = vunpack.c.l.b16 %v4808
    %v5297 = vunpack.c.h.b16 %v4808
    %v5298 = vunpack.c.l.b16 %v4809
    %v5299 = vunpack.c.h.b16 %v4809
    %v5300 = vunpack.c.l.b16 %v4810
    %v5301 = vunpack.c.h.b16 %v4810
    %v5302 = vunpack.c.l.b16 %v4811
    %v5303 = vunpack.c.h.b16 %v4811
    %v5304 = vunpack.c.l.b16 %v4812
    %v5305 = vunpack.c.h.b16 %v4812
    %v5306 = vunpack.c.l.b16 %v4813
    %v5307 = vunpack.c.h.b16 %v4813
    %v5308 = vunpack.c.l.b16 %v4814
    %v5309 = vunpack.c.h.b16 %v4814
    %v5310 = vunpack.c.l.b16 %v4815
    %v5311 = vunpack.c.h.b16 %v4815
    %v5312 = vunpack.c.l.b16 %v4816
    %v5313 = vunpack.c.h.b16 %v4816
    %v5314 = vunpack.c.l.b16 %v4817
    %v5315 = vunpack.c.h.b16 %v4817
    %v5316 = vunpack.c.l.b16 %v4818
    %v5317 = vunpack.c.h.b16 %v4818
    %v5318 = vunpack.c.l.b16 %v4819
    %v5319 = vunpack.c.h.b16 %v4819
    %v5320 = vunpack.c.l.b16 %v4820
    %v5321 = vunpack.c.h.b16 %v4820
    %v5322 = vunpack.c.l.b16 %v4821
    %v5323 = vunpack.c.h.b16 %v4821
    %v5324 = vunpack.c.l.b16 %v4822
    %v5325 = vunpack.c.h.b16 %v4822
    %v5326 = vunpack.c.l.b16 %v4823
    %v5327 = vunpack.c.h.b16 %v4823
    %v5328 = vunpack.c.l.b16 %v4824
    %v5329 = vunpack.c.h.b16 %v4824
    %v5330 = vunpack.c.l.b16 %v4825
    %v5331 = vunpack.c.h.b16 %v4825
    %v5332 = vunpack.c.l.b16 %v4826
    %v5333 = vunpack.c.h.b16 %v4826
    %v5334 = vunpack.c.l.b16 %v4827
    %v5335 = vunpack.c.h.b16 %v4827
    %v5336 = vunpack.c.l.b16 %v4828
    %v5337 = vunpack.c.h.b16 %v4828
    %v5338 = vunpack.c.l.b16 %v4829
    %v5339 = vunpack.c.h.b16 %v4829
    %v5340 = vunpack.c.l.b16 %v4830
    %v5341 = vunpack.c.h.b16 %v4830
    %v5342 = vunpack.c.l.b16 %v4831
    %v5343 = vunpack.c.h.b16 %v4831
    %v5344 = vunpack.c.l.b16 %v4832
    %v5345 = vunpack.c.h.b16 %v4832
    %v5346 = vunpack.c.l.b16 %v4833
    %v5347 = vunpack.c.h.b16 %v4833
    %v5348 = vunpack.c.l.b16 %v4834
    %v5349 = vunpack.c.h.b16 %v4834
    %v5350 = vunpack.c.l.b16 %v4835
    %v5351 = vunpack.c.h.b16 %v4835
    %v5352 = vunpack.c.l.b16 %v4836
    %v5353 = vunpack.c.h.b16 %v4836
    %v5354 = vunpack.c.l.b16 %v4837
    %v5355 = vunpack.c.h.b16 %v4837
    %v5356 = vunpack.c.l.b16 %v4838
    %v5357 = vunpack.c.h.b16 %v4838
    %v5358 = vunpack.c.l.b16 %v4839
    %v5359 = vunpack.c.h.b16 %v4839
    %v5360 = vunpack.c.l.b16 %v4840
    %v5361 = vunpack.c.h.b16 %v4840
    %v5362 = vunpack.c.l.b16 %v4841
    %v5363 = vunpack.c.h.b16 %v4841
    %v5364 = vunpack.c.l.b16 %v4842
    %v5365 = vunpack.c.h.b16 %v4842
    %v5366 = vunpack.c.l.b16 %v4843
    %v5367 = vunpack.c.h.b16 %v4843
    %v5368 = vunpack.c.l.b16 %v4844
    %v5369 = vunpack.c.h.b16 %v4844
    %v5370 = vunpack.c.l.b16 %v4845
    %v5371 = vunpack.c.h.b16 %v4845
    %v5372 = vunpack.c.l.b16 %v4846
    %v5373 = vunpack.c.h.b16 %v4846
    %v5374 = vunpack.c.l.b16 %v4847
    %v5375 = vunpack.c.h.b16 %v4847
    %v5376 = vunpack.c.l.b16 %v4848
    %v5377 = vunpack.c.h.b16 %v4848
    %v5378 = vunpack.c.l.b16 %v4849
    %v5379 = vunpack.c.h.b16 %v4849
    %v5380 = vunpack.c.l.b16 %v4850
    %v5381 = vunpack.c.h.b16 %v4850
    %v5382 = vunpack.c.l.b16 %v4851
    %v5383 = vunpack.c.h.b16 %v4851
    %v5384 = vunpack.c.l.b16 %v4852
    %v5385 = vunpack.c.h.b16 %v4852
    %v5386 = vunpack.c.l.b16 %v4853
    %v5387 = vunpack.c.h.b16 %v4853
    %v5388 = vunpack.c.l.b16 %v4854
    %v5389 = vunpack.c.h.b16 %v4854
    %v5390 = vunpack.c.l.b16 %v4855
    %v5391 = vunpack.c.h.b16 %v4855
    %v5392 = vunpack.c.l.b16 %v4856
    %v5393 = vunpack.c.h.b16 %v4856
    %v5394 = vunpack.c.l.b16 %v4857
    %v5395 = vunpack.c.h.b16 %v4857
    %v5396 = vunpack.c.l.b16 %v4858
    %v5397 = vunpack.c.h.b16 %v4858
    %v5398 = vunpack.c.l.b16 %v4859
    %v5399 = vunpack.c.h.b16 %v4859
    %v5400 = vunpack.c.l.b16 %v4860
    %v5401 = vunpack.c.h.b16 %v4860
    %v5402 = vunpack.c.l.b16 %v4861
    %v5403 = vunpack.c.h.b16 %v4861
    %v5404 = vunpack.c.l.b16 %v4862
    %v5405 = vunpack.c.h.b16 %v4862
    %v5406 = vunpack.c.l.b16 %v4863
    %v5407 = vunpack.c.h.b16 %v4863
    %v5408 = vunpack.c.l.b16 %v4864
    %v5409 = vunpack.c.h.b16 %v4864
    %v5410 = vunpack.c.l.b16 %v4865
    %v5411 = vunpack.c.h.b16 %v4865
    %v5412 = vunpack.c.l.b16 %v4866
    %v5413 = vunpack.c.h.b16 %v4866
    %v5414 = vunpack.c.l.b16 %v4867
    %v5415 = vunpack.c.h.b16 %v4867
    %v5416 = vunpack.c.l.b16 %v4868
    %v5417 = vunpack.c.h.b16 %v4868
    %v5418 = vunpack.c.l.b16 %v4869
    %v5419 = vunpack.c.h.b16 %v4869
    %v5420 = vunpack.c.l.b16 %v4870
    %v5421 = vunpack.c.h.b16 %v4870
    %v5422 = vunpack.c.l.b16 %v4871
    %v5423 = vunpack.c.h.b16 %v4871
    %v5424 = vunpack.c.l.b16 %v4872
    %v5425 = vunpack.c.h.b16 %v4872
    %v5426 = vunpack.c.l.b16 %v4873
    %v5427 = vunpack.c.h.b16 %v4873
    %v5428 = vunpack.c.l.b16 %v4874
    %v5429 = vunpack.c.h.b16 %v4874
    %v5430 = vunpack.c.l.b16 %v4875
    %v5431 = vunpack.c.h.b16 %v4875
    %v5432 = vunpack.c.l.b16 %v4876
    %v5433 = vunpack.c.h.b16 %v4876
    %v5434 = vunpack.c.l.b16 %v4877
    %v5435 = vunpack.c.h.b16 %v4877
    %v5436 = vunpack.c.l.b16 %v4878
    %v5437 = vunpack.c.h.b16 %v4878
    %v5438 = vunpack.c.l.b16 %v4879
    %v5439 = vunpack.c.h.b16 %v4879
    %v5440 = vunpack.c.l.b16 %v4880
    %v5441 = vunpack.c.h.b16 %v4880
    %v5442 = vunpack.c.l.b16 %v4881
    %v5443 = vunpack.c.h.b16 %v4881
    %v5444 = vunpack.c.l.b16 %v4882
    %v5445 = vunpack.c.h.b16 %v4882
    %v5446 = vunpack.c.l.b16 %v4883
    %v5447 = vunpack.c.h.b16 %v4883
    %v5448 = vunpack.c.l.b16 %v4884
    %v5449 = vunpack.c.h.b16 %v4884
    %v5450 = vunpack.c.l.b16 %v4885
    %v5451 = vunpack.c.h.b16 %v4885
    %v5452 = vunpack.c.l.b16 %v4886
    %v5453 = vunpack.c.h.b16 %v4886
    %v5454 = vunpack.c.l.b16 %v4887
    %v5455 = vunpack.c.h.b16 %v4887
    %v5456 = vunpack.c.l.b16 %v4888
    %v5457 = vunpack.c.h.b16 %v4888
    %v5458 = vunpack.c.l.b16 %v4889
    %v5459 = vunpack.c.h.b16 %v4889
    %v5460 = vunpack.c.l.b16 %v4890
    %v5461 = vunpack.c.h.b16 %v4890
    %v5462 = vunpack.c.l.b16 %v4891
    %v5463 = vunpack.c.h.b16 %v4891
    %v5464 = vunpack.c.l.b16 %v4892
    %v5465 = vunpack.c.h.b16 %v4892
    %v5466 = vunpack.c.l.b16 %v4893
    %v5467 = vunpack.c.h.b16 %v4893
    %v5468 = vunpack.c.l.b16 %v4894
    %v5469 = vunpack.c.h.b16 %v4894
    %v5470 = vunpack.c.l.b16 %v4895
    %v5471 = vunpack.c.h.b16 %v4895
    %v5472 = vunpack.c.l.b16 %v4896
    %v5473 = vunpack.c.h.b16 %v4896
    %v5474 = vunpack.c.l.b16 %v4897
    %v5475 = vunpack.c.h.b16 %v4897
    %v5476 = vunpack.c.l.b16 %v4898
    %v5477 = vunpack.c.h.b16 %v4898
    %v5478 = vunpack.c.l.b16 %v4899
    %v5479 = vunpack.c.h.b16 %v4899
    %v5480 = vunpack.c.l.b16 %v4900
    %v5481 = vunpack.c.h.b16 %v4900
    %v5482 = vunpack.c.l.b16 %v4901
    %v5483 = vunpack.c.h.b16 %v4901
    %v5484 = vunpack.c.l.b16 %v4902
    %v5485 = vunpack.c.h.b16 %v4902
    %v5486 = vunpack.c.l.b16 %v4903
    %v5487 = vunpack.c.h.b16 %v4903
    %v5488 = vunpack.c.l.b16 %v4904
    %v5489 = vunpack.c.h.b16 %v4904
    %v5490 = vunpack.c.l.b16 %v4905
    %v5491 = vunpack.c.h.b16 %v4905
    %v5492 = vunpack.c.l.b16 %v4906
    %v5493 = vunpack.c.h.b16 %v4906
    %v5494 = vunpack.c.l.b16 %v4907
    %v5495 = vunpack.c.h.b16 %v4907
    %v5496 = vpack.c.b16 %v5114, %v5112
    %v5497 = vpack.c.b16 %v5115, %v5113
    %v5498 = vpack.c.b16 %v5118, %v5116
    %v5499 = vpack.c.b16 %v5119, %v5117
    %v5500 = vpack.c.b16 %v5122, %v5120
    %v5501 = vpack.c.b16 %v5123, %v5121
    %v5502 = vpack.c.b16 %v5126, %v5124
    %v5503 = vpack.c.b16 %v5127, %v5125
    %v5504 = vpack.c.b16 %v5130, %v5128
    %v5505 = vpack.c.b16 %v5131, %v5129
    %v5506 = vpack.c.b16 %v5134, %v5132
    %v5507 = vpack.c.b16 %v5135, %v5133
    %v5508 = vpack.c.b16 %v5138, %v5136
    %v5509 = vpack.c.b16 %v5139, %v5137
    %v5510 = vpack.c.b16 %v5142, %v5140
    %v5511 = vpack.c.b16 %v5143, %v5141
    %v5512 = vpack.c.b16 %v5146, %v5144
    %v5513 = vpack.c.b16 %v5147, %v5145
    %v5514 = vpack.c.b16 %v5150, %v5148
    %v5515 = vpack.c.b16 %v5151, %v5149
    %v5516 = vpack.c.b16 %v5154, %v5152
    %v5517 = vpack.c.b16 %v5155, %v5153
    %v5518 = vpack.c.b16 %v5158, %v5156
    %v5519 = vpack.c.b16 %v5159, %v5157
    %v5520 = vpack.c.b16 %v5162, %v5160
    %v5521 = vpack.c.b16 %v5163, %v5161
    %v5522 = vpack.c.b16 %v5166, %v5164
    %v5523 = vpack.c.b16 %v5167, %v5165
    %v5524 = vpack.c.b16 %v5170, %v5168
    %v5525 = vpack.c.b16 %v5171, %v5169
    %v5526 = vpack.c.b16 %v5174, %v5172
    %v5527 = vpack.c.b16 %v5175, %v5173
    %v5528 = vpack.c.b16 %v5178, %v5176
    %v5529 = vpack.c.b16 %v5179, %v5177
    %v5530 = vpack.c.b16 %v5182, %v5180
    %v5531 = vpack.c.b16 %v5183, %v5181
    %v5532 = vpack.c.b16 %v5186, %v5184
    %v5533 = vpack.c.b16 %v5187, %v5185
    %v5534 = vpack.c.b16 %v5190, %v5188
    %v5535 = vpack.c.b16 %v5191, %v5189
    %v5536 = vpack.c.b16 %v5194, %v5192
    %v5537 = vpack.c.b16 %v5195, %v5193
    %v5538 = vpack.c.b16 %v5198, %v5196
    %v5539 = vpack.c.b16 %v5199, %v5197
    %v5540 = vpack.c.b16 %v5202, %v5200
    %v5541 = vpack.c.b16 %v5203, %v5201
    %v5542 = vpack.c.b16 %v5206, %v5204
    %v5543 = vpack.c.b16 %v5207, %v5205
    %v5544 = vpack.c.b16 %v5210, %v5208
    %v5545 = vpack.c.b16 %v5211, %v5209
    %v5546 = vpack.c.b16 %v5214, %v5212
    %v5547 = vpack.c.b16 %v5215, %v5213
    %v5548 = vpack.c.b16 %v5218, %v5216
    %v5549 = vpack.c.b16 %v5219, %v5217
    %v5550 = vpack.c.b16 %v5222, %v5220
    %v5551 = vpack.c.b16 %v5223, %v5221
    %v5552 = vpack.c.b16 %v5226, %v5224
    %v5553 = vpack.c.b16 %v5227, %v5225
    %v5554 = vpack.c.b16 %v5230, %v5228
    %v5555 = vpack.c.b16 %v5231, %v5229
    %v5556 = vpack.c.b16 %v5234, %v5232
    %v5557 = vpack.c.b16 %v5235, %v5233
    %v5558 = vpack.c.b16 %v5238, %v5236
    %v5559 = vpack.c.b16 %v5239, %v5237
    %v5560 = vpack.c.b16 %v5242, %v5240
    %v5561 = vpack.c.b16 %v5243, %v5241
    %v5562 = vpack.c.b16 %v5246, %v5244
    %v5563 = vpack.c.b16 %v5247, %v5245
    %v5564 = vpack.c.b16 %v5250, %v5248
    %v5565 = vpack.c.b16 %v5251, %v5249
    %v5566 = vpack.c.b16 %v5254, %v5252
    %v5567 = vpack.c.b16 %v5255, %v5253
    %v5568 = vpack.c.b16 %v5258, %v5256
    %v5569 = vpack.c.b16 %v5259, %v5257
    %v5570 = vpack.c.b16 %v5262, %v5260
    %v5571 = vpack.c.b16 %v5263, %v5261
    %v5572 = vpack.c.b16 %v5266, %v5264
    %v5573 = vpack.c.b16 %v5267, %v5265
    %v5574 = vpack.c.b16 %v5270, %v5268
    %v5575 = vpack.c.b16 %v5271, %v5269
    %v5576 = vpack.c.b16 %v5274, %v5272
    %v5577 = vpack.c.b16 %v5275, %v5273
    %v5578 = vpack.c.b16 %v5278, %v5276
    %v5579 = vpack.c.b16 %v5279, %v5277
    %v5580 = vpack.c.b16 %v5282, %v5280
    %v5581 = vpack.c.b16 %v5283, %v5281
    %v5582 = vpack.c.b16 %v5286, %v5284
    %v5583 = vpack.c.b16 %v5287, %v5285
    %v5584 = vpack.c.b16 %v5290, %v5288
    %v5585 = vpack.c.b16 %v5291, %v5289
    %v5586 = vpack.c.b16 %v5294, %v5292
    %v5587 = vpack.c.b16 %v5295, %v5293
    %v5588 = vpack.c.b16 %v5298, %v5296
    %v5589 = vpack.c.b16 %v5299, %v5297
    %v5590 = vpack.c.b16 %v5302, %v5300
    %v5591 = vpack.c.b16 %v5303, %v5301
    %v5592 = vpack.c.b16 %v5306, %v5304
    %v5593 = vpack.c.b16 %v5307, %v5305
    %v5594 = vpack.c.b16 %v5310, %v5308
    %v5595 = vpack.c.b16 %v5311, %v5309
    %v5596 = vpack.c.b16 %v5314, %v5312
    %v5597 = vpack.c.b16 %v5315, %v5313
    %v5598 = vpack.c.b16 %v5318, %v5316
    %v5599 = vpack.c.b16 %v5319, %v5317
    %v5600 = vpack.c.b16 %v5322, %v5320
    %v5601 = vpack.c.b16 %v5323, %v5321
    %v5602 = vpack.c.b16 %v5326, %v5324
    %v5603 = vpack.c.b16 %v5327, %v5325
    %v5604 = vpack.c.b16 %v5330, %v5328
    %v5605 = vpack.c.b16 %v5331, %v5329
    %v5606 = vpack.c.b16 %v5334, %v5332
    %v5607 = vpack.c.b16 %v5335, %v5333
    %v5608 = vpack.c.b16 %v5338, %v5336
    %v5609 = vpack.c.b16 %v5339, %v5337
    %v5610 = vpack.c.b16 %v5342, %v5340
    %v5611 = vpack.c.b16 %v5343, %v5341
    %v5612 = vpack.c.b16 %v5346, %v5344
    %v5613 = vpack.c.b16 %v5347, %v5345
    %v5614 = vpack.c.b16 %v5350, %v5348
    %v5615 = vpack.c.b16 %v5351, %v5349
    %v5616 = vpack.c.b16 %v5354, %v5352
    %v5617 = vpack.c.b16 %v5355, %v5353
    %v5618 = vpack.c.b16 %v5358, %v5356
    %v5619 = vpack.c.b16 %v5359, %v5357
    %v5620 = vpack.c.b16 %v5362, %v5360
    %v5621 = vpack.c.b16 %v5363, %v5361
    %v5622 = vpack.c.b16 %v5366, %v5364
    %v5623 = vpack.c.b16 %v5367, %v5365
    %v5624 = vpack.c.b16 %v5370, %v5368
    %v5625 = vpack.c.b16 %v5371, %v5369
    %v5626 = vpack.c.b16 %v5374, %v5372
    %v5627 = vpack.c.b16 %v5375, %v5373
    %v5628 = vpack.c.b16 %v5378, %v5376
    %v5629 = vpack.c.b16 %v5379, %v5377
    %v5630 = vpack.c.b16 %v5382, %v5380
    %v5631 = vpack.c.b16 %v5383, %v5381
    %v5632 = vpack.c.b16 %v5386, %v5384
    %v5633 = vpack.c.b16 %v5387, %v5385
    %v5634 = vpack.c.b16 %v5390, %v5388
    %v5635 = vpack.c.b16 %v5391, %v5389
    %v5636 = vpack.c.b16 %v5394, %v5392
    %v5637 = vpack.c.b16 %v5395, %v5393
    %v5638 = vpack.c.b16 %v5398, %v5396
    %v5639 = vpack.c.b16 %v5399, %v5397
    %v5640 = vpack.c.b16 %v5402, %v5400
    %v5641 = vpack.c.b16 %v5403, %v5401
    %v5642 = vpack.c.b16 %v5406, %v5404
    %v5643 = vpack.c.b16 %v5407, %v5405
    %v5644 = vpack.c.b16 %v5410, %v5408
    %v5645 = vpack.c.b16 %v5411, %v5409
    %v5646 = vpack.c.b16 %v5414, %v5412
    %v5647 = vpack.c.b16 %v5415, %v5413
    %v5648 = vpack.c.b16 %v5418, %v5416
    %v5649 = vpack.c.b16 %v5419, %v5417
    %v5650 = vpack.c.b16 %v5422, %v5420
    %v5651 = vpack.c.b16 %v5423, %v5421
    %v5652 = vpack.c.b16 %v5426, %v5424
    %v5653 = vpack.c.b16 %v5427, %v5425
    %v5654 = vpack.c.b16 %v5430, %v5428
    %v5655 = vpack.c.b16 %v5431, %v5429
    %v5656 = vpack.c.b16 %v5434, %v5432
    %v5657 = vpack.c.b16 %v5435, %v5433
    %v5658 = vpack.c.b16 %v5438, %v5436
    %v5659 = vpack.c.b16 %v5439, %v5437
    %v5660 = vpack.c.b16 %v5442, %v5440
    %v5661 = vpack.c.b16 %v5443, %v5441
    %v5662 = vpack.c.b16 %v5446, %v5444
    %v5663 = vpack.c.b16 %v5447, %v5445
    %v5664 = vpack.c.b16 %v5450, %v5448
    %v5665 = vpack.c.b16 %v5451, %v5449
    %v5666 = vpack.c.b16 %v5454, %v5452
    %v5667 = vpack.c.b16 %v5455, %v5453
    %v5668 = vpack.c.b16 %v5458, %v5456
    %v5669 = vpack.c.b16 %v5459, %v5457
    %v5670 = vpack.c.b16 %v5462, %v5460
    %v5671 = vpack.c.b16 %v5463, %v5461
    %v5672 = vpack.c.b16 %v5466, %v5464
    %v5673 = vpack.c.b16 %v5467, %v5465
    %v5674 = vpack.c.b16 %v5470, %v5468
    %v5675 = vpack.c.b16 %v5471, %v5469
    %v5676 = vpack.c.b16 %v5474, %v5472
    %v5677 = vpack.c.b16 %v5475, %v5473
    %v5678 = vpack.c.b16 %v5478, %v5476
    %v5679 = vpack.c.b16 %v5479, %v5477
    %v5680 = vpack.c.b16 %v5482, %v5480
    %v5681 = vpack.c.b16 %v5483, %v5481
    %v5682 = vpack.c.b16 %v5486, %v5484
    %v5683 = vpack.c.b16 %v5487, %v5485
    %v5684 = vpack.c.b16 %v5490, %v5488
    %v5685 = vpack.c.b16 %v5491, %v5489
    %v5686 = vpack.c.b16 %v5494, %v5492
    %v5687 = vpack.c.b16 %v5495, %v5493
    %5880 = vmatprep.subr.bf16.mxu0 %v5497
    %5881 = vmatpush1.bf16.msra.mxu0 %v5496
    %5882 = vmatprep.subr.bf16.mxu0 %v5499
    %5883 = vmatpush1.bf16.msra.mxu0 %v5498
    %5884 = vmatprep.subr.bf16.mxu0 %v5501
    %5885 = vmatpush1.bf16.msra.mxu0 %v5500
    %5886 = vmatprep.subr.bf16.mxu0 %v5503
    %5887 = vmatpush1.bf16.msra.mxu0 %v5502
    %5888 = vmatprep.subr.bf16.mxu0 %v5505
    %5889 = vmatpush1.bf16.msra.mxu0 %v5504
    %5890 = vmatprep.subr.bf16.mxu0 %v5507
    %5891 = vmatpush1.bf16.msra.mxu0 %v5506
    %5892 = vmatprep.subr.bf16.mxu0 %v5509
    %5893 = vmatpush1.bf16.msra.mxu0 %v5508
    %5894 = vmatprep.subr.bf16.mxu0 %v5511
    %5895 = vmatpush1.bf16.msra.mxu0 %v5510
    %5896 = vmatprep.subr.bf16.mxu0 %v5513
    %5897 = vmatpush1.bf16.msra.mxu0 %v5512
    %5898 = vmatprep.subr.bf16.mxu0 %v5515
    %5899 = vmatpush1.bf16.msra.mxu0 %v5514
    %5900 = vmatprep.subr.bf16.mxu0 %v5517
    %5901 = vmatpush1.bf16.msra.mxu0 %v5516
    %5902 = vmatprep.subr.bf16.mxu0 %v5519
    %5903 = vmatpush1.bf16.msra.mxu0 %v5518
    %5904 = vmatprep.subr.bf16.mxu0 %v5521
    %5905 = vmatpush1.bf16.msra.mxu0 %v5520
    %5906 = vmatprep.subr.bf16.mxu0 %v5523
    %5907 = vmatpush1.bf16.msra.mxu0 %v5522
    %5908 = vmatprep.subr.bf16.mxu0 %v5525
    %5909 = vmatpush1.bf16.msra.mxu0 %v5524
    %5910 = vmatprep.subr.bf16.mxu0 %v5527
    %5911 = vmatpush1.bf16.msra.mxu0 %v5526
    %5912 = vmatprep.mubr.bf16.mxu0 %v4705
    %5913 = vmatmul.mubr.bf16.gmra.mrb[0].mxu0 %v4704
    %v5914 = vpop.f32.mrb[0].mxu0
    %v5915 = vadd.f32 %v4913, %v5914
    %v5916 = vpop.f32.mrb[0].mxu0
    %v5917 = vadd.f32 %v4917, %v5916
    %v5918 = vpop.f32.mrb[0].mxu0
    %v5919 = vpop.f32.mrb[0].mxu0
    %5920 = vdwg.mxu0
    %5921 = vmatprep.subr.bf16.mxu0 %v5529
    %5922 = vmatpush1.bf16.msra.mxu0 %v5528
    %5923 = vmatprep.subr.bf16.mxu0 %v5531
    %5924 = vmatpush1.bf16.msra.mxu0 %v5530
    %5925 = vmatprep.subr.bf16.mxu0 %v5533
    %5926 = vmatpush1.bf16.msra.mxu0 %v5532
    %5927 = vmatprep.subr.bf16.mxu0 %v5535
    %5928 = vmatpush1.bf16.msra.mxu0 %v5534
    %5929 = vmatprep.subr.bf16.mxu0 %v5537
    %5930 = vmatpush1.bf16.msra.mxu0 %v5536
    %5931 = vmatprep.subr.bf16.mxu0 %v5539
    %5932 = vmatpush1.bf16.msra.mxu0 %v5538
    %5933 = vmatprep.subr.bf16.mxu0 %v5541
    %5934 = vmatpush1.bf16.msra.mxu0 %v5540
    %5935 = vmatprep.subr.bf16.mxu0 %v5543
    %5936 = vmatpush1.bf16.msra.mxu0 %v5542
    %5937 = vmatprep.subr.bf16.mxu0 %v5545
    %5938 = vmatpush1.bf16.msra.mxu0 %v5544
    %5939 = vmatprep.subr.bf16.mxu0 %v5547
    %5940 = vmatpush1.bf16.msra.mxu0 %v5546
    %5941 = vmatprep.subr.bf16.mxu0 %v5549
    %5942 = vmatpush1.bf16.msra.mxu0 %v5548
    %5943 = vmatprep.subr.bf16.mxu0 %v5551
    %5944 = vmatpush1.bf16.msra.mxu0 %v5550
    %5945 = vmatprep.subr.bf16.mxu0 %v5553
    %5946 = vmatpush1.bf16.msra.mxu0 %v5552
    %5947 = vmatprep.subr.bf16.mxu0 %v5555
    %5948 = vmatpush1.bf16.msra.mxu0 %v5554
    %5949 = vmatprep.subr.bf16.mxu0 %v5557
    %5950 = vmatpush1.bf16.msra.mxu0 %v5556
    %5951 = vmatprep.subr.bf16.mxu0 %v5559
    %5952 = vmatpush1.bf16.msra.mxu0 %v5558
    %5953 = vmatprep.mubr.bf16.mxu0 %v4707
    %5954 = vmatmul.mubr.bf16.gmra.mrb[0].mxu0 %v4706
    %v5955 = vpop.f32.mrb[0].mxu0
    %v5956 = vadd.f32 %v5915, %v5955
    %v5957 = vpop.f32.mrb[0].mxu0
    %v5958 = vadd.f32 %v5917, %v5957
    %v5959 = vpop.f32.mrb[0].mxu0
    %v5960 = vpop.f32.mrb[0].mxu0
    %5961 = vdwg.mxu0
    %5962 = vmatprep.subr.bf16.mxu0 %v5561
    %5963 = vmatpush1.bf16.msra.mxu0 %v5560
    %5964 = vmatprep.subr.bf16.mxu0 %v5563
    %5965 = vmatpush1.bf16.msra.mxu0 %v5562
    %5966 = vmatprep.subr.bf16.mxu0 %v5565
    %5967 = vmatpush1.bf16.msra.mxu0 %v5564
    %5968 = vmatprep.subr.bf16.mxu0 %v5567
    %5969 = vmatpush1.bf16.msra.mxu0 %v5566
    %5970 = vmatprep.subr.bf16.mxu0 %v5569
    %5971 = vmatpush1.bf16.msra.mxu0 %v5568
    %5972 = vmatprep.subr.bf16.mxu0 %v5571
    %5973 = vmatpush1.bf16.msra.mxu0 %v5570
    %5974 = vmatprep.subr.bf16.mxu0 %v5573
    %5975 = vmatpush1.bf16.msra.mxu0 %v5572
    %5976 = vmatprep.subr.bf16.mxu0 %v5575
    %5977 = vmatpush1.bf16.msra.mxu0 %v5574
    %5978 = vmatprep.subr.bf16.mxu0 %v5577
    %5979 = vmatpush1.bf16.msra.mxu0 %v5576
    %5980 = vmatprep.subr.bf16.mxu0 %v5579
    %5981 = vmatpush1.bf16.msra.mxu0 %v5578
    %5982 = vmatprep.subr.bf16.mxu0 %v5581
    %5983 = vmatpush1.bf16.msra.mxu0 %v5580
    %5984 = vmatprep.subr.bf16.mxu0 %v5583
    %5985 = vmatpush1.bf16.msra.mxu0 %v5582
    %5986 = vmatprep.subr.bf16.mxu0 %v5585
    %5987 = vmatpush1.bf16.msra.mxu0 %v5584
    %5988 = vmatprep.subr.bf16.mxu0 %v5587
    %5989 = vmatpush1.bf16.msra.mxu0 %v5586
    %5990 = vmatprep.subr.bf16.mxu0 %v5589
    %5991 = vmatpush1.bf16.msra.mxu0 %v5588
    %5992 = vmatprep.subr.bf16.mxu0 %v5591
    %5993 = vmatpush1.bf16.msra.mxu0 %v5590
    %5994 = vmatprep.mubr.bf16.mxu0 %v4709
    %5995 = vmatmul.mubr.bf16.gmra.mrb[0].mxu0 %v4708
    %v5996 = vpop.f32.mrb[0].mxu0
    %v5997 = vadd.f32 %v5956, %v5996
    %v5998 = vpop.f32.mrb[0].mxu0
    %v5999 = vadd.f32 %v5958, %v5998
    %v6000 = vpop.f32.mrb[0].mxu0
    %v6001 = vpop.f32.mrb[0].mxu0
    %6002 = vdwg.mxu0
    %6003 = vmatprep.subr.bf16.mxu0 %v5593
    %6004 = vmatpush1.bf16.msra.mxu0 %v5592
    %6005 = vmatprep.subr.bf16.mxu0 %v5595
    %6006 = vmatpush1.bf16.msra.mxu0 %v5594
    %6007 = vmatprep.subr.bf16.mxu0 %v5597
    %6008 = vmatpush1.bf16.msra.mxu0 %v5596
    %6009 = vmatprep.subr.bf16.mxu0 %v5599
    %6010 = vmatpush1.bf16.msra.mxu0 %v5598
    %6011 = vmatprep.subr.bf16.mxu0 %v5601
    %6012 = vmatpush1.bf16.msra.mxu0 %v5600
    %6013 = vmatprep.subr.bf16.mxu0 %v5603
    %6014 = vmatpush1.bf16.msra.mxu0 %v5602
    %6015 = vmatprep.subr.bf16.mxu0 %v5605
    %6016 = vmatpush1.bf16.msra.mxu0 %v5604
    %6017 = vmatprep.subr.bf16.mxu0 %v5607
    %6018 = vmatpush1.bf16.msra.mxu0 %v5606
    %6019 = vmatprep.subr.bf16.mxu0 %v5609
    %6020 = vmatpush1.bf16.msra.mxu0 %v5608
    %6021 = vmatprep.subr.bf16.mxu0 %v5611
    %6022 = vmatpush1.bf16.msra.mxu0 %v5610
    %6023 = vmatprep.subr.bf16.mxu0 %v5613
    %6024 = vmatpush1.bf16.msra.mxu0 %v5612
    %6025 = vmatprep.subr.bf16.mxu0 %v5615
    %6026 = vmatpush1.bf16.msra.mxu0 %v5614
    %6027 = vmatprep.subr.bf16.mxu0 %v5617
    %6028 = vmatpush1.bf16.msra.mxu0 %v5616
    %6029 = vmatprep.subr.bf16.mxu0 %v5619
    %6030 = vmatpush1.bf16.msra.mxu0 %v5618
    %6031 = vmatprep.subr.bf16.mxu0 %v5621
    %6032 = vmatpush1.bf16.msra.mxu0 %v5620
    %6033 = vmatprep.subr.bf16.mxu0 %v5623
    %6034 = vmatpush1.bf16.msra.mxu0 %v5622
    %6035 = vmatprep.mubr.bf16.mxu0 %v4711
    %6036 = vmatmul.mubr.bf16.gmra.mrb[0].mxu0 %v4710
    %v6037 = vpop.f32.mrb[0].mxu0
    %v6038 = vadd.f32 %v5997, %v6037
    %v6039 = vpop.f32.mrb[0].mxu0
    %v6040 = vadd.f32 %v5999, %v6039
    %v6041 = vpop.f32.mrb[0].mxu0
    %v6042 = vpop.f32.mrb[0].mxu0
    %6043 = vdwg.mxu0
    %6044 = vmatprep.subr.bf16.mxu0 %v5625
    %6045 = vmatpush1.bf16.msra.mxu0 %v5624
    %6046 = vmatprep.subr.bf16.mxu0 %v5627
    %6047 = vmatpush1.bf16.msra.mxu0 %v5626
    %6048 = vmatprep.subr.bf16.mxu0 %v5629
    %6049 = vmatpush1.bf16.msra.mxu0 %v5628
    %6050 = vmatprep.subr.bf16.mxu0 %v5631
    %6051 = vmatpush1.bf16.msra.mxu0 %v5630
    %6052 = vmatprep.subr.bf16.mxu0 %v5633
    %6053 = vmatpush1.bf16.msra.mxu0 %v5632
    %6054 = vmatprep.subr.bf16.mxu0 %v5635
    %6055 = vmatpush1.bf16.msra.mxu0 %v5634
    %6056 = vmatprep.subr.bf16.mxu0 %v5637
    %6057 = vmatpush1.bf16.msra.mxu0 %v5636
    %6058 = vmatprep.subr.bf16.mxu0 %v5639
    %6059 = vmatpush1.bf16.msra.mxu0 %v5638
    %6060 = vmatprep.subr.bf16.mxu0 %v5641
    %6061 = vmatpush1.bf16.msra.mxu0 %v5640
    %6062 = vmatprep.subr.bf16.mxu0 %v5643
    %6063 = vmatpush1.bf16.msra.mxu0 %v5642
    %6064 = vmatprep.subr.bf16.mxu0 %v5645
    %6065 = vmatpush1.bf16.msra.mxu0 %v5644
    %6066 = vmatprep.subr.bf16.mxu0 %v5647
    %6067 = vmatpush1.bf16.msra.mxu0 %v5646
    %6068 = vmatprep.subr.bf16.mxu0 %v5649
    %6069 = vmatpush1.bf16.msra.mxu0 %v5648
    %6070 = vmatprep.subr.bf16.mxu0 %v5651
    %6071 = vmatpush1.bf16.msra.mxu0 %v5650
    %6072 = vmatprep.subr.bf16.mxu0 %v5653
    %6073 = vmatpush1.bf16.msra.mxu0 %v5652
    %6074 = vmatprep.subr.bf16.mxu0 %v5655
    %6075 = vmatpush1.bf16.msra.mxu0 %v5654
    %6076 = vmatprep.mubr.bf16.mxu0 %v4713
    %6077 = vmatmul.mubr.bf16.gmra.mrb[0].mxu0 %v4712
    %v6078 = vpop.f32.mrb[0].mxu0
    %v6079 = vadd.f32 %v6038, %v6078
    %v6080 = vpop.f32.mrb[0].mxu0
    %v6081 = vadd.f32 %v6040, %v6080
    %v6082 = vpop.f32.mrb[0].mxu0
    %v6083 = vpop.f32.mrb[0].mxu0
    %6084 = vdwg.mxu0
    %6085 = vmatprep.subr.bf16.mxu0 %v5657
    %6086 = vmatpush1.bf16.msra.mxu0 %v5656
    %6087 = vmatprep.subr.bf16.mxu0 %v5659
    %6088 = vmatpush1.bf16.msra.mxu0 %v5658
    %6089 = vmatprep.subr.bf16.mxu0 %v5661
    %6090 = vmatpush1.bf16.msra.mxu0 %v5660
    %6091 = vmatprep.subr.bf16.mxu0 %v5663
    %6092 = vmatpush1.bf16.msra.mxu0 %v5662
    %6093 = vmatprep.subr.bf16.mxu0 %v5665
    %6094 = vmatpush1.bf16.msra.mxu0 %v5664
    %6095 = vmatprep.subr.bf16.mxu0 %v5667
    %6096 = vmatpush1.bf16.msra.mxu0 %v5666
    %6097 = vmatprep.subr.bf16.mxu0 %v5669
    %6098 = vmatpush1.bf16.msra.mxu0 %v5668
    %6099 = vmatprep.subr.bf16.mxu0 %v5671
    %6100 = vmatpush1.bf16.msra.mxu0 %v5670
    %6101 = vmatprep.subr.bf16.mxu0 %v5673
    %6102 = vmatpush1.bf16.msra.mxu0 %v5672
    %6103 = vmatprep.subr.bf16.mxu0 %v5675
    %6104 = vmatpush1.bf16.msra.mxu0 %v5674
    %6105 = vmatprep.subr.bf16.mxu0 %v5677
    %6106 = vmatpush1.bf16.msra.mxu0 %v5676
    %6107 = vmatprep.subr.bf16.mxu0 %v5679
    %6108 = vmatpush1.bf16.msra.mxu0 %v5678
    %6109 = vmatprep.subr.bf16.mxu0 %v5681
    %6110 = vmatpush1.bf16.msra.mxu0 %v5680
    %6111 = vmatprep.subr.bf16.mxu0 %v5683
    %6112 = vmatpush1.bf16.msra.mxu0 %v5682
    %6113 = vmatprep.subr.bf16.mxu0 %v5685
    %6114 = vmatpush1.bf16.msra.mxu0 %v5684
    %6115 = vmatprep.subr.bf16.mxu0 %v5687
    %6116 = vmatpush1.bf16.msra.mxu0 %v5686
    %6117 = vmatprep.mubr.bf16.mxu0 %v4715
    %6118 = vmatmul.mubr.bf16.gmra.mrb[0].mxu0 %v4714
    %v6119 = vpop.f32.mrb[0].mxu0
    %v6120 = vadd.f32 %v6079, %v6119
    %v6121 = vpop.f32.mrb[0].mxu0
    %v6122 = vadd.f32 %v6081, %v6121
    %v6123 = vpop.f32.mrb[0].mxu0
    %v6124 = vpop.f32.mrb[0].mxu0
    %6125 = vdwg.mxu0
    %vm6126 = vcmp.gt.f32.partialorder %v6120, 0.0
    %vm6127 = vcmp.gt.f32.partialorder %v6122, 0.0
    %v6128 = vmul.f32 %v6120, 0.1
    %v6129 = vmul.f32 %v6122, 0.1
    %v6130 = vsel %vm6126, %v6120, %v6128
    %v6131 = vsel %vm6127, %v6122, %v6129
    %v6132 = vpack.c.bf16 %v6130, %v6130
    %v6133 = vpack.c.bf16 %v6131, %v6131
    %v6134 = vld [vmem:[%s3] sm:$0xf]
    %v6135 = vld [vmem:[%s3 + $0x4] sm:$0xf]
    %v6136 = vld [vmem:[%s3 + $0x8] sm:$0xf]
    %v6137 = vld [vmem:[%s3 + $0xc] sm:$0xf]
    %v6138 = vld [vmem:[%s3 + $0x10] sm:$0xf]
    %v6139 = vld [vmem:[%s3 + $0x14] sm:$0xf]
    %v6140 = vld [vmem:[%s3 + $0x18] sm:$0xf]
    %v6141 = vld [vmem:[%s3 + $0x1c] sm:$0xf]
    %v6142 = vld [vmem:[%s3 + $0x20] sm:$0xf]
    %v6143 = vld [vmem:[%s3 + $0x24] sm:$0xf]
    %v6144 = vld [vmem:[%s3 + $0x28] sm:$0xf]
    %v6145 = vld [vmem:[%s3 + $0x2c] sm:$0xf]
    %v6146 = vld [vmem:[%s3 + $0x30] sm:$0xf]
    %v6147 = vld [vmem:[%s3 + $0x34] sm:$0xf]
    %v6148 = vld [vmem:[%s3 + $0x38] sm:$0xf]
    %v6149 = vld [vmem:[%s3 + $0x3c] sm:$0xf]
    %v6150 = vld [vmem:[%s3 + $0x40] sm:$0xf]
    %v6151 = vld [vmem:[%s3 + $0x44] sm:$0xf]
    %v6152 = vld [vmem:[%s3 + $0x48] sm:$0xf]
    %v6153 = vld [vmem:[%s3 + $0x4c] sm:$0xf]
    %v6154 = vld [vmem:[%s3 + $0x50] sm:$0xf]
    %v6155 = vld [vmem:[%s3 + $0x54] sm:$0xf]
    %v6156 = vld [vmem:[%s3 + $0x58] sm:$0xf]
    %v6157 = vld [vmem:[%s3 + $0x5c] sm:$0xf]
    %v6158 = vld [vmem:[%s3 + $0x60] sm:$0xf]
    %v6159 = vld [vmem:[%s3 + $0x64] sm:$0xf]
    %v6160 = vld [vmem:[%s3 + $0x68] sm:$0xf]
    %v6161 = vld [vmem:[%s3 + $0x6c] sm:$0xf]
    %v6162 = vld [vmem:[%s3 + $0x70] sm:$0xf]
    %v6163 = vld [vmem:[%s3 + $0x74] sm:$0xf]
    %v6164 = vld [vmem:[%s3 + $0x78] sm:$0xf]
    %v6165 = vld [vmem:[%s3 + $0x7c] sm:$0xf]
    %v6166 = vld [vmem:[%s4] sm:$0x1]
    %v6168 = vlaneseq
    %v6169 = vshrl.u32 %v6168, 7
    %v6170 = vsub.s32 0, %v6169
    %v6171 = vrot.slane %v6166, %v6170
    %v6205 = vunpack.c.l.b16 %v6134
    %v6206 = vunpack.c.l.b16 %v6135
    %v6207 = vunpack.c.l.b16 %v6136
    %v6208 = vunpack.c.l.b16 %v6137
    %v6209 = vunpack.c.l.b16 %v6138
    %v6210 = vunpack.c.l.b16 %v6139
    %v6211 = vunpack.c.l.b16 %v6140
    %v6212 = vunpack.c.l.b16 %v6141
    %v6213 = vunpack.c.l.b16 %v6142
    %v6214 = vunpack.c.l.b16 %v6143
    %v6215 = vunpack.c.l.b16 %v6144
    %v6216 = vunpack.c.l.b16 %v6145
    %v6217 = vunpack.c.l.b16 %v6146
    %v6218 = vunpack.c.l.b16 %v6147
    %v6219 = vunpack.c.l.b16 %v6148
    %v6220 = vunpack.c.l.b16 %v6149
    %v6221 = vunpack.c.l.b16 %v6150
    %v6222 = vunpack.c.l.b16 %v6151
    %v6223 = vunpack.c.l.b16 %v6152
    %v6224 = vunpack.c.l.b16 %v6153
    %v6225 = vunpack.c.l.b16 %v6154
    %v6226 = vunpack.c.l.b16 %v6155
    %v6227 = vunpack.c.l.b16 %v6156
    %v6228 = vunpack.c.l.b16 %v6157
    %v6229 = vunpack.c.l.b16 %v6158
    %v6230 = vunpack.c.l.b16 %v6159
    %v6231 = vunpack.c.l.b16 %v6160
    %v6232 = vunpack.c.l.b16 %v6161
    %v6233 = vunpack.c.l.b16 %v6162
    %v6234 = vunpack.c.l.b16 %v6163
    %v6235 = vunpack.c.l.b16 %v6164
    %v6236 = vunpack.c.l.b16 %v6165
    %v6237 = vpack.c.b16 %v6206, %v6205
    %v6238 = vpack.c.b16 %v6208, %v6207
    %v6239 = vpack.c.b16 %v6210, %v6209
    %v6240 = vpack.c.b16 %v6212, %v6211
    %v6241 = vpack.c.b16 %v6214, %v6213
    %v6242 = vpack.c.b16 %v6216, %v6215
    %v6243 = vpack.c.b16 %v6218, %v6217
    %v6244 = vpack.c.b16 %v6220, %v6219
    %v6245 = vpack.c.b16 %v6222, %v6221
    %v6246 = vpack.c.b16 %v6224, %v6223
    %v6247 = vpack.c.b16 %v6226, %v6225
    %v6248 = vpack.c.b16 %v6228, %v6227
    %v6249 = vpack.c.b16 %v6230, %v6229
    %v6250 = vpack.c.b16 %v6232, %v6231
    %v6251 = vpack.c.b16 %v6234, %v6233
    %v6252 = vpack.c.b16 %v6236, %v6235
    %6269 = vmatprep.subr.bf16.mxu0 0
    %6270 = vmatpush1.bf16.msra.mxu0 %v6237
    %6271 = vmatprep.subr.bf16.mxu0 0
    %6272 = vmatpush1.bf16.msra.mxu0 %v6238
    %6273 = vmatprep.subr.bf16.mxu0 0
    %6274 = vmatpush1.bf16.msra.mxu0 %v6239
    %6275 = vmatprep.subr.bf16.mxu0 0
    %6276 = vmatpush1.bf16.msra.mxu0 %v6240
    %6277 = vmatprep.subr.bf16.mxu0 0
    %6278 = vmatpush1.bf16.msra.mxu0 %v6241
    %6279 = vmatprep.subr.bf16.mxu0 0
    %6280 = vmatpush1.bf16.msra.mxu0 %v6242
    %6281 = vmatprep.subr.bf16.mxu0 0
    %6282 = vmatpush1.bf16.msra.mxu0 %v6243
    %6283 = vmatprep.subr.bf16.mxu0 0
    %6284 = vmatpush1.bf16.msra.mxu0 %v6244
    %6285 = vmatprep.subr.bf16.mxu0 0
    %6286 = vmatpush1.bf16.msra.mxu0 %v6245
    %6287 = vmatprep.subr.bf16.mxu0 0
    %6288 = vmatpush1.bf16.msra.mxu0 %v6246
    %6289 = vmatprep.subr.bf16.mxu0 0
    %6290 = vmatpush1.bf16.msra.mxu0 %v6247
    %6291 = vmatprep.subr.bf16.mxu0 0
    %6292 = vmatpush1.bf16.msra.mxu0 %v6248
    %6293 = vmatprep.subr.bf16.mxu0 0
    %6294 = vmatpush1.bf16.msra.mxu0 %v6249
    %6295 = vmatprep.subr.bf16.mxu0 0
    %6296 = vmatpush1.bf16.msra.mxu0 %v6250
    %6297 = vmatprep.subr.bf16.mxu0 0
    %6298 = vmatpush1.bf16.msra.mxu0 %v6251
    %6299 = vmatprep.subr.bf16.mxu0 0
    %6300 = vmatpush1.bf16.msra.mxu0 %v6252
    %6301 = vmatprep.mubr.bf16.mxu0 %v6133
    %6302 = vmatmul.mubr.bf16.gmra.mrb[0].mxu0 %v6132
    %v6303 = vpop.f32.mrb[0].mxu0
    %v6304 = vadd.f32 %v6171, %v6303
    %v6305 = vpop.f32.mrb[0].mxu0
    %v6306 = vpop.f32.mrb[0].mxu0
    %v6307 = vpop.f32.mrb[0].mxu0
    %6308 = vdwg.mxu0
    %vm6309 = vcmask 517120
    %6310 = vst.msk [vmem:[#allocation7] sm:$0x3] %vm6309, %v6304
    // Predicated region
    $region30: #{tpu_custom_call.1} parent=1 // pred_check
      _
    $region31: #{tpu_custom_call.1} parent=1 // pred_check_branch
      %6312 = sbr.rel (0) target = $region33
    $region32: #{tpu_custom_call.1} parent=1 // pred_region
      %s6314 = ssub.s32 32, 32
      %6315 = vsyncadd [#allocation4], %s6314
      %s6317 = sshll.u32 [#allocation7], 4
      %s6318 = int_to_ptr.vmem [resolvable:$true] %s6317
      %6320 = dma.vmem_to_hbm [thread:$0]  %s6318, 32, %s5, [#allocation4]
    $region33: #{tpu_custom_call.1} parent=1 // pred_fallthru
      _
    // Predicated region
    $region34: #{tpu_custom_call.1} parent=1 // pred_check
      _
    $region35: #{tpu_custom_call.1} parent=1 // pred_check_branch
      %6322 = sbr.rel (0) target = $region37
    $region36: #{tpu_custom_call.1} parent=1 // pred_region
      %6323 = dma.done [#allocation4], 32
    $region37: #{tpu_custom_call.1} parent=1 // pred_fallthru
      _
    %6324 = vsyncpa [#allocation3], 1
    %6325 = vsyncpa [#allocation6], 1
    %6326 = vsyncpa [#allocation4], 1

</llo_original>
